<compile_context>
chip_gen: v6e
topology: v6e:2x2x1
jax: 0.10.0
libtpu: 0.0.40
codegen_flags: <defaults>
</compile_context>

<pallas_src>
import functools

import jax
import jax.numpy as jnp
from jax.experimental import pallas as pl
from jax.experimental.pallas import tpu as pltpu

_LANE = 128          # vreg lane width
_SUBLANE = 8         # f32 sublane count


def _round_up(x, m):
    return (x + m - 1) // m * m


def _tpu_budget():
    """(tile_m_max, vmem_limit_bytes) chosen per TPU generation."""
    vmem_cap = None
    try:
        vmem_cap = int(pltpu.get_tpu_info().vmem_capacity_bytes)
    except Exception:
        vmem_cap = None
    if vmem_cap is None:
        try:
            kind = jax.devices()[0].device_kind.lower()
            vmem_cap = 64 * 2**20 if "7" in kind else 128 * 2**20
        except Exception:
            vmem_cap = 64 * 2**20
    if vmem_cap >= 96 * 2**20:        # v5e / v6e: 128 MiB physical VMEM
        return 512, 64 * 2**20
    return 256, 32 * 2**20            # v7x: 64 MiB VMEM per TensorCore


_TILE_M_MAX, _VMEM_LIMIT = _tpu_budget()


# --------------------------------------------------------------------------
# Kernel 1: conv-as-matmul + bias (+ LeakyReLU), tiled over M ("parallel")
# --------------------------------------------------------------------------
def _conv_bias_act_kernel(p_ref, w_ref, b_ref, o_ref, *, use_act, slope):
    # p_ref: [tile_m, K] bf16, w_ref: [K, C] bf16, b_ref: [1, C] f32
    acc = jnp.dot(p_ref[...], w_ref[...], preferred_element_type=jnp.float32)
    acc = acc + b_ref[...]
    if use_act:
        acc = jnp.where(acc >= 0.0, acc, slope * acc)   # LeakyReLU(0.2)
    o_ref[...] = acc.astype(o_ref.dtype)


# --------------------------------------------------------------------------
# Kernel 2 (BN pass 1): conv-as-matmul, streamed bf16 output + per-tile
# partial statistics.  M axis is fully "parallel" (no cross-tile deps).
# Stats are written into an 8-row sublane-aligned block (row 0 = value,
# rows 1..7 = zeros) so the block shape satisfies the (8,128) constraint and
# pass 2 can reduce with a plain sum.
# --------------------------------------------------------------------------
def _conv_stats_kernel(p_ref, w_ref, o_ref, sum_ref, sq_ref):
    acc = jnp.dot(p_ref[...], w_ref[...], preferred_element_type=jnp.float32)
    zeros = jnp.zeros_like(sum_ref)
    sum_ref[...] = zeros
    sq_ref[...] = zeros
    sum_ref[0:1, :] = jnp.sum(acc, axis=0, keepdims=True)         # f32 stats
    sq_ref[0:1, :] = jnp.sum(acc * acc, axis=0, keepdims=True)
    o_ref[...] = acc.astype(o_ref.dtype)                          # bf16 raw


# --------------------------------------------------------------------------
# Kernel 3 (BN pass 2): reduce partial stats, fused scale/shift + LeakyReLU.
# Stats reduction is tiny (n_tiles*8 x C) and recomputed per tile so the M
# axis stays "parallel".
# NOTE: variance uses E[x^2]-E[x]^2 in f32 (matches BatchNorm's biased var);
#       mildly cancellation-prone for very large, non-zero-mean activations.
# --------------------------------------------------------------------------
def _bn_act_kernel(x_ref, psum_ref, psq_ref, g_ref, b_ref, o_ref,
                   *, inv_m, eps, slope):
    mean = jnp.sum(psum_ref[...], axis=0, keepdims=True) * inv_m
    ex2 = jnp.sum(psq_ref[...], axis=0, keepdims=True) * inv_m
    var = jnp.maximum(ex2 - mean * mean, 0.0)
    scale = g_ref[...] * jax.lax.rsqrt(var + eps)      # fused scale
    shift = b_ref[...] - mean * scale                  # fused shift
    y = x_ref[...].astype(jnp.float32) * scale + shift
    o_ref[...] = jnp.where(y >= 0.0, y, slope * y).astype(o_ref.dtype)


# --------------------------------------------------------------------------
# Tiling helper: pick tile_m (and padded M) so one grid step's working set
# fits the generation's VMEM budget, preferring tiles that divide M exactly
# (avoids a full-copy jnp.pad of the patches array).
# --------------------------------------------------------------------------
def _pick_tile_m(m_real, k_pad, c_pad):
    def step_bytes(tm):
        return (2 * tm * k_pad * 2        # patches tile, bf16, double-buffered
                + 2 * k_pad * c_pad * 2   # weight, bf16
                + 2 * tm * c_pad * 2      # output tile, bf16, double-buffered
                + 4 * 8 * c_pad * 4)      # per-tile stats blocks

    tile_cap = _TILE_M_MAX
    while tile_cap > _SUBLANE and step_bytes(tile_cap) > _VMEM_LIMIT // 2:
        tile_cap //= 2
    if m_real <= tile_cap:
        return m_real, m_real             # single tile, no M padding
    floor = max(_SUBLANE, tile_cap // 2)
    start = tile_cap - tile_cap % _SUBLANE
    for tm in range(start, floor - 1, -_SUBLANE):
        if m_real % tm == 0:
            return tm, m_real             # divisor tile, no M padding
    return tile_cap, _round_up(m_real, tile_cap)


# --------------------------------------------------------------------------
# Layer wrappers
# --------------------------------------------------------------------------
def conv_bias_layer(patches, w2, bias, *, tile_m, use_act, out_dtype,
                    slope=0.2):
    m_pad, k_pad = patches.shape
    c_pad = w2.shape[1]
    n_tiles = m_pad // tile_m
    cost = pl.CostEstimate(
        flops=2 * m_pad * k_pad * c_pad,
        transcendentals=0,
        bytes_accessed=(patches.size * 2 + w2.size * 2 + bias.size * 4
                        + m_pad * c_pad * jnp.dtype(out_dtype).itemsize))
    kernel = functools.partial(_conv_bias_act_kernel, use_act=use_act,
                               slope=slope)
    return pl.pallas_call(
        kernel,
        out_shape=jax.ShapeDtypeStruct((m_pad, c_pad), out_dtype),
        grid=(n_tiles,),
        in_specs=[pl.BlockSpec((tile_m, k_pad), lambda m: (m, 0)),
                  pl.BlockSpec((k_pad, c_pad), lambda m: (0, 0)),
                  pl.BlockSpec((1, c_pad), lambda m: (0, 0))],
        out_specs=pl.BlockSpec((tile_m, c_pad), lambda m: (m, 0)),
        compiler_params=pltpu.CompilerParams(
            dimension_semantics=("parallel",),
            vmem_limit_bytes=_VMEM_LIMIT),
        cost_estimate=cost,
    )(patches, w2, bias)


def conv_bn_layer(patches, w2, gamma, beta, *, tile_m, m_real,
                  eps=1e-5, slope=0.2):
    m_pad, k_pad = patches.shape
    c_pad = w2.shape[1]
    n_tiles = m_pad // tile_m

    # ---- pass 1: matmul + streamed raw output + per-tile partial stats ----
    cost1 = pl.CostEstimate(
        flops=2 * m_pad * k_pad * c_pad + 3 * m_pad * c_pad,
        transcendentals=0,
        bytes_accessed=(patches.size * 2 + w2.size * 2
                        + m_pad * c_pad * 2            # raw bf16 out
                        + 2 * n_tiles * 8 * c_pad * 4))
    raw, psum, psq = pl.pallas_call(
        _conv_stats_kernel,
        out_shape=(jax.ShapeDtypeStruct((m_pad, c_pad), jnp.bfloat16),
                   jax.ShapeDtypeStruct((n_tiles * 8, c_pad), jnp.float32),
                   jax.ShapeDtypeStruct((n_tiles * 8, c_pad), jnp.float32)),
        grid=(n_tiles,),
        in_specs=[pl.BlockSpec((tile_m, k_pad), lambda m: (m, 0)),
                  pl.BlockSpec((k_pad, c_pad), lambda m: (0, 0))],
        out_specs=(pl.BlockSpec((tile_m, c_pad), lambda m: (m, 0)),
                   pl.BlockSpec((8, c_pad), lambda m: (m, 0)),
                   pl.BlockSpec((8, c_pad), lambda m: (m, 0))),
        compiler_params=pltpu.CompilerParams(
            dimension_semantics=("parallel",),
            vmem_limit_bytes=_VMEM_LIMIT),
        cost_estimate=cost1,
    )(patches, w2)

    # ---- pass 2: normalize + LeakyReLU, streamed, "parallel" --------------
    kernel2 = functools.partial(_bn_act_kernel, inv_m=1.0 / m_real,
                                eps=eps, slope=slope)
    cost2 = pl.CostEstimate(
        flops=6 * m_pad * c_pad,
        transcendentals=n_tiles * c_pad,
        bytes_accessed=(2 * m_pad * c_pad * 2
                        + 2 * n_tiles * 8 * c_pad * 4 + 2 * c_pad * 4))
    return pl.pallas_call(
        kernel2,
        out_shape=jax.ShapeDtypeStruct((m_pad, c_pad), jnp.bfloat16),
        grid=(n_tiles,),
        in_specs=[pl.BlockSpec((tile_m, c_pad), lambda m: (m, 0)),
                  pl.BlockSpec((n_tiles * 8, c_pad), lambda m: (0, 0)),
                  pl.BlockSpec((n_tiles * 8, c_pad), lambda m: (0, 0)),
                  pl.BlockSpec((1, c_pad), lambda m: (0, 0)),
                  pl.BlockSpec((1, c_pad), lambda m: (0, 0))],
        out_specs=pl.BlockSpec((tile_m, c_pad), lambda m: (m, 0)),
        compiler_params=pltpu.CompilerParams(
            dimension_semantics=("parallel",),
            vmem_limit_bytes=_VMEM_LIMIT),
        cost_estimate=cost2,
    )(raw, psum, psq, gamma, beta)


# --------------------------------------------------------------------------
# Plain-JAX glue: im2col (data rearrangement only, no compute), in bf16.
# --------------------------------------------------------------------------
def _im2col(x, kh, kw, stride, pad_h, pad_w):
    # x: [N, H, W, C]  -> patches [N*OH*OW, kh*kw*C], plus (OH, OW)
    n, h, w, c = x.shape
    xp = jnp.pad(x, ((0, 0), (pad_h, pad_h), (pad_w, pad_w), (0, 0)))
    hp, wp = h + 2 * pad_h, w + 2 * pad_w
    oh = (hp - kh) // stride + 1
    ow = (wp - kw) // stride + 1
    cols = []
    for i in range(kh):
        for j in range(kw):
            patch = jax.lax.slice(
                xp,
                (0, i, j, 0),
                (n, i + (oh - 1) * stride + 1, j + (ow - 1) * stride + 1, c),
                (1, stride, stride, 1),
            )  # [N, OH, OW, C]
            cols.append(patch)
    patches = jnp.concatenate(cols, axis=-1)        # [N, OH, OW, kh*kw*C]
    return patches.reshape(n * oh * ow, kh * kw * c), oh, ow


# --------------------------------------------------------------------------
# Parameter init (deterministic, mirrors the PyTorch module's shapes)
# --------------------------------------------------------------------------
def init_discriminator_params(key, dim=8):
    # (Cin, Cout, k, stride, (padH, padW), has_bias, use_bn, use_act)
    cfgs = [
        (3,        dim,     4, 2, (1, 1), True,  False, True),   # Conv + LeakyReLU
        (dim,      dim * 2, 4, 2, (1, 1), False, True,  True),   # Conv + BN + LeakyReLU
        (dim * 2,  dim * 4, 4, 2, (1, 1), False, True,  True),
        (dim * 4,  dim * 8, 4, 1, (1, 2), False, True,  True),
        (dim * 8,  1,       4, 1, (2, 1), True,  False, False),  # final Conv
    ]
    params = []
    for cin, cout, k, s, pad, has_bias, use_bn, use_act in cfgs:
        key, kw_, kb_ = jax.random.split(key, 3)
        fan_in = cin * k * k
        # kaiming_normal (fan_in, gain=sqrt(2)), laid out [KH, KW, Cin, Cout]
        w = jax.random.normal(kw_, (k, k, cin, cout), jnp.float32) * (2.0 / fan_in) ** 0.5
        if has_bias:
            bound = 1.0 / (fan_in ** 0.5)
            b = jax.random.uniform(kb_, (1, cout), jnp.float32, -bound, bound)
        else:
            b = jnp.zeros((1, cout), jnp.float32)
        gamma = jnp.ones((1, cout), jnp.float32)   # BatchNorm2d default weight
        beta = jnp.zeros((1, cout), jnp.float32)   # BatchNorm2d default bias
        params.append(dict(w=w, b=b, gamma=gamma, beta=beta, k=k, s=s, pad=pad,
                           use_bn=use_bn, use_act=use_act))
    return params


# --------------------------------------------------------------------------
# Forward pass (NCHW in, NCHW out, like the PyTorch module)
# --------------------------------------------------------------------------
def discriminator_forward(params, x_nchw):
    # Activations flow through the network in bf16 (MXU-native); the final
    # layer stores f32.
    x = jnp.transpose(x_nchw, (0, 2, 3, 1)).astype(jnp.bfloat16)  # NCHW -> NHWC
    n = x.shape[0]
    n_layers = len(params)
    for idx, p in enumerate(params):
        k, s = p["k"], p["s"]
        ph, pw = p["pad"]
        cin, cout = p["w"].shape[2], p["w"].shape[3]
        is_last = idx == n_layers - 1

        # Pre-pad Cin to a sublane multiple so K = k*k*Cin_pad is already
        # lane-aligned and the big patches array never needs a K-pad copy.
        cin_pad = _round_up(cin, _SUBLANE)
        if cin_pad != cin:
            x = jnp.pad(x, ((0, 0), (0, 0), (0, 0), (0, cin_pad - cin)))

        patches, oh, ow = _im2col(x, k, k, s, ph, pw)   # bf16 [M, k*k*Cin_pad]
        m_real, kk = patches.shape
        k_pad = _round_up(kk, _LANE)                    # no-op for 4x4 kernels
        c_pad = _round_up(cout, _LANE)
        tile_m, m_pad = _pick_tile_m(m_real, k_pad, c_pad)

        if (m_pad != m_real) or (k_pad != kk):
            # Zero rows/cols contribute exactly 0 to the matmul and the BN
            # sums (divided by m_real), so padding is numerically exact.
            patches = jnp.pad(patches, ((0, m_pad - m_real), (0, k_pad - kk)))

        w2 = p["w"]
        if cin_pad != cin:
            w2 = jnp.pad(w2, ((0, 0), (0, 0), (0, cin_pad - cin), (0, 0)))
        w2 = w2.reshape(k * k * cin_pad, cout)
        w2 = jnp.pad(w2, ((0, k_pad - kk), (0, c_pad - cout))).astype(jnp.bfloat16)

        if p["use_bn"]:
            gamma = jnp.pad(p["gamma"], ((0, 0), (0, c_pad - cout)))  # pads 0 -> no NaN
            beta = jnp.pad(p["beta"], ((0, 0), (0, c_pad - cout)))
            out = conv_bn_layer(patches, w2, gamma, beta,
                                tile_m=tile_m, m_real=m_real)
        else:
            bias = jnp.pad(p["b"], ((0, 0), (0, c_pad - cout)))
            out_dtype = jnp.float32 if is_last else jnp.bfloat16
            out = conv_bias_layer(patches, w2, bias, tile_m=tile_m,
                                  use_act=p["use_act"], out_dtype=out_dtype)

        x = out[:m_real, :cout].reshape(n, oh, ow, cout)
    return jnp.transpose(x, (0, 3, 1, 2)).astype(jnp.float32)  # NHWC -> NCHW


# --------------------------------------------------------------------------
# Pure-JAX f32 reference (lax.conv) for a loose numerical sanity check
# --------------------------------------------------------------------------
def discriminator_reference(params, x_nchw, *, eps=1e-5, slope=0.2):
    x = jnp.transpose(x_nchw, (0, 2, 3, 1)).astype(jnp.float32)
    for p in params:
        s = p["s"]
        ph, pw = p["pad"]
        y = jax.lax.conv_general_dilated(
            x, p["w"], window_strides=(s, s),
            padding=((ph, ph), (pw, pw)),
            dimension_numbers=("NHWC", "HWIO", "NHWC"))
        y = y + p["b"].reshape(1, 1, 1, -1)
        if p["use_bn"]:
            mean = jnp.mean(y, axis=(0, 1, 2), keepdims=True)
            var = jnp.mean(jnp.square(y - mean), axis=(0, 1, 2), keepdims=True)
            y = (y - mean) * jax.lax.rsqrt(var + eps)
            y = y * p["gamma"].reshape(1, 1, 1, -1) + p["beta"].reshape(1, 1, 1, -1)
        if p["use_act"]:
            y = jnp.where(y >= 0.0, y, slope * y)
        x = y
    return jnp.transpose(x, (0, 3, 1, 2))


if __name__ == "__main__":
    key = jax.random.PRNGKey(0)
    kx, kp = jax.random.split(key)
    x = jax.random.normal(kx, (2, 3, 32, 32), jnp.float32)   # small NCHW input
    params = init_discriminator_params(kp, dim=8)            # dim=8 (module default 64)

    fwd = jax.jit(lambda inp: discriminator_forward(params, inp))
    y = fwd(x)
    jax.block_until_ready(y)
    assert y.shape == (2, 1, 4, 4), y.shape

    # Loose check: Pallas path uses bf16 activations / matmul inputs with f32
    # accumulation and f32 BN statistics; the reference is full f32, so the
    # tolerance is generous but still catches structural errors (O(1)).
    y_ref = discriminator_reference(params, x)
    max_err = float(jnp.max(jnp.abs(y - y_ref)))
    assert max_err < 0.2, f"max abs err vs f32 reference: {max_err}"

    print("KERNEL_OK")
</pallas_src>

<mosaic_0001>
module attributes {stable_mosaic.version = 11 : i64} {
  func.func @_conv_bias_act_kernel(%arg0: i32, %arg1: memref<512x128xbf16, #tpu.memory_space<vmem>>, %arg2: memref<128x128xbf16, #tpu.memory_space<vmem>>, %arg3: memref<1x128xf32, #tpu.memory_space<vmem>>, %arg4: memref<512x128xbf16, #tpu.memory_space<vmem>>) attributes {dimension_semantics = [#tpu.dimension_semantics<parallel>], iteration_bounds = array<i64: 1>, scalar_prefetch = 0 : i64, scratch_operands = 0 : i64, tpu.core_type = #tpu.core_type<tc>, window_params = [{transform_indices = @transform_0, window_bounds = array<i64: 512, 128>}, {pipeline_mode = #tpu.pipeline_mode<synchronous>, transform_indices = @transform_1, window_bounds = array<i64: 128, 128>}, {pipeline_mode = #tpu.pipeline_mode<synchronous>, transform_indices = @transform_2, window_bounds = array<i64: 1, 128>}, {transform_indices = @transform_3, window_bounds = array<i64: 512, 128>}]} {
    %c0 = arith.constant 0 : index
    %c0_0 = arith.constant 0 : index
    %0 = vector.load %arg1[%c0, %c0_0] : memref<512x128xbf16, #tpu.memory_space<vmem>>, vector<512x128xbf16>
    %c0_1 = arith.constant 0 : index
    %c0_2 = arith.constant 0 : index
    %1 = vector.load %arg2[%c0_1, %c0_2] : memref<128x128xbf16, #tpu.memory_space<vmem>>, vector<128x128xbf16>
    %cst = arith.constant dense<0.000000e+00> : vector<512x128xf32>
    %2 = tpu.matmul %0, %1, %cst {dimension_numbers = #tpu.dot_dimension_numbers<[1], [0], [0], [1], [0, 0, 1, 1], [], []>} : vector<512x128xbf16>, vector<128x128xbf16>, vector<512x128xf32> -> vector<512x128xf32>
    %c0_3 = arith.constant 0 : index
    %c0_4 = arith.constant 0 : index
    %3 = vector.load %arg3[%c0_3, %c0_4] : memref<1x128xf32, #tpu.memory_space<vmem>>, vector<1x128xf32>
    %4 = vector.broadcast %3 : vector<1x128xf32> to vector<512x128xf32>
    %5 = arith.addf %2, %4 : vector<512x128xf32>
    %cst_5 = arith.constant 0.000000e+00 : f32
    %6 = vector.broadcast %cst_5 : f32 to vector<512x128xf32>
    %7 = arith.cmpf oge, %5, %6 : vector<512x128xf32>
    %cst_6 = arith.constant 2.000000e-01 : f32
    %8 = vector.broadcast %cst_6 : f32 to vector<512x128xf32>
    %9 = arith.mulf %8, %5 : vector<512x128xf32>
    %10 = arith.select %7, %5, %9 : vector<512x128xi1>, vector<512x128xf32>
    %11 = arith.truncf %10 : vector<512x128xf32> to vector<512x128xbf16>
    %c0_7 = arith.constant 0 : index
    %c0_8 = arith.constant 0 : index
    %12 = vector.load %arg4[%c0_7, %c0_8] : memref<512x128xbf16, #tpu.memory_space<vmem>>, vector<512x128xbf16>
    tpu.vector_store %arg4[%c0_7, %c0_8], %11 {strides = array<i32>} : memref<512x128xbf16, #tpu.memory_space<vmem>>, vector<512x128xbf16>,
    return
  }
  func.func @transform_0(%arg0: i32) -> (i32, i32) {
    %c0_i32 = arith.constant 0 : i32
    %c0_i32_0 = arith.constant 0 : i32
    return %arg0, %c0_i32 : i32, i32
  }
  func.func @transform_1(%arg0: i32) -> (i32, i32) {
    %c0_i32 = arith.constant 0 : i32
    %c0_i32_0 = arith.constant 0 : i32
    %c0_i32_1 = arith.constant 0 : i32
    return %c0_i32, %c0_i32_0 : i32, i32
  }
  func.func @transform_2(%arg0: i32) -> (i32, i32) {
    %c0_i32 = arith.constant 0 : i32
    %c0_i32_0 = arith.constant 0 : i32
    %c0_i32_1 = arith.constant 0 : i32
    return %c0_i32, %c0_i32_0 : i32, i32
  }
  func.func @transform_3(%arg0: i32) -> (i32, i32) {
    %c0_i32 = arith.constant 0 : i32
    %c0_i32_0 = arith.constant 0 : i32
    return %arg0, %c0_i32 : i32, i32
  }
}

module attributes {stable_mosaic.version = 11 : i64} {
  func.func @_conv_stats_kernel(%arg0: i32, %arg1: memref<128x128xbf16, #tpu.memory_space<vmem>>, %arg2: memref<128x128xbf16, #tpu.memory_space<vmem>>, %arg3: memref<128x128xbf16, #tpu.memory_space<vmem>>, %arg4: memref<8x128xf32, #tpu.memory_space<vmem>>, %arg5: memref<8x128xf32, #tpu.memory_space<vmem>>) attributes {dimension_semantics = [#tpu.dimension_semantics<parallel>], iteration_bounds = array<i64: 1>, scalar_prefetch = 0 : i64, scratch_operands = 0 : i64, tpu.core_type = #tpu.core_type<tc>, window_params = [{transform_indices = @transform_0, window_bounds = array<i64: 128, 128>}, {pipeline_mode = #tpu.pipeline_mode<synchronous>, transform_indices = @transform_1, window_bounds = array<i64: 128, 128>}, {transform_indices = @transform_2, window_bounds = array<i64: 128, 128>}, {transform_indices = @transform_3, window_bounds = array<i64: 8, 128>}, {transform_indices = @transform_4, window_bounds = array<i64: 8, 128>}]} {
    %c0 = arith.constant 0 : index
    %c0_0 = arith.constant 0 : index
    %0 = vector.load %arg1[%c0, %c0_0] : memref<128x128xbf16, #tpu.memory_space<vmem>>, vector<128x128xbf16>
    %c0_1 = arith.constant 0 : index
    %c0_2 = arith.constant 0 : index
    %1 = vector.load %arg2[%c0_1, %c0_2] : memref<128x128xbf16, #tpu.memory_space<vmem>>, vector<128x128xbf16>
    %cst = arith.constant dense<0.000000e+00> : vector<128x128xf32>
    %2 = tpu.matmul %0, %1, %cst {dimension_numbers = #tpu.dot_dimension_numbers<[1], [0], [0], [1], [0, 0, 1, 1], [], []>} : vector<128x128xbf16>, vector<128x128xbf16>, vector<128x128xf32> -> vector<128x128xf32>
    %cst_3 = arith.constant 0.000000e+00 : f32
    %3 = vector.broadcast %cst_3 : f32 to vector<8x128xf32>
    %c0_4 = arith.constant 0 : index
    %c0_5 = arith.constant 0 : index
    %4 = vector.load %arg4[%c0_4, %c0_5] : memref<8x128xf32, #tpu.memory_space<vmem>>, vector<8x128xf32>
    tpu.vector_store %arg4[%c0_4, %c0_5], %3 {strides = array<i32>} : memref<8x128xf32, #tpu.memory_space<vmem>>, vector<8x128xf32>,
    %c0_6 = arith.constant 0 : index
    %c0_7 = arith.constant 0 : index
    %5 = vector.load %arg5[%c0_6, %c0_7] : memref<8x128xf32, #tpu.memory_space<vmem>>, vector<8x128xf32>
    tpu.vector_store %arg5[%c0_6, %c0_7], %3 {strides = array<i32>} : memref<8x128xf32, #tpu.memory_space<vmem>>, vector<8x128xf32>,
    %cst_8 = arith.constant dense<0.000000e+00> : vector<128xf32>
    %6 = vector.multi_reduction <add>, %2, %cst_8 [0] : vector<128x128xf32> to vector<128xf32>
    %7 = vector.shape_cast %6 : vector<128xf32> to vector<1x128xf32>
    %c0_9 = arith.constant 0 : index
    %c0_10 = arith.constant 0 : index
    %8 = vector.load %arg4[%c0_9, %c0_10] : memref<8x128xf32, #tpu.memory_space<vmem>>, vector<1x128xf32>
    tpu.vector_store %arg4[%c0_9, %c0_10], %7 {strides = array<i32>} : memref<8x128xf32, #tpu.memory_space<vmem>>, vector<1x128xf32>,
    %9 = arith.mulf %2, %2 : vector<128x128xf32>
    %cst_11 = arith.constant dense<0.000000e+00> : vector<128xf32>
    %10 = vector.multi_reduction <add>, %9, %cst_11 [0] : vector<128x128xf32> to vector<128xf32>
    %11 = vector.shape_cast %10 : vector<128xf32> to vector<1x128xf32>
    %c0_12 = arith.constant 0 : index
    %c0_13 = arith.constant 0 : index
    %12 = vector.load %arg5[%c0_12, %c0_13] : memref<8x128xf32, #tpu.memory_space<vmem>>, vector<1x128xf32>
    tpu.vector_store %arg5[%c0_12, %c0_13], %11 {strides = array<i32>} : memref<8x128xf32, #tpu.memory_space<vmem>>, vector<1x128xf32>,
    %13 = arith.truncf %2 : vector<128x128xf32> to vector<128x128xbf16>
    %c0_14 = arith.constant 0 : index
    %c0_15 = arith.constant 0 : index
    %14 = vector.load %arg3[%c0_14, %c0_15] : memref<128x128xbf16, #tpu.memory_space<vmem>>, vector<128x128xbf16>
    tpu.vector_store %arg3[%c0_14, %c0_15], %13 {strides = array<i32>} : memref<128x128xbf16, #tpu.memory_space<vmem>>, vector<128x128xbf16>,
    return
  }
  func.func @transform_0(%arg0: i32) -> (i32, i32) {
    %c0_i32 = arith.constant 0 : i32
    %c0_i32_0 = arith.constant 0 : i32
    return %arg0, %c0_i32 : i32, i32
  }
  func.func @transform_1(%arg0: i32) -> (i32, i32) {
    %c0_i32 = arith.constant 0 : i32
    %c0_i32_0 = arith.constant 0 : i32
    %c0_i32_1 = arith.constant 0 : i32
    return %c0_i32, %c0_i32_0 : i32, i32
  }
  func.func @transform_2(%arg0: i32) -> (i32, i32) {
    %c0_i32 = arith.constant 0 : i32
    %c0_i32_0 = arith.constant 0 : i32
    return %arg0, %c0_i32 : i32, i32
  }
  func.func @transform_3(%arg0: i32) -> (i32, i32) {
    %c0_i32 = arith.constant 0 : i32
    %c0_i32_0 = arith.constant 0 : i32
    return %arg0, %c0_i32 : i32, i32
  }
  func.func @transform_4(%arg0: i32) -> (i32, i32) {
    %c0_i32 = arith.constant 0 : i32
    %c0_i32_0 = arith.constant 0 : i32
    return %arg0, %c0_i32 : i32, i32
  }
}

module attributes {stable_mosaic.version = 11 : i64} {
  func.func @_bn_act_kernel(%arg0: i32, %arg1: memref<128x128xbf16, #tpu.memory_space<vmem>>, %arg2: memref<8x128xf32, #tpu.memory_space<vmem>>, %arg3: memref<8x128xf32, #tpu.memory_space<vmem>>, %arg4: memref<1x128xf32, #tpu.memory_space<vmem>>, %arg5: memref<1x128xf32, #tpu.memory_space<vmem>>, %arg6: memref<128x128xbf16, #tpu.memory_space<vmem>>) attributes {dimension_semantics = [#tpu.dimension_semantics<parallel>], iteration_bounds = array<i64: 1>, scalar_prefetch = 0 : i64, scratch_operands = 0 : i64, tpu.core_type = #tpu.core_type<tc>, window_params = [{transform_indices = @transform_0, window_bounds = array<i64: 128, 128>}, {pipeline_mode = #tpu.pipeline_mode<synchronous>, transform_indices = @transform_1, window_bounds = array<i64: 8, 128>}, {pipeline_mode = #tpu.pipeline_mode<synchronous>, transform_indices = @transform_2, window_bounds = array<i64: 8, 128>}, {pipeline_mode = #tpu.pipeline_mode<synchronous>, transform_indices = @transform_3, window_bounds = array<i64: 1, 128>}, {pipeline_mode = #tpu.pipeline_mode<synchronous>, transform_indices = @transform_4, window_bounds = array<i64: 1, 128>}, {transform_indices = @transform_5, window_bounds = array<i64: 128, 128>}]} {
    %c0 = arith.constant 0 : index
    %c0_0 = arith.constant 0 : index
    %0 = vector.load %arg2[%c0, %c0_0] : memref<8x128xf32, #tpu.memory_space<vmem>>, vector<8x128xf32>
    %cst = arith.constant dense<0.000000e+00> : vector<128xf32>
    %1 = vector.multi_reduction <add>, %0, %cst [0] : vector<8x128xf32> to vector<128xf32>
    %2 = vector.shape_cast %1 : vector<128xf32> to vector<1x128xf32>
    %cst_1 = arith.constant 7.812500e-03 : f32
    %3 = vector.broadcast %cst_1 : f32 to vector<1x128xf32>
    %4 = arith.mulf %2, %3 : vector<1x128xf32>
    %c0_2 = arith.constant 0 : index
    %c0_3 = arith.constant 0 : index
    %5 = vector.load %arg3[%c0_2, %c0_3] : memref<8x128xf32, #tpu.memory_space<vmem>>, vector<8x128xf32>
    %cst_4 = arith.constant dense<0.000000e+00> : vector<128xf32>
    %6 = vector.multi_reduction <add>, %5, %cst_4 [0] : vector<8x128xf32> to vector<128xf32>
    %7 = vector.shape_cast %6 : vector<128xf32> to vector<1x128xf32>
    %cst_5 = arith.constant 7.812500e-03 : f32
    %8 = vector.broadcast %cst_5 : f32 to vector<1x128xf32>
    %9 = arith.mulf %7, %8 : vector<1x128xf32>
    %10 = arith.mulf %4, %4 : vector<1x128xf32>
    %11 = arith.subf %9, %10 : vector<1x128xf32>
    %cst_6 = arith.constant 0.000000e+00 : f32
    %12 = vector.broadcast %cst_6 : f32 to vector<1x128xf32>
    %13 = arith.maximumf %11, %12 : vector<1x128xf32>
    %c0_7 = arith.constant 0 : index
    %c0_8 = arith.constant 0 : index
    %14 = vector.load %arg4[%c0_7, %c0_8] : memref<1x128xf32, #tpu.memory_space<vmem>>, vector<1x128xf32>
    %cst_9 = arith.constant 9.99999974E-6 : f32
    %15 = vector.broadcast %cst_9 : f32 to vector<1x128xf32>
    %16 = arith.addf %13, %15 : vector<1x128xf32>
    %17 = math.rsqrt %16 : vector<1x128xf32>
    %18 = arith.mulf %14, %17 : vector<1x128xf32>
    %c0_10 = arith.constant 0 : index
    %c0_11 = arith.constant 0 : index
    %19 = vector.load %arg5[%c0_10, %c0_11] : memref<1x128xf32, #tpu.memory_space<vmem>>, vector<1x128xf32>
    %20 = arith.mulf %4, %18 : vector<1x128xf32>
    %21 = arith.subf %19, %20 : vector<1x128xf32>
    %c0_12 = arith.constant 0 : index
    %c0_13 = arith.constant 0 : index
    %22 = vector.load %arg1[%c0_12, %c0_13] : memref<128x128xbf16, #tpu.memory_space<vmem>>, vector<128x128xbf16>
    %23 = arith.extf %22 : vector<128x128xbf16> to vector<128x128xf32>
    %24 = vector.broadcast %18 : vector<1x128xf32> to vector<128x128xf32>
    %25 = arith.mulf %23, %24 : vector<128x128xf32>
    %26 = vector.broadcast %21 : vector<1x128xf32> to vector<128x128xf32>
    %27 = arith.addf %25, %26 : vector<128x128xf32>
    %cst_14 = arith.constant 0.000000e+00 : f32
    %28 = vector.broadcast %cst_14 : f32 to vector<128x128xf32>
    %29 = arith.cmpf oge, %27, %28 : vector<128x128xf32>
    %cst_15 = arith.constant 2.000000e-01 : f32
    %30 = vector.broadcast %cst_15 : f32 to vector<128x128xf32>
    %31 = arith.mulf %30, %27 : vector<128x128xf32>
    %32 = arith.select %29, %27, %31 : vector<128x128xi1>, vector<128x128xf32>
    %33 = arith.truncf %32 : vector<128x128xf32> to vector<128x128xbf16>
    %c0_16 = arith.constant 0 : index
    %c0_17 = arith.constant 0 : index
    %34 = vector.load %arg6[%c0_16, %c0_17] : memref<128x128xbf16, #tpu.memory_space<vmem>>, vector<128x128xbf16>
    tpu.vector_store %arg6[%c0_16, %c0_17], %33 {strides = array<i32>} : memref<128x128xbf16, #tpu.memory_space<vmem>>, vector<128x128xbf16>,
    return
  }
  func.func @transform_0(%arg0: i32) -> (i32, i32) {
    %c0_i32 = arith.constant 0 : i32
    %c0_i32_0 = arith.constant 0 : i32
    return %arg0, %c0_i32 : i32, i32
  }
  func.func @transform_1(%arg0: i32) -> (i32, i32) {
    %c0_i32 = arith.constant 0 : i32
    %c0_i32_0 = arith.constant 0 : i32
    %c0_i32_1 = arith.constant 0 : i32
    return %c0_i32, %c0_i32_0 : i32, i32
  }
  func.func @transform_2(%arg0: i32) -> (i32, i32) {
    %c0_i32 = arith.constant 0 : i32
    %c0_i32_0 = arith.constant 0 : i32
    %c0_i32_1 = arith.constant 0 : i32
    return %c0_i32, %c0_i32_0 : i32, i32
  }
  func.func @transform_3(%arg0: i32) -> (i32, i32) {
    %c0_i32 = arith.constant 0 : i32
    %c0_i32_0 = arith.constant 0 : i32
    %c0_i32_1 = arith.constant 0 : i32
    return %c0_i32, %c0_i32_0 : i32, i32
  }
  func.func @transform_4(%arg0: i32) -> (i32, i32) {
    %c0_i32 = arith.constant 0 : i32
    %c0_i32_0 = arith.constant 0 : i32
    %c0_i32_1 = arith.constant 0 : i32
    return %c0_i32, %c0_i32_0 : i32, i32
  }
  func.func @transform_5(%arg0: i32) -> (i32, i32) {
    %c0_i32 = arith.constant 0 : i32
    %c0_i32_0 = arith.constant 0 : i32
    return %arg0, %c0_i32 : i32, i32
  }
}

module attributes {stable_mosaic.version = 11 : i64} {
  func.func @_conv_stats_kernel(%arg0: i32, %arg1: memref<32x256xbf16, #tpu.memory_space<vmem>>, %arg2: memref<256x128xbf16, #tpu.memory_space<vmem>>, %arg3: memref<32x128xbf16, #tpu.memory_space<vmem>>, %arg4: memref<8x128xf32, #tpu.memory_space<vmem>>, %arg5: memref<8x128xf32, #tpu.memory_space<vmem>>) attributes {dimension_semantics = [#tpu.dimension_semantics<parallel>], iteration_bounds = array<i64: 1>, scalar_prefetch = 0 : i64, scratch_operands = 0 : i64, tpu.core_type = #tpu.core_type<tc>, window_params = [{transform_indices = @transform_0, window_bounds = array<i64: 32, 256>}, {pipeline_mode = #tpu.pipeline_mode<synchronous>, transform_indices = @transform_1, window_bounds = array<i64: 256, 128>}, {transform_indices = @transform_2, window_bounds = array<i64: 32, 128>}, {transform_indices = @transform_3, window_bounds = array<i64: 8, 128>}, {transform_indices = @transform_4, window_bounds = array<i64: 8, 128>}]} {
    %c0 = arith.constant 0 : index
    %c0_0 = arith.constant 0 : index
    %0 = vector.load %arg1[%c0, %c0_0] : memref<32x256xbf16, #tpu.memory_space<vmem>>, vector<32x256xbf16>
    %c0_1 = arith.constant 0 : index
    %c0_2 = arith.constant 0 : index
    %1 = vector.load %arg2[%c0_1, %c0_2] : memref<256x128xbf16, #tpu.memory_space<vmem>>, vector<256x128xbf16>
    %cst = arith.constant dense<0.000000e+00> : vector<32x128xf32>
    %2 = tpu.matmul %0, %1, %cst {dimension_numbers = #tpu.dot_dimension_numbers<[1], [0], [0], [1], [0, 0, 1, 1], [], []>} : vector<32x256xbf16>, vector<256x128xbf16>, vector<32x128xf32> -> vector<32x128xf32>
    %cst_3 = arith.constant 0.000000e+00 : f32
    %3 = vector.broadcast %cst_3 : f32 to vector<8x128xf32>
    %c0_4 = arith.constant 0 : index
    %c0_5 = arith.constant 0 : index
    %4 = vector.load %arg4[%c0_4, %c0_5] : memref<8x128xf32, #tpu.memory_space<vmem>>, vector<8x128xf32>
    tpu.vector_store %arg4[%c0_4, %c0_5], %3 {strides = array<i32>} : memref<8x128xf32, #tpu.memory_space<vmem>>, vector<8x128xf32>,
    %c0_6 = arith.constant 0 : index
    %c0_7 = arith.constant 0 : index
    %5 = vector.load %arg5[%c0_6, %c0_7] : memref<8x128xf32, #tpu.memory_space<vmem>>, vector<8x128xf32>
    tpu.vector_store %arg5[%c0_6, %c0_7], %3 {strides = array<i32>} : memref<8x128xf32, #tpu.memory_space<vmem>>, vector<8x128xf32>,
    %cst_8 = arith.constant dense<0.000000e+00> : vector<128xf32>
    %6 = vector.multi_reduction <add>, %2, %cst_8 [0] : vector<32x128xf32> to vector<128xf32>
    %7 = vector.shape_cast %6 : vector<128xf32> to vector<1x128xf32>
    %c0_9 = arith.constant 0 : index
    %c0_10 = arith.constant 0 : index
    %8 = vector.load %arg4[%c0_9, %c0_10] : memref<8x128xf32, #tpu.memory_space<vmem>>, vector<1x128xf32>
    tpu.vector_store %arg4[%c0_9, %c0_10], %7 {strides = array<i32>} : memref<8x128xf32, #tpu.memory_space<vmem>>, vector<1x128xf32>,
    %9 = arith.mulf %2, %2 : vector<32x128xf32>
    %cst_11 = arith.constant dense<0.000000e+00> : vector<128xf32>
    %10 = vector.multi_reduction <add>, %9, %cst_11 [0] : vector<32x128xf32> to vector<128xf32>
    %11 = vector.shape_cast %10 : vector<128xf32> to vector<1x128xf32>
    %c0_12 = arith.constant 0 : index
    %c0_13 = arith.constant 0 : index
    %12 = vector.load %arg5[%c0_12, %c0_13] : memref<8x128xf32, #tpu.memory_space<vmem>>, vector<1x128xf32>
    tpu.vector_store %arg5[%c0_12, %c0_13], %11 {strides = array<i32>} : memref<8x128xf32, #tpu.memory_space<vmem>>, vector<1x128xf32>,
    %13 = arith.truncf %2 : vector<32x128xf32> to vector<32x128xbf16>
    %c0_14 = arith.constant 0 : index
    %c0_15 = arith.constant 0 : index
    %14 = vector.load %arg3[%c0_14, %c0_15] : memref<32x128xbf16, #tpu.memory_space<vmem>>, vector<32x128xbf16>
    tpu.vector_store %arg3[%c0_14, %c0_15], %13 {strides = array<i32>} : memref<32x128xbf16, #tpu.memory_space<vmem>>, vector<32x128xbf16>,
    return
  }
  func.func @transform_0(%arg0: i32) -> (i32, i32) {
    %c0_i32 = arith.constant 0 : i32
    %c0_i32_0 = arith.constant 0 : i32
    return %arg0, %c0_i32 : i32, i32
  }
  func.func @transform_1(%arg0: i32) -> (i32, i32) {
    %c0_i32 = arith.constant 0 : i32
    %c0_i32_0 = arith.constant 0 : i32
    %c0_i32_1 = arith.constant 0 : i32
    return %c0_i32, %c0_i32_0 : i32, i32
  }
  func.func @transform_2(%arg0: i32) -> (i32, i32) {
    %c0_i32 = arith.constant 0 : i32
    %c0_i32_0 = arith.constant 0 : i32
    return %arg0, %c0_i32 : i32, i32
  }
  func.func @transform_3(%arg0: i32) -> (i32, i32) {
    %c0_i32 = arith.constant 0 : i32
    %c0_i32_0 = arith.constant 0 : i32
    return %arg0, %c0_i32 : i32, i32
  }
  func.func @transform_4(%arg0: i32) -> (i32, i32) {
    %c0_i32 = arith.constant 0 : i32
    %c0_i32_0 = arith.constant 0 : i32
    return %arg0, %c0_i32 : i32, i32
  }
}

module attributes {stable_mosaic.version = 11 : i64} {
  func.func @_bn_act_kernel(%arg0: i32, %arg1: memref<32x128xbf16, #tpu.memory_space<vmem>>, %arg2: memref<8x128xf32, #tpu.memory_space<vmem>>, %arg3: memref<8x128xf32, #tpu.memory_space<vmem>>, %arg4: memref<1x128xf32, #tpu.memory_space<vmem>>, %arg5: memref<1x128xf32, #tpu.memory_space<vmem>>, %arg6: memref<32x128xbf16, #tpu.memory_space<vmem>>) attributes {dimension_semantics = [#tpu.dimension_semantics<parallel>], iteration_bounds = array<i64: 1>, scalar_prefetch = 0 : i64, scratch_operands = 0 : i64, tpu.core_type = #tpu.core_type<tc>, window_params = [{transform_indices = @transform_0, window_bounds = array<i64: 32, 128>}, {pipeline_mode = #tpu.pipeline_mode<synchronous>, transform_indices = @transform_1, window_bounds = array<i64: 8, 128>}, {pipeline_mode = #tpu.pipeline_mode<synchronous>, transform_indices = @transform_2, window_bounds = array<i64: 8, 128>}, {pipeline_mode = #tpu.pipeline_mode<synchronous>, transform_indices = @transform_3, window_bounds = array<i64: 1, 128>}, {pipeline_mode = #tpu.pipeline_mode<synchronous>, transform_indices = @transform_4, window_bounds = array<i64: 1, 128>}, {transform_indices = @transform_5, window_bounds = array<i64: 32, 128>}]} {
    %c0 = arith.constant 0 : index
    %c0_0 = arith.constant 0 : index
    %0 = vector.load %arg2[%c0, %c0_0] : memref<8x128xf32, #tpu.memory_space<vmem>>, vector<8x128xf32>
    %cst = arith.constant dense<0.000000e+00> : vector<128xf32>
    %1 = vector.multi_reduction <add>, %0, %cst [0] : vector<8x128xf32> to vector<128xf32>
    %2 = vector.shape_cast %1 : vector<128xf32> to vector<1x128xf32>
    %cst_1 = arith.constant 3.125000e-02 : f32
    %3 = vector.broadcast %cst_1 : f32 to vector<1x128xf32>
    %4 = arith.mulf %2, %3 : vector<1x128xf32>
    %c0_2 = arith.constant 0 : index
    %c0_3 = arith.constant 0 : index
    %5 = vector.load %arg3[%c0_2, %c0_3] : memref<8x128xf32, #tpu.memory_space<vmem>>, vector<8x128xf32>
    %cst_4 = arith.constant dense<0.000000e+00> : vector<128xf32>
    %6 = vector.multi_reduction <add>, %5, %cst_4 [0] : vector<8x128xf32> to vector<128xf32>
    %7 = vector.shape_cast %6 : vector<128xf32> to vector<1x128xf32>
    %cst_5 = arith.constant 3.125000e-02 : f32
    %8 = vector.broadcast %cst_5 : f32 to vector<1x128xf32>
    %9 = arith.mulf %7, %8 : vector<1x128xf32>
    %10 = arith.mulf %4, %4 : vector<1x128xf32>
    %11 = arith.subf %9, %10 : vector<1x128xf32>
    %cst_6 = arith.constant 0.000000e+00 : f32
    %12 = vector.broadcast %cst_6 : f32 to vector<1x128xf32>
    %13 = arith.maximumf %11, %12 : vector<1x128xf32>
    %c0_7 = arith.constant 0 : index
    %c0_8 = arith.constant 0 : index
    %14 = vector.load %arg4[%c0_7, %c0_8] : memref<1x128xf32, #tpu.memory_space<vmem>>, vector<1x128xf32>
    %cst_9 = arith.constant 9.99999974E-6 : f32
    %15 = vector.broadcast %cst_9 : f32 to vector<1x128xf32>
    %16 = arith.addf %13, %15 : vector<1x128xf32>
    %17 = math.rsqrt %16 : vector<1x128xf32>
    %18 = arith.mulf %14, %17 : vector<1x128xf32>
    %c0_10 = arith.constant 0 : index
    %c0_11 = arith.constant 0 : index
    %19 = vector.load %arg5[%c0_10, %c0_11] : memref<1x128xf32, #tpu.memory_space<vmem>>, vector<1x128xf32>
    %20 = arith.mulf %4, %18 : vector<1x128xf32>
    %21 = arith.subf %19, %20 : vector<1x128xf32>
    %c0_12 = arith.constant 0 : index
    %c0_13 = arith.constant 0 : index
    %22 = vector.load %arg1[%c0_12, %c0_13] : memref<32x128xbf16, #tpu.memory_space<vmem>>, vector<32x128xbf16>
    %23 = arith.extf %22 : vector<32x128xbf16> to vector<32x128xf32>
    %24 = vector.broadcast %18 : vector<1x128xf32> to vector<32x128xf32>
    %25 = arith.mulf %23, %24 : vector<32x128xf32>
    %26 = vector.broadcast %21 : vector<1x128xf32> to vector<32x128xf32>
    %27 = arith.addf %25, %26 : vector<32x128xf32>
    %cst_14 = arith.constant 0.000000e+00 : f32
    %28 = vector.broadcast %cst_14 : f32 to vector<32x128xf32>
    %29 = arith.cmpf oge, %27, %28 : vector<32x128xf32>
    %cst_15 = arith.constant 2.000000e-01 : f32
    %30 = vector.broadcast %cst_15 : f32 to vector<32x128xf32>
    %31 = arith.mulf %30, %27 : vector<32x128xf32>
    %32 = arith.select %29, %27, %31 : vector<32x128xi1>, vector<32x128xf32>
    %33 = arith.truncf %32 : vector<32x128xf32> to vector<32x128xbf16>
    %c0_16 = arith.constant 0 : index
    %c0_17 = arith.constant 0 : index
    %34 = vector.load %arg6[%c0_16, %c0_17] : memref<32x128xbf16, #tpu.memory_space<vmem>>, vector<32x128xbf16>
    tpu.vector_store %arg6[%c0_16, %c0_17], %33 {strides = array<i32>} : memref<32x128xbf16, #tpu.memory_space<vmem>>, vector<32x128xbf16>,
    return
  }
  func.func @transform_0(%arg0: i32) -> (i32, i32) {
    %c0_i32 = arith.constant 0 : i32
    %c0_i32_0 = arith.constant 0 : i32
    return %arg0, %c0_i32 : i32, i32
  }
  func.func @transform_1(%arg0: i32) -> (i32, i32) {
    %c0_i32 = arith.constant 0 : i32
    %c0_i32_0 = arith.constant 0 : i32
    %c0_i32_1 = arith.constant 0 : i32
    return %c0_i32, %c0_i32_0 : i32, i32
  }
  func.func @transform_2(%arg0: i32) -> (i32, i32) {
    %c0_i32 = arith.constant 0 : i32
    %c0_i32_0 = arith.constant 0 : i32
    %c0_i32_1 = arith.constant 0 : i32
    return %c0_i32, %c0_i32_0 : i32, i32
  }
  func.func @transform_3(%arg0: i32) -> (i32, i32) {
    %c0_i32 = arith.constant 0 : i32
    %c0_i32_0 = arith.constant 0 : i32
    %c0_i32_1 = arith.constant 0 : i32
    return %c0_i32, %c0_i32_0 : i32, i32
  }
  func.func @transform_4(%arg0: i32) -> (i32, i32) {
    %c0_i32 = arith.constant 0 : i32
    %c0_i32_0 = arith.constant 0 : i32
    %c0_i32_1 = arith.constant 0 : i32
    return %c0_i32, %c0_i32_0 : i32, i32
  }
  func.func @transform_5(%arg0: i32) -> (i32, i32) {
    %c0_i32 = arith.constant 0 : i32
    %c0_i32_0 = arith.constant 0 : i32
    return %arg0, %c0_i32 : i32, i32
  }
}

module attributes {stable_mosaic.version = 11 : i64} {
  func.func @_conv_stats_kernel(%arg0: i32, %arg1: memref<30x512xbf16, #tpu.memory_space<vmem>>, %arg2: memref<512x128xbf16, #tpu.memory_space<vmem>>, %arg3: memref<30x128xbf16, #tpu.memory_space<vmem>>, %arg4: memref<8x128xf32, #tpu.memory_space<vmem>>, %arg5: memref<8x128xf32, #tpu.memory_space<vmem>>) attributes {dimension_semantics = [#tpu.dimension_semantics<parallel>], iteration_bounds = array<i64: 1>, scalar_prefetch = 0 : i64, scratch_operands = 0 : i64, tpu.core_type = #tpu.core_type<tc>, window_params = [{transform_indices = @transform_0, window_bounds = array<i64: 30, 512>}, {pipeline_mode = #tpu.pipeline_mode<synchronous>, transform_indices = @transform_1, window_bounds = array<i64: 512, 128>}, {transform_indices = @transform_2, window_bounds = array<i64: 30, 128>}, {transform_indices = @transform_3, window_bounds = array<i64: 8, 128>}, {transform_indices = @transform_4, window_bounds = array<i64: 8, 128>}]} {
    %c0 = arith.constant 0 : index
    %c0_0 = arith.constant 0 : index
    %0 = vector.load %arg1[%c0, %c0_0] : memref<30x512xbf16, #tpu.memory_space<vmem>>, vector<30x512xbf16>
    %c0_1 = arith.constant 0 : index
    %c0_2 = arith.constant 0 : index
    %1 = vector.load %arg2[%c0_1, %c0_2] : memref<512x128xbf16, #tpu.memory_space<vmem>>, vector<512x128xbf16>
    %cst = arith.constant dense<0.000000e+00> : vector<30x128xf32>
    %2 = tpu.matmul %0, %1, %cst {dimension_numbers = #tpu.dot_dimension_numbers<[1], [0], [0], [1], [0, 0, 1, 1], [], []>} : vector<30x512xbf16>, vector<512x128xbf16>, vector<30x128xf32> -> vector<30x128xf32>
    %cst_3 = arith.constant 0.000000e+00 : f32
    %3 = vector.broadcast %cst_3 : f32 to vector<8x128xf32>
    %c0_4 = arith.constant 0 : index
    %c0_5 = arith.constant 0 : index
    %4 = vector.load %arg4[%c0_4, %c0_5] : memref<8x128xf32, #tpu.memory_space<vmem>>, vector<8x128xf32>
    tpu.vector_store %arg4[%c0_4, %c0_5], %3 {strides = array<i32>} : memref<8x128xf32, #tpu.memory_space<vmem>>, vector<8x128xf32>,
    %c0_6 = arith.constant 0 : index
    %c0_7 = arith.constant 0 : index
    %5 = vector.load %arg5[%c0_6, %c0_7] : memref<8x128xf32, #tpu.memory_space<vmem>>, vector<8x128xf32>
    tpu.vector_store %arg5[%c0_6, %c0_7], %3 {strides = array<i32>} : memref<8x128xf32, #tpu.memory_space<vmem>>, vector<8x128xf32>,
    %cst_8 = arith.constant dense<0.000000e+00> : vector<128xf32>
    %6 = vector.multi_reduction <add>, %2, %cst_8 [0] : vector<30x128xf32> to vector<128xf32>
    %7 = vector.shape_cast %6 : vector<128xf32> to vector<1x128xf32>
    %c0_9 = arith.constant 0 : index
    %c0_10 = arith.constant 0 : index
    %8 = vector.load %arg4[%c0_9, %c0_10] : memref<8x128xf32, #tpu.memory_space<vmem>>, vector<1x128xf32>
    tpu.vector_store %arg4[%c0_9, %c0_10], %7 {strides = array<i32>} : memref<8x128xf32, #tpu.memory_space<vmem>>, vector<1x128xf32>,
    %9 = arith.mulf %2, %2 : vector<30x128xf32>
    %cst_11 = arith.constant dense<0.000000e+00> : vector<128xf32>
    %10 = vector.multi_reduction <add>, %9, %cst_11 [0] : vector<30x128xf32> to vector<128xf32>
    %11 = vector.shape_cast %10 : vector<128xf32> to vector<1x128xf32>
    %c0_12 = arith.constant 0 : index
    %c0_13 = arith.constant 0 : index
    %12 = vector.load %arg5[%c0_12, %c0_13] : memref<8x128xf32, #tpu.memory_space<vmem>>, vector<1x128xf32>
    tpu.vector_store %arg5[%c0_12, %c0_13], %11 {strides = array<i32>} : memref<8x128xf32, #tpu.memory_space<vmem>>, vector<1x128xf32>,
    %13 = arith.truncf %2 : vector<30x128xf32> to vector<30x128xbf16>
    %c0_14 = arith.constant 0 : index
    %c0_15 = arith.constant 0 : index
    %14 = vector.load %arg3[%c0_14, %c0_15] : memref<30x128xbf16, #tpu.memory_space<vmem>>, vector<30x128xbf16>
    tpu.vector_store %arg3[%c0_14, %c0_15], %13 {strides = array<i32>} : memref<30x128xbf16, #tpu.memory_space<vmem>>, vector<30x128xbf16>,
    return
  }
  func.func @transform_0(%arg0: i32) -> (i32, i32) {
    %c0_i32 = arith.constant 0 : i32
    %c0_i32_0 = arith.constant 0 : i32
    return %arg0, %c0_i32 : i32, i32
  }
  func.func @transform_1(%arg0: i32) -> (i32, i32) {
    %c0_i32 = arith.constant 0 : i32
    %c0_i32_0 = arith.constant 0 : i32
    %c0_i32_1 = arith.constant 0 : i32
    return %c0_i32, %c0_i32_0 : i32, i32
  }
  func.func @transform_2(%arg0: i32) -> (i32, i32) {
    %c0_i32 = arith.constant 0 : i32
    %c0_i32_0 = arith.constant 0 : i32
    return %arg0, %c0_i32 : i32, i32
  }
  func.func @transform_3(%arg0: i32) -> (i32, i32) {
    %c0_i32 = arith.constant 0 : i32
    %c0_i32_0 = arith.constant 0 : i32
    return %arg0, %c0_i32 : i32, i32
  }
  func.func @transform_4(%arg0: i32) -> (i32, i32) {
    %c0_i32 = arith.constant 0 : i32
    %c0_i32_0 = arith.constant 0 : i32
    return %arg0, %c0_i32 : i32, i32
  }
}

module attributes {stable_mosaic.version = 11 : i64} {
  func.func @_bn_act_kernel(%arg0: i32, %arg1: memref<30x128xbf16, #tpu.memory_space<vmem>>, %arg2: memref<8x128xf32, #tpu.memory_space<vmem>>, %arg3: memref<8x128xf32, #tpu.memory_space<vmem>>, %arg4: memref<1x128xf32, #tpu.memory_space<vmem>>, %arg5: memref<1x128xf32, #tpu.memory_space<vmem>>, %arg6: memref<30x128xbf16, #tpu.memory_space<vmem>>) attributes {dimension_semantics = [#tpu.dimension_semantics<parallel>], iteration_bounds = array<i64: 1>, scalar_prefetch = 0 : i64, scratch_operands = 0 : i64, tpu.core_type = #tpu.core_type<tc>, window_params = [{transform_indices = @transform_0, window_bounds = array<i64: 30, 128>}, {pipeline_mode = #tpu.pipeline_mode<synchronous>, transform_indices = @transform_1, window_bounds = array<i64: 8, 128>}, {pipeline_mode = #tpu.pipeline_mode<synchronous>, transform_indices = @transform_2, window_bounds = array<i64: 8, 128>}, {pipeline_mode = #tpu.pipeline_mode<synchronous>, transform_indices = @transform_3, window_bounds = array<i64: 1, 128>}, {pipeline_mode = #tpu.pipeline_mode<synchronous>, transform_indices = @transform_4, window_bounds = array<i64: 1, 128>}, {transform_indices = @transform_5, window_bounds = array<i64: 30, 128>}]} {
    %c0 = arith.constant 0 : index
    %c0_0 = arith.constant 0 : index
    %0 = vector.load %arg2[%c0, %c0_0] : memref<8x128xf32, #tpu.memory_space<vmem>>, vector<8x128xf32>
    %cst = arith.constant dense<0.000000e+00> : vector<128xf32>
    %1 = vector.multi_reduction <add>, %0, %cst [0] : vector<8x128xf32> to vector<128xf32>
    %2 = vector.shape_cast %1 : vector<128xf32> to vector<1x128xf32>
    %cst_1 = arith.constant 0.0333333351 : f32
    %3 = vector.broadcast %cst_1 : f32 to vector<1x128xf32>
    %4 = arith.mulf %2, %3 : vector<1x128xf32>
    %c0_2 = arith.constant 0 : index
    %c0_3 = arith.constant 0 : index
    %5 = vector.load %arg3[%c0_2, %c0_3] : memref<8x128xf32, #tpu.memory_space<vmem>>, vector<8x128xf32>
    %cst_4 = arith.constant dense<0.000000e+00> : vector<128xf32>
    %6 = vector.multi_reduction <add>, %5, %cst_4 [0] : vector<8x128xf32> to vector<128xf32>
    %7 = vector.shape_cast %6 : vector<128xf32> to vector<1x128xf32>
    %cst_5 = arith.constant 0.0333333351 : f32
    %8 = vector.broadcast %cst_5 : f32 to vector<1x128xf32>
    %9 = arith.mulf %7, %8 : vector<1x128xf32>
    %10 = arith.mulf %4, %4 : vector<1x128xf32>
    %11 = arith.subf %9, %10 : vector<1x128xf32>
    %cst_6 = arith.constant 0.000000e+00 : f32
    %12 = vector.broadcast %cst_6 : f32 to vector<1x128xf32>
    %13 = arith.maximumf %11, %12 : vector<1x128xf32>
    %c0_7 = arith.constant 0 : index
    %c0_8 = arith.constant 0 : index
    %14 = vector.load %arg4[%c0_7, %c0_8] : memref<1x128xf32, #tpu.memory_space<vmem>>, vector<1x128xf32>
    %cst_9 = arith.constant 9.99999974E-6 : f32
    %15 = vector.broadcast %cst_9 : f32 to vector<1x128xf32>
    %16 = arith.addf %13, %15 : vector<1x128xf32>
    %17 = math.rsqrt %16 : vector<1x128xf32>
    %18 = arith.mulf %14, %17 : vector<1x128xf32>
    %c0_10 = arith.constant 0 : index
    %c0_11 = arith.constant 0 : index
    %19 = vector.load %arg5[%c0_10, %c0_11] : memref<1x128xf32, #tpu.memory_space<vmem>>, vector<1x128xf32>
    %20 = arith.mulf %4, %18 : vector<1x128xf32>
    %21 = arith.subf %19, %20 : vector<1x128xf32>
    %c0_12 = arith.constant 0 : index
    %c0_13 = arith.constant 0 : index
    %22 = vector.load %arg1[%c0_12, %c0_13] : memref<30x128xbf16, #tpu.memory_space<vmem>>, vector<30x128xbf16>
    %23 = arith.extf %22 : vector<30x128xbf16> to vector<30x128xf32>
    %24 = vector.broadcast %18 : vector<1x128xf32> to vector<30x128xf32>
    %25 = arith.mulf %23, %24 : vector<30x128xf32>
    %26 = vector.broadcast %21 : vector<1x128xf32> to vector<30x128xf32>
    %27 = arith.addf %25, %26 : vector<30x128xf32>
    %cst_14 = arith.constant 0.000000e+00 : f32
    %28 = vector.broadcast %cst_14 : f32 to vector<30x128xf32>
    %29 = arith.cmpf oge, %27, %28 : vector<30x128xf32>
    %cst_15 = arith.constant 2.000000e-01 : f32
    %30 = vector.broadcast %cst_15 : f32 to vector<30x128xf32>
    %31 = arith.mulf %30, %27 : vector<30x128xf32>
    %32 = arith.select %29, %27, %31 : vector<30x128xi1>, vector<30x128xf32>
    %33 = arith.truncf %32 : vector<30x128xf32> to vector<30x128xbf16>
    %c0_16 = arith.constant 0 : index
    %c0_17 = arith.constant 0 : index
    %34 = vector.load %arg6[%c0_16, %c0_17] : memref<30x128xbf16, #tpu.memory_space<vmem>>, vector<30x128xbf16>
    tpu.vector_store %arg6[%c0_16, %c0_17], %33 {strides = array<i32>} : memref<30x128xbf16, #tpu.memory_space<vmem>>, vector<30x128xbf16>,
    return
  }
  func.func @transform_0(%arg0: i32) -> (i32, i32) {
    %c0_i32 = arith.constant 0 : i32
    %c0_i32_0 = arith.constant 0 : i32
    return %arg0, %c0_i32 : i32, i32
  }
  func.func @transform_1(%arg0: i32) -> (i32, i32) {
    %c0_i32 = arith.constant 0 : i32
    %c0_i32_0 = arith.constant 0 : i32
    %c0_i32_1 = arith.constant 0 : i32
    return %c0_i32, %c0_i32_0 : i32, i32
  }
  func.func @transform_2(%arg0: i32) -> (i32, i32) {
    %c0_i32 = arith.constant 0 : i32
    %c0_i32_0 = arith.constant 0 : i32
    %c0_i32_1 = arith.constant 0 : i32
    return %c0_i32, %c0_i32_0 : i32, i32
  }
  func.func @transform_3(%arg0: i32) -> (i32, i32) {
    %c0_i32 = arith.constant 0 : i32
    %c0_i32_0 = arith.constant 0 : i32
    %c0_i32_1 = arith.constant 0 : i32
    return %c0_i32, %c0_i32_0 : i32, i32
  }
  func.func @transform_4(%arg0: i32) -> (i32, i32) {
    %c0_i32 = arith.constant 0 : i32
    %c0_i32_0 = arith.constant 0 : i32
    %c0_i32_1 = arith.constant 0 : i32
    return %c0_i32, %c0_i32_0 : i32, i32
  }
  func.func @transform_5(%arg0: i32) -> (i32, i32) {
    %c0_i32 = arith.constant 0 : i32
    %c0_i32_0 = arith.constant 0 : i32
    return %arg0, %c0_i32 : i32, i32
  }
}

module attributes {stable_mosaic.version = 11 : i64} {
  func.func @_conv_bias_act_kernel(%arg0: i32, %arg1: memref<32x1024xbf16, #tpu.memory_space<vmem>>, %arg2: memref<1024x128xbf16, #tpu.memory_space<vmem>>, %arg3: memref<1x128xf32, #tpu.memory_space<vmem>>, %arg4: memref<32x128xf32, #tpu.memory_space<vmem>>) attributes {dimension_semantics = [#tpu.dimension_semantics<parallel>], iteration_bounds = array<i64: 1>, scalar_prefetch = 0 : i64, scratch_operands = 0 : i64, tpu.core_type = #tpu.core_type<tc>, window_params = [{transform_indices = @transform_0, window_bounds = array<i64: 32, 1024>}, {pipeline_mode = #tpu.pipeline_mode<synchronous>, transform_indices = @transform_1, window_bounds = array<i64: 1024, 128>}, {pipeline_mode = #tpu.pipeline_mode<synchronous>, transform_indices = @transform_2, window_bounds = array<i64: 1, 128>}, {transform_indices = @transform_3, window_bounds = array<i64: 32, 128>}]} {
    %c0 = arith.constant 0 : index
    %c0_0 = arith.constant 0 : index
    %0 = vector.load %arg1[%c0, %c0_0] : memref<32x1024xbf16, #tpu.memory_space<vmem>>, vector<32x1024xbf16>
    %c0_1 = arith.constant 0 : index
    %c0_2 = arith.constant 0 : index
    %1 = vector.load %arg2[%c0_1, %c0_2] : memref<1024x128xbf16, #tpu.memory_space<vmem>>, vector<1024x128xbf16>
    %cst = arith.constant dense<0.000000e+00> : vector<32x128xf32>
    %2 = tpu.matmul %0, %1, %cst {dimension_numbers = #tpu.dot_dimension_numbers<[1], [0], [0], [1], [0, 0, 1, 1], [], []>} : vector<32x1024xbf16>, vector<1024x128xbf16>, vector<32x128xf32> -> vector<32x128xf32>
    %c0_3 = arith.constant 0 : index
    %c0_4 = arith.constant 0 : index
    %3 = vector.load %arg3[%c0_3, %c0_4] : memref<1x128xf32, #tpu.memory_space<vmem>>, vector<1x128xf32>
    %4 = vector.broadcast %3 : vector<1x128xf32> to vector<32x128xf32>
    %5 = arith.addf %2, %4 : vector<32x128xf32>
    %c0_5 = arith.constant 0 : index
    %c0_6 = arith.constant 0 : index
    %6 = vector.load %arg4[%c0_5, %c0_6] : memref<32x128xf32, #tpu.memory_space<vmem>>, vector<32x128xf32>
    tpu.vector_store %arg4[%c0_5, %c0_6], %5 {strides = array<i32>} : memref<32x128xf32, #tpu.memory_space<vmem>>, vector<32x128xf32>,
    return
  }
  func.func @transform_0(%arg0: i32) -> (i32, i32) {
    %c0_i32 = arith.constant 0 : i32
    %c0_i32_0 = arith.constant 0 : i32
    return %arg0, %c0_i32 : i32, i32
  }
  func.func @transform_1(%arg0: i32) -> (i32, i32) {
    %c0_i32 = arith.constant 0 : i32
    %c0_i32_0 = arith.constant 0 : i32
    %c0_i32_1 = arith.constant 0 : i32
    return %c0_i32, %c0_i32_0 : i32, i32
  }
  func.func @transform_2(%arg0: i32) -> (i32, i32) {
    %c0_i32 = arith.constant 0 : i32
    %c0_i32_0 = arith.constant 0 : i32
    %c0_i32_1 = arith.constant 0 : i32
    return %c0_i32, %c0_i32_0 : i32, i32
  }
  func.func @transform_3(%arg0: i32) -> (i32, i32) {
    %c0_i32 = arith.constant 0 : i32
    %c0_i32_0 = arith.constant 0 : i32
    return %arg0, %c0_i32 : i32, i32
  }
}

</mosaic_0001>

<llo_original>
// kernel: _lambda_.8
$region0: #{_lambda_.8}
  #allocation0 [shape = 'u32[]', space=smem, size = 0x4, offset = 0x4, fixed_abs, tag = 'smem constant byte address 0x4 - core index']
  #allocation1 [shape = 'u32[144,128]{1,0:T(1,128)}', space=vmem, size = 0x12000, scoped, tag = 'internal scratch']
  %s0 = inlined_call_operand.vmem [shape: bf16[512,128], index: 0, kind: input, shape index: {}]
  %s1 = inlined_call_operand.vmem [shape: bf16[128,128], index: 1, kind: input, shape index: {}]
  %s2 = inlined_call_operand.vmem [shape: f32[1,128], index: 2, kind: input, shape index: {}]
  %s3 = inlined_call_operand.vmem [shape: bf16[512,128], index: 3, kind: output, shape index: {}]
  %s4 = sld [smem:[#allocation0]]
  $region22: #{_lambda_.8} parent=0
    _
  %s6 = ssub.s32 1, %s4
  %s7 = scalar_select 0, %s6, %s4
  // Predicated region
  $region2: #{_lambda_.8} parent=0 // pred_check
    _
  $region3: #{_lambda_.8} parent=0 // pred_check_branch
    %9 = sbr.rel (0) target = $region5
  $region4: #{_lambda_.8} parent=0 // pred_region
    _
  $region5: #{_lambda_.8} parent=0 // pred_fallthru
    _
  // Predicated region
  $region6: #{_lambda_.8} parent=0 // pred_check
    _
  $region7: #{_lambda_.8} parent=0 // pred_check_branch
    %11 = sbr.rel (0) target = $region9
  $region8: #{_lambda_.8} parent=0 // pred_region
    _
  $region9: #{_lambda_.8} parent=0 // pred_fallthru
    _
  // Predicated region
  $region10: #{_lambda_.8} parent=0 // pred_check
    _
  $region11: #{_lambda_.8} parent=0 // pred_check_branch
    %13 = sbr.rel (0) target = $region13
  $region12: #{_lambda_.8} parent=0 // pred_region
    _
  $region13: #{_lambda_.8} parent=0 // pred_fallthru
    _
  %v15 = vld [vmem:[%s0] sm:$0xf]
  %v16 = vld [vmem:[%s0 + $0x4] sm:$0xf]
  %v17 = vld [vmem:[%s0 + $0x8] sm:$0xf]
  %v18 = vld [vmem:[%s0 + $0xc] sm:$0xf]
  %v19 = vld [vmem:[%s0 + $0x10] sm:$0xf]
  %v20 = vld [vmem:[%s0 + $0x14] sm:$0xf]
  %v21 = vld [vmem:[%s0 + $0x18] sm:$0xf]
  %v22 = vld [vmem:[%s0 + $0x1c] sm:$0xf]
  %v23 = vld [vmem:[%s0 + $0x20] sm:$0xf]
  %v24 = vld [vmem:[%s0 + $0x24] sm:$0xf]
  %v25 = vld [vmem:[%s0 + $0x28] sm:$0xf]
  %v26 = vld [vmem:[%s0 + $0x2c] sm:$0xf]
  %v27 = vld [vmem:[%s0 + $0x30] sm:$0xf]
  %v28 = vld [vmem:[%s0 + $0x34] sm:$0xf]
  %v29 = vld [vmem:[%s0 + $0x38] sm:$0xf]
  %v30 = vld [vmem:[%s0 + $0x3c] sm:$0xf]
  %v31 = vld [vmem:[%s0 + $0x40] sm:$0xf]
  %v32 = vld [vmem:[%s0 + $0x44] sm:$0xf]
  %v33 = vld [vmem:[%s0 + $0x48] sm:$0xf]
  %v34 = vld [vmem:[%s0 + $0x4c] sm:$0xf]
  %v35 = vld [vmem:[%s0 + $0x50] sm:$0xf]
  %v36 = vld [vmem:[%s0 + $0x54] sm:$0xf]
  %v37 = vld [vmem:[%s0 + $0x58] sm:$0xf]
  %v38 = vld [vmem:[%s0 + $0x5c] sm:$0xf]
  %v39 = vld [vmem:[%s0 + $0x60] sm:$0xf]
  %v40 = vld [vmem:[%s0 + $0x64] sm:$0xf]
  %v41 = vld [vmem:[%s0 + $0x68] sm:$0xf]
  %v42 = vld [vmem:[%s0 + $0x6c] sm:$0xf]
  %v43 = vld [vmem:[%s0 + $0x70] sm:$0xf]
  %v44 = vld [vmem:[%s0 + $0x74] sm:$0xf]
  %v45 = vld [vmem:[%s0 + $0x78] sm:$0xf]
  %v46 = vld [vmem:[%s0 + $0x7c] sm:$0xf]
  %v47 = vld [vmem:[%s0 + $0x80] sm:$0xf]
  %v48 = vld [vmem:[%s0 + $0x84] sm:$0xf]
  %v49 = vld [vmem:[%s0 + $0x88] sm:$0xf]
  %v50 = vld [vmem:[%s0 + $0x8c] sm:$0xf]
  %v51 = vld [vmem:[%s0 + $0x90] sm:$0xf]
  %v52 = vld [vmem:[%s0 + $0x94] sm:$0xf]
  %v53 = vld [vmem:[%s0 + $0x98] sm:$0xf]
  %v54 = vld [vmem:[%s0 + $0x9c] sm:$0xf]
  %v55 = vld [vmem:[%s0 + $0xa0] sm:$0xf]
  %v56 = vld [vmem:[%s0 + $0xa4] sm:$0xf]
  %v57 = vld [vmem:[%s0 + $0xa8] sm:$0xf]
  %v58 = vld [vmem:[%s0 + $0xac] sm:$0xf]
  %v59 = vld [vmem:[%s0 + $0xb0] sm:$0xf]
  %v60 = vld [vmem:[%s0 + $0xb4] sm:$0xf]
  %v61 = vld [vmem:[%s0 + $0xb8] sm:$0xf]
  %v62 = vld [vmem:[%s0 + $0xbc] sm:$0xf]
  %v63 = vld [vmem:[%s0 + $0xc0] sm:$0xf]
  %v64 = vld [vmem:[%s0 + $0xc4] sm:$0xf]
  %v65 = vld [vmem:[%s0 + $0xc8] sm:$0xf]
  %v66 = vld [vmem:[%s0 + $0xcc] sm:$0xf]
  %v67 = vld [vmem:[%s0 + $0xd0] sm:$0xf]
  %v68 = vld [vmem:[%s0 + $0xd4] sm:$0xf]
  %v69 = vld [vmem:[%s0 + $0xd8] sm:$0xf]
  %v70 = vld [vmem:[%s0 + $0xdc] sm:$0xf]
  %v71 = vld [vmem:[%s0 + $0xe0] sm:$0xf]
  %v72 = vld [vmem:[%s0 + $0xe4] sm:$0xf]
  %v73 = vld [vmem:[%s0 + $0xe8] sm:$0xf]
  %v74 = vld [vmem:[%s0 + $0xec] sm:$0xf]
  %v75 = vld [vmem:[%s0 + $0xf0] sm:$0xf]
  %v76 = vld [vmem:[%s0 + $0xf4] sm:$0xf]
  %v77 = vld [vmem:[%s0 + $0xf8] sm:$0xf]
  %v78 = vld [vmem:[%s0 + $0xfc] sm:$0xf]
  %v79 = vld [vmem:[%s1] sm:$0xf]
  %v80 = vld [vmem:[%s1 + $0x4] sm:$0xf]
  %v81 = vld [vmem:[%s1 + $0x8] sm:$0xf]
  %v82 = vld [vmem:[%s1 + $0xc] sm:$0xf]
  %v83 = vld [vmem:[%s1 + $0x10] sm:$0xf]
  %v84 = vld [vmem:[%s1 + $0x14] sm:$0xf]
  %v85 = vld [vmem:[%s1 + $0x18] sm:$0xf]
  %v86 = vld [vmem:[%s1 + $0x1c] sm:$0xf]
  %v87 = vld [vmem:[%s1 + $0x20] sm:$0xf]
  %v88 = vld [vmem:[%s1 + $0x24] sm:$0xf]
  %v89 = vld [vmem:[%s1 + $0x28] sm:$0xf]
  %v90 = vld [vmem:[%s1 + $0x2c] sm:$0xf]
  %v91 = vld [vmem:[%s1 + $0x30] sm:$0xf]
  %v92 = vld [vmem:[%s1 + $0x34] sm:$0xf]
  %v93 = vld [vmem:[%s1 + $0x38] sm:$0xf]
  %v94 = vld [vmem:[%s1 + $0x3c] sm:$0xf]
  %v95 = vld [vmem:[%s2] sm:$0x1]
  %v97 = vlaneseq
  %v98 = vshrl.u32 %v97, 7
  %v99 = vsub.s32 0, %v98
  %v100 = vrot.slane %v95, %v99
  %v166 = vunpack.c.l.b16 %v15
  %v167 = vunpack.c.l.b16 %v16
  %v168 = vunpack.c.l.b16 %v17
  %v169 = vunpack.c.l.b16 %v18
  %v170 = vunpack.c.l.b16 %v19
  %v171 = vunpack.c.l.b16 %v20
  %v172 = vunpack.c.l.b16 %v21
  %v173 = vunpack.c.l.b16 %v22
  %v174 = vunpack.c.l.b16 %v23
  %v175 = vunpack.c.l.b16 %v24
  %v176 = vunpack.c.l.b16 %v25
  %v177 = vunpack.c.l.b16 %v26
  %v178 = vunpack.c.l.b16 %v27
  %v179 = vunpack.c.l.b16 %v28
  %v180 = vunpack.c.l.b16 %v29
  %v181 = vunpack.c.l.b16 %v30
  %v182 = vunpack.c.l.b16 %v31
  %v183 = vunpack.c.l.b16 %v32
  %v184 = vunpack.c.l.b16 %v33
  %v185 = vunpack.c.l.b16 %v34
  %v186 = vunpack.c.l.b16 %v35
  %v187 = vunpack.c.l.b16 %v36
  %v188 = vunpack.c.l.b16 %v37
  %v189 = vunpack.c.l.b16 %v38
  %v190 = vunpack.c.l.b16 %v39
  %v191 = vunpack.c.l.b16 %v40
  %v192 = vunpack.c.l.b16 %v41
  %v193 = vunpack.c.l.b16 %v42
  %v194 = vunpack.c.l.b16 %v43
  %v195 = vunpack.c.l.b16 %v44
  %v196 = vunpack.c.l.b16 %v45
  %v197 = vunpack.c.l.b16 %v46
  %v198 = vunpack.c.l.b16 %v47
  %v199 = vunpack.c.l.b16 %v48
  %v200 = vunpack.c.l.b16 %v49
  %v201 = vunpack.c.l.b16 %v50
  %v202 = vunpack.c.l.b16 %v51
  %v203 = vunpack.c.l.b16 %v52
  %v204 = vunpack.c.l.b16 %v53
  %v205 = vunpack.c.l.b16 %v54
  %v206 = vunpack.c.l.b16 %v55
  %v207 = vunpack.c.l.b16 %v56
  %v208 = vunpack.c.l.b16 %v57
  %v209 = vunpack.c.l.b16 %v58
  %v210 = vunpack.c.l.b16 %v59
  %v211 = vunpack.c.l.b16 %v60
  %v212 = vunpack.c.l.b16 %v61
  %v213 = vunpack.c.l.b16 %v62
  %v214 = vunpack.c.l.b16 %v63
  %v215 = vunpack.c.l.b16 %v64
  %v216 = vunpack.c.l.b16 %v65
  %v217 = vunpack.c.l.b16 %v66
  %v218 = vunpack.c.l.b16 %v67
  %v219 = vunpack.c.l.b16 %v68
  %v220 = vunpack.c.l.b16 %v69
  %v221 = vunpack.c.l.b16 %v70
  %v222 = vunpack.c.l.b16 %v71
  %v223 = vunpack.c.l.b16 %v72
  %v224 = vunpack.c.l.b16 %v73
  %v225 = vunpack.c.l.b16 %v74
  %v226 = vunpack.c.l.b16 %v75
  %v227 = vunpack.c.l.b16 %v76
  %v228 = vunpack.c.l.b16 %v77
  %v229 = vunpack.c.l.b16 %v78
  %v230 = vpack.c.b16 %v167, %v166
  %v231 = vpack.c.b16 %v169, %v168
  %v232 = vpack.c.b16 %v171, %v170
  %v233 = vpack.c.b16 %v173, %v172
  %v234 = vpack.c.b16 %v175, %v174
  %v235 = vpack.c.b16 %v177, %v176
  %v236 = vpack.c.b16 %v179, %v178
  %v237 = vpack.c.b16 %v181, %v180
  %v238 = vpack.c.b16 %v183, %v182
  %v239 = vpack.c.b16 %v185, %v184
  %v240 = vpack.c.b16 %v187, %v186
  %v241 = vpack.c.b16 %v189, %v188
  %v242 = vpack.c.b16 %v191, %v190
  %v243 = vpack.c.b16 %v193, %v192
  %v244 = vpack.c.b16 %v195, %v194
  %v245 = vpack.c.b16 %v197, %v196
  %v246 = vpack.c.b16 %v199, %v198
  %v247 = vpack.c.b16 %v201, %v200
  %v248 = vpack.c.b16 %v203, %v202
  %v249 = vpack.c.b16 %v205, %v204
  %v250 = vpack.c.b16 %v207, %v206
  %v251 = vpack.c.b16 %v209, %v208
  %v252 = vpack.c.b16 %v211, %v210
  %v253 = vpack.c.b16 %v213, %v212
  %v254 = vpack.c.b16 %v215, %v214
  %v255 = vpack.c.b16 %v217, %v216
  %v256 = vpack.c.b16 %v219, %v218
  %v257 = vpack.c.b16 %v221, %v220
  %v258 = vpack.c.b16 %v223, %v222
  %v259 = vpack.c.b16 %v225, %v224
  %v260 = vpack.c.b16 %v227, %v226
  %v261 = vpack.c.b16 %v229, %v228
  %v310 = vunpack.c.l.b16 %v79
  %v311 = vunpack.c.l.b16 %v80
  %v312 = vunpack.c.l.b16 %v81
  %v313 = vunpack.c.l.b16 %v82
  %v314 = vunpack.c.l.b16 %v83
  %v315 = vunpack.c.l.b16 %v84
  %v316 = vunpack.c.l.b16 %v85
  %v317 = vunpack.c.l.b16 %v86
  %v318 = vunpack.c.l.b16 %v87
  %v319 = vunpack.c.l.b16 %v88
  %v320 = vunpack.c.l.b16 %v89
  %v321 = vunpack.c.l.b16 %v90
  %v322 = vunpack.c.l.b16 %v91
  %v323 = vunpack.c.l.b16 %v92
  %v324 = vunpack.c.l.b16 %v93
  %v325 = vunpack.c.l.b16 %v94
  %v326 = vpack.c.b16 %v311, %v310
  %v327 = vpack.c.b16 %v313, %v312
  %v328 = vpack.c.b16 %v315, %v314
  %v329 = vpack.c.b16 %v317, %v316
  %v330 = vpack.c.b16 %v319, %v318
  %v331 = vpack.c.b16 %v321, %v320
  %v332 = vpack.c.b16 %v323, %v322
  %v333 = vpack.c.b16 %v325, %v324
  %342 = vmatprep.subr.bf16.mxu0 0
  %343 = vmatpush1.bf16.msra.mxu0 %v333
  %344 = vmatprep.subr.bf16.mxu0 0
  %345 = vmatpush1.bf16.msra.mxu0 %v332
  %346 = vmatprep.subr.bf16.mxu0 0
  %347 = vmatpush1.bf16.msra.mxu0 %v331
  %348 = vmatprep.subr.bf16.mxu0 0
  %349 = vmatpush1.bf16.msra.mxu0 %v330
  %350 = vmatprep.subr.bf16.mxu0 0
  %351 = vmatpush1.bf16.msra.mxu0 %v329
  %352 = vmatprep.subr.bf16.mxu0 0
  %353 = vmatpush1.bf16.msra.mxu0 %v328
  %354 = vmatprep.subr.bf16.mxu0 0
  %355 = vmatpush1.bf16.msra.mxu0 %v327
  %356 = vmatprep.subr.bf16.mxu0 0
  %357 = vmatpush1.bf16.msra.mxu0 %v326
  %358 = vmatprep.subr.bf16.mxu0 0
  %359 = vmatpush2.bf16.msra.mxu0 0
  %360 = vmatprep.subr.bf16.mxu0 0
  %361 = vmatpush2.bf16.msra.mxu0 0
  %362 = vmatprep.subr.bf16.mxu0 0
  %363 = vmatpush2.bf16.msra.mxu0 0
  %364 = vmatprep.subr.bf16.mxu0 0
  %365 = vmatpush2.bf16.msra.mxu0 0
  %366 = vmatprep.subr.bf16.mxu0 0
  %367 = vmatpush2.bf16.msra.mxu0 0
  %368 = vmatprep.subr.bf16.mxu0 0
  %369 = vmatpush2.bf16.msra.mxu0 0
  %370 = vmatprep.subr.bf16.mxu0 0
  %371 = vmatpush2.bf16.msra.mxu0 0
  %372 = vmatprep.subr.bf16.mxu0 0
  %373 = vmatpush2.bf16.msra.mxu0 0
  %374 = vmatprep.mubr.bf16.mxu0 0
  %375 = vmatmul.mubr.bf16.gmra.mxu0 %v230
  %v376 = vpop.f32.mrf.mxu0
  %v377 = vadd.f32 %v100, %v376
  %v378 = vpop.f32.mrf.mxu0
  %v379 = vpop.f32.mrf.mxu0
  %v380 = vadd.f32 %v100, %v379
  %v381 = vpop.f32.mrf.mxu0
  %382 = vmatprep.mubr.bf16.mxu0 0
  %383 = vmatmul.mubr.bf16.gmra.mxu0 %v231
  %v384 = vpop.f32.mrf.mxu0
  %v385 = vadd.f32 %v100, %v384
  %v386 = vpop.f32.mrf.mxu0
  %v387 = vpop.f32.mrf.mxu0
  %v388 = vadd.f32 %v100, %v387
  %v389 = vpop.f32.mrf.mxu0
  %390 = vmatprep.mubr.bf16.mxu0 0
  %391 = vmatmul.mubr.bf16.gmra.mxu0 %v232
  %v392 = vpop.f32.mrf.mxu0
  %v393 = vadd.f32 %v100, %v392
  %v394 = vpop.f32.mrf.mxu0
  %v395 = vpop.f32.mrf.mxu0
  %v396 = vadd.f32 %v100, %v395
  %v397 = vpop.f32.mrf.mxu0
  %398 = vmatprep.mubr.bf16.mxu0 0
  %399 = vmatmul.mubr.bf16.gmra.mxu0 %v233
  %v400 = vpop.f32.mrf.mxu0
  %v401 = vadd.f32 %v100, %v400
  %v402 = vpop.f32.mrf.mxu0
  %v403 = vpop.f32.mrf.mxu0
  %v404 = vadd.f32 %v100, %v403
  %v405 = vpop.f32.mrf.mxu0
  %406 = vmatprep.mubr.bf16.mxu0 0
  %407 = vmatmul.mubr.bf16.gmra.mxu0 %v234
  %v408 = vpop.f32.mrf.mxu0
  %v409 = vadd.f32 %v100, %v408
  %v410 = vpop.f32.mrf.mxu0
  %v411 = vpop.f32.mrf.mxu0
  %v412 = vadd.f32 %v100, %v411
  %v413 = vpop.f32.mrf.mxu0
  %414 = vmatprep.mubr.bf16.mxu0 0
  %415 = vmatmul.mubr.bf16.gmra.mxu0 %v235
  %v416 = vpop.f32.mrf.mxu0
  %v417 = vadd.f32 %v100, %v416
  %v418 = vpop.f32.mrf.mxu0
  %v419 = vpop.f32.mrf.mxu0
  %v420 = vadd.f32 %v100, %v419
  %v421 = vpop.f32.mrf.mxu0
  %422 = vmatprep.mubr.bf16.mxu0 0
  %423 = vmatmul.mubr.bf16.gmra.mxu0 %v236
  %v424 = vpop.f32.mrf.mxu0
  %v425 = vadd.f32 %v100, %v424
  %v426 = vpop.f32.mrf.mxu0
  %v427 = vpop.f32.mrf.mxu0
  %v428 = vadd.f32 %v100, %v427
  %v429 = vpop.f32.mrf.mxu0
  %430 = vmatprep.mubr.bf16.mxu0 0
  %431 = vmatmul.mubr.bf16.gmra.mxu0 %v237
  %v432 = vpop.f32.mrf.mxu0
  %v433 = vadd.f32 %v100, %v432
  %v434 = vpop.f32.mrf.mxu0
  %v435 = vpop.f32.mrf.mxu0
  %v436 = vadd.f32 %v100, %v435
  %v437 = vpop.f32.mrf.mxu0
  %438 = vmatprep.mubr.bf16.mxu0 0
  %439 = vmatmul.mubr.bf16.gmra.mxu0 %v238
  %v440 = vpop.f32.mrf.mxu0
  %v441 = vadd.f32 %v100, %v440
  %v442 = vpop.f32.mrf.mxu0
  %v443 = vpop.f32.mrf.mxu0
  %v444 = vadd.f32 %v100, %v443
  %v445 = vpop.f32.mrf.mxu0
  %446 = vmatprep.mubr.bf16.mxu0 0
  %447 = vmatmul.mubr.bf16.gmra.mxu0 %v239
  %v448 = vpop.f32.mrf.mxu0
  %v449 = vadd.f32 %v100, %v448
  %v450 = vpop.f32.mrf.mxu0
  %v451 = vpop.f32.mrf.mxu0
  %v452 = vadd.f32 %v100, %v451
  %v453 = vpop.f32.mrf.mxu0
  %454 = vmatprep.mubr.bf16.mxu0 0
  %455 = vmatmul.mubr.bf16.gmra.mxu0 %v240
  %v456 = vpop.f32.mrf.mxu0
  %v457 = vadd.f32 %v100, %v456
  %v458 = vpop.f32.mrf.mxu0
  %v459 = vpop.f32.mrf.mxu0
  %v460 = vadd.f32 %v100, %v459
  %v461 = vpop.f32.mrf.mxu0
  %462 = vmatprep.mubr.bf16.mxu0 0
  %463 = vmatmul.mubr.bf16.gmra.mxu0 %v241
  %v464 = vpop.f32.mrf.mxu0
  %v465 = vadd.f32 %v100, %v464
  %v466 = vpop.f32.mrf.mxu0
  %v467 = vpop.f32.mrf.mxu0
  %v468 = vadd.f32 %v100, %v467
  %v469 = vpop.f32.mrf.mxu0
  %470 = vmatprep.mubr.bf16.mxu0 0
  %471 = vmatmul.mubr.bf16.gmra.mxu0 %v242
  %v472 = vpop.f32.mrf.mxu0
  %v473 = vadd.f32 %v100, %v472
  %v474 = vpop.f32.mrf.mxu0
  %v475 = vpop.f32.mrf.mxu0
  %v476 = vadd.f32 %v100, %v475
  %v477 = vpop.f32.mrf.mxu0
  %478 = vmatprep.mubr.bf16.mxu0 0
  %479 = vmatmul.mubr.bf16.gmra.mxu0 %v243
  %v480 = vpop.f32.mrf.mxu0
  %v481 = vadd.f32 %v100, %v480
  %v482 = vpop.f32.mrf.mxu0
  %v483 = vpop.f32.mrf.mxu0
  %v484 = vadd.f32 %v100, %v483
  %v485 = vpop.f32.mrf.mxu0
  %486 = vmatprep.mubr.bf16.mxu0 0
  %487 = vmatmul.mubr.bf16.gmra.mxu0 %v244
  %v488 = vpop.f32.mrf.mxu0
  %v489 = vadd.f32 %v100, %v488
  %v490 = vpop.f32.mrf.mxu0
  %v491 = vpop.f32.mrf.mxu0
  %v492 = vadd.f32 %v100, %v491
  %v493 = vpop.f32.mrf.mxu0
  %494 = vmatprep.mubr.bf16.mxu0 0
  %495 = vmatmul.mubr.bf16.gmra.mxu0 %v245
  %v496 = vpop.f32.mrf.mxu0
  %v497 = vadd.f32 %v100, %v496
  %v498 = vpop.f32.mrf.mxu0
  %v499 = vpop.f32.mrf.mxu0
  %v500 = vadd.f32 %v100, %v499
  %v501 = vpop.f32.mrf.mxu0
  %502 = vmatprep.mubr.bf16.mxu0 0
  %503 = vmatmul.mubr.bf16.gmra.mxu0 %v246
  %v504 = vpop.f32.mrf.mxu0
  %v505 = vadd.f32 %v100, %v504
  %v506 = vpop.f32.mrf.mxu0
  %v507 = vpop.f32.mrf.mxu0
  %v508 = vadd.f32 %v100, %v507
  %v509 = vpop.f32.mrf.mxu0
  %510 = vmatprep.mubr.bf16.mxu0 0
  %511 = vmatmul.mubr.bf16.gmra.mxu0 %v247
  %v512 = vpop.f32.mrf.mxu0
  %v513 = vadd.f32 %v100, %v512
  %v514 = vpop.f32.mrf.mxu0
  %v515 = vpop.f32.mrf.mxu0
  %v516 = vadd.f32 %v100, %v515
  %v517 = vpop.f32.mrf.mxu0
  %518 = vmatprep.mubr.bf16.mxu0 0
  %519 = vmatmul.mubr.bf16.gmra.mxu0 %v248
  %v520 = vpop.f32.mrf.mxu0
  %v521 = vadd.f32 %v100, %v520
  %v522 = vpop.f32.mrf.mxu0
  %v523 = vpop.f32.mrf.mxu0
  %v524 = vadd.f32 %v100, %v523
  %v525 = vpop.f32.mrf.mxu0
  %526 = vmatprep.mubr.bf16.mxu0 0
  %527 = vmatmul.mubr.bf16.gmra.mxu0 %v249
  %v528 = vpop.f32.mrf.mxu0
  %v529 = vadd.f32 %v100, %v528
  %v530 = vpop.f32.mrf.mxu0
  %v531 = vpop.f32.mrf.mxu0
  %v532 = vadd.f32 %v100, %v531
  %v533 = vpop.f32.mrf.mxu0
  %534 = vmatprep.mubr.bf16.mxu0 0
  %535 = vmatmul.mubr.bf16.gmra.mxu0 %v250
  %v536 = vpop.f32.mrf.mxu0
  %v537 = vadd.f32 %v100, %v536
  %v538 = vpop.f32.mrf.mxu0
  %v539 = vpop.f32.mrf.mxu0
  %v540 = vadd.f32 %v100, %v539
  %v541 = vpop.f32.mrf.mxu0
  %542 = vmatprep.mubr.bf16.mxu0 0
  %543 = vmatmul.mubr.bf16.gmra.mxu0 %v251
  %v544 = vpop.f32.mrf.mxu0
  %v545 = vadd.f32 %v100, %v544
  %v546 = vpop.f32.mrf.mxu0
  %v547 = vpop.f32.mrf.mxu0
  %v548 = vadd.f32 %v100, %v547
  %v549 = vpop.f32.mrf.mxu0
  %550 = vmatprep.mubr.bf16.mxu0 0
  %551 = vmatmul.mubr.bf16.gmra.mxu0 %v252
  %v552 = vpop.f32.mrf.mxu0
  %v553 = vadd.f32 %v100, %v552
  %v554 = vpop.f32.mrf.mxu0
  %v555 = vpop.f32.mrf.mxu0
  %v556 = vadd.f32 %v100, %v555
  %v557 = vpop.f32.mrf.mxu0
  %558 = vmatprep.mubr.bf16.mxu0 0
  %559 = vmatmul.mubr.bf16.gmra.mxu0 %v253
  %v560 = vpop.f32.mrf.mxu0
  %v561 = vadd.f32 %v100, %v560
  %v562 = vpop.f32.mrf.mxu0
  %v563 = vpop.f32.mrf.mxu0
  %v564 = vadd.f32 %v100, %v563
  %v565 = vpop.f32.mrf.mxu0
  %566 = vmatprep.mubr.bf16.mxu0 0
  %567 = vmatmul.mubr.bf16.gmra.mxu0 %v254
  %v568 = vpop.f32.mrf.mxu0
  %v569 = vadd.f32 %v100, %v568
  %v570 = vpop.f32.mrf.mxu0
  %v571 = vpop.f32.mrf.mxu0
  %v572 = vadd.f32 %v100, %v571
  %v573 = vpop.f32.mrf.mxu0
  %574 = vmatprep.mubr.bf16.mxu0 0
  %575 = vmatmul.mubr.bf16.gmra.mxu0 %v255
  %v576 = vpop.f32.mrf.mxu0
  %v577 = vadd.f32 %v100, %v576
  %v578 = vpop.f32.mrf.mxu0
  %v579 = vpop.f32.mrf.mxu0
  %v580 = vadd.f32 %v100, %v579
  %v581 = vpop.f32.mrf.mxu0
  %582 = vmatprep.mubr.bf16.mxu0 0
  %583 = vmatmul.mubr.bf16.gmra.mxu0 %v256
  %v584 = vpop.f32.mrf.mxu0
  %v585 = vadd.f32 %v100, %v584
  %v586 = vpop.f32.mrf.mxu0
  %v587 = vpop.f32.mrf.mxu0
  %v588 = vadd.f32 %v100, %v587
  %v589 = vpop.f32.mrf.mxu0
  %590 = vmatprep.mubr.bf16.mxu0 0
  %591 = vmatmul.mubr.bf16.gmra.mxu0 %v257
  %v592 = vpop.f32.mrf.mxu0
  %v593 = vadd.f32 %v100, %v592
  %v594 = vpop.f32.mrf.mxu0
  %v595 = vpop.f32.mrf.mxu0
  %v596 = vadd.f32 %v100, %v595
  %v597 = vpop.f32.mrf.mxu0
  %598 = vmatprep.mubr.bf16.mxu0 0
  %599 = vmatmul.mubr.bf16.gmra.mxu0 %v258
  %v600 = vpop.f32.mrf.mxu0
  %v601 = vadd.f32 %v100, %v600
  %v602 = vpop.f32.mrf.mxu0
  %v603 = vpop.f32.mrf.mxu0
  %v604 = vadd.f32 %v100, %v603
  %v605 = vpop.f32.mrf.mxu0
  %606 = vmatprep.mubr.bf16.mxu0 0
  %607 = vmatmul.mubr.bf16.gmra.mxu0 %v259
  %v608 = vpop.f32.mrf.mxu0
  %v609 = vadd.f32 %v100, %v608
  %v610 = vpop.f32.mrf.mxu0
  %v611 = vpop.f32.mrf.mxu0
  %v612 = vadd.f32 %v100, %v611
  %v613 = vpop.f32.mrf.mxu0
  %614 = vmatprep.mubr.bf16.mxu0 0
  %615 = vmatmul.mubr.bf16.gmra.mxu0 %v260
  %v616 = vpop.f32.mrf.mxu0
  %v617 = vadd.f32 %v100, %v616
  %v618 = vpop.f32.mrf.mxu0
  %v619 = vpop.f32.mrf.mxu0
  %v620 = vadd.f32 %v100, %v619
  %v621 = vpop.f32.mrf.mxu0
  %622 = vmatprep.mubr.bf16.mxu0 0
  %623 = vmatmul.mubr.bf16.gmra.mxu0 %v261
  %v624 = vpop.f32.mrf.mxu0
  %v625 = vadd.f32 %v100, %v624
  %v626 = vpop.f32.mrf.mxu0
  %v627 = vpop.f32.mrf.mxu0
  %v628 = vadd.f32 %v100, %v627
  %v629 = vpop.f32.mrf.mxu0
  %630 = vdwg.mxu0
  %vm631 = vcmp.ge.f32.partialorder %v377, 0.0
  %vm632 = vcmp.ge.f32.partialorder %v380, 0.0
  %vm633 = vcmp.ge.f32.partialorder %v385, 0.0
  %vm634 = vcmp.ge.f32.partialorder %v388, 0.0
  %vm635 = vcmp.ge.f32.partialorder %v393, 0.0
  %vm636 = vcmp.ge.f32.partialorder %v396, 0.0
  %vm637 = vcmp.ge.f32.partialorder %v401, 0.0
  %vm638 = vcmp.ge.f32.partialorder %v404, 0.0
  %vm639 = vcmp.ge.f32.partialorder %v409, 0.0
  %vm640 = vcmp.ge.f32.partialorder %v412, 0.0
  %vm641 = vcmp.ge.f32.partialorder %v417, 0.0
  %vm642 = vcmp.ge.f32.partialorder %v420, 0.0
  %vm643 = vcmp.ge.f32.partialorder %v425, 0.0
  %vm644 = vcmp.ge.f32.partialorder %v428, 0.0
  %vm645 = vcmp.ge.f32.partialorder %v433, 0.0
  %vm646 = vcmp.ge.f32.partialorder %v436, 0.0
  %vm647 = vcmp.ge.f32.partialorder %v441, 0.0
  %vm648 = vcmp.ge.f32.partialorder %v444, 0.0
  %vm649 = vcmp.ge.f32.partialorder %v449, 0.0
  %vm650 = vcmp.ge.f32.partialorder %v452, 0.0
  %vm651 = vcmp.ge.f32.partialorder %v457, 0.0
  %vm652 = vcmp.ge.f32.partialorder %v460, 0.0
  %vm653 = vcmp.ge.f32.partialorder %v465, 0.0
  %vm654 = vcmp.ge.f32.partialorder %v468, 0.0
  %vm655 = vcmp.ge.f32.partialorder %v473, 0.0
  %vm656 = vcmp.ge.f32.partialorder %v476, 0.0
  %vm657 = vcmp.ge.f32.partialorder %v481, 0.0
  %vm658 = vcmp.ge.f32.partialorder %v484, 0.0
  %vm659 = vcmp.ge.f32.partialorder %v489, 0.0
  %vm660 = vcmp.ge.f32.partialorder %v492, 0.0
  %vm661 = vcmp.ge.f32.partialorder %v497, 0.0
  %vm662 = vcmp.ge.f32.partialorder %v500, 0.0
  %vm663 = vcmp.ge.f32.partialorder %v505, 0.0
  %vm664 = vcmp.ge.f32.partialorder %v508, 0.0
  %vm665 = vcmp.ge.f32.partialorder %v513, 0.0
  %vm666 = vcmp.ge.f32.partialorder %v516, 0.0
  %vm667 = vcmp.ge.f32.partialorder %v521, 0.0
  %vm668 = vcmp.ge.f32.partialorder %v524, 0.0
  %vm669 = vcmp.ge.f32.partialorder %v529, 0.0
  %vm670 = vcmp.ge.f32.partialorder %v532, 0.0
  %vm671 = vcmp.ge.f32.partialorder %v537, 0.0
  %vm672 = vcmp.ge.f32.partialorder %v540, 0.0
  %vm673 = vcmp.ge.f32.partialorder %v545, 0.0
  %vm674 = vcmp.ge.f32.partialorder %v548, 0.0
  %vm675 = vcmp.ge.f32.partialorder %v553, 0.0
  %vm676 = vcmp.ge.f32.partialorder %v556, 0.0
  %vm677 = vcmp.ge.f32.partialorder %v561, 0.0
  %vm678 = vcmp.ge.f32.partialorder %v564, 0.0
  %vm679 = vcmp.ge.f32.partialorder %v569, 0.0
  %vm680 = vcmp.ge.f32.partialorder %v572, 0.0
  %vm681 = vcmp.ge.f32.partialorder %v577, 0.0
  %vm682 = vcmp.ge.f32.partialorder %v580, 0.0
  %vm683 = vcmp.ge.f32.partialorder %v585, 0.0
  %vm684 = vcmp.ge.f32.partialorder %v588, 0.0
  %vm685 = vcmp.ge.f32.partialorder %v593, 0.0
  %vm686 = vcmp.ge.f32.partialorder %v596, 0.0
  %vm687 = vcmp.ge.f32.partialorder %v601, 0.0
  %vm688 = vcmp.ge.f32.partialorder %v604, 0.0
  %vm689 = vcmp.ge.f32.partialorder %v609, 0.0
  %vm690 = vcmp.ge.f32.partialorder %v612, 0.0
  %vm691 = vcmp.ge.f32.partialorder %v617, 0.0
  %vm692 = vcmp.ge.f32.partialorder %v620, 0.0
  %vm693 = vcmp.ge.f32.partialorder %v625, 0.0
  %vm694 = vcmp.ge.f32.partialorder %v628, 0.0
  %v695 = vmul.f32 %v377, 0.2
  %v696 = vmul.f32 %v380, 0.2
  %v697 = vmul.f32 %v385, 0.2
  %v698 = vmul.f32 %v388, 0.2
  %v699 = vmul.f32 %v393, 0.2
  %v700 = vmul.f32 %v396, 0.2
  %v701 = vmul.f32 %v401, 0.2
  %v702 = vmul.f32 %v404, 0.2
  %v703 = vmul.f32 %v409, 0.2
  %v704 = vmul.f32 %v412, 0.2
  %v705 = vmul.f32 %v417, 0.2
  %v706 = vmul.f32 %v420, 0.2
  %v707 = vmul.f32 %v425, 0.2
  %v708 = vmul.f32 %v428, 0.2
  %v709 = vmul.f32 %v433, 0.2
  %v710 = vmul.f32 %v436, 0.2
  %v711 = vmul.f32 %v441, 0.2
  %v712 = vmul.f32 %v444, 0.2
  %v713 = vmul.f32 %v449, 0.2
  %v714 = vmul.f32 %v452, 0.2
  %v715 = vmul.f32 %v457, 0.2
  %v716 = vmul.f32 %v460, 0.2
  %v717 = vmul.f32 %v465, 0.2
  %v718 = vmul.f32 %v468, 0.2
  %v719 = vmul.f32 %v473, 0.2
  %v720 = vmul.f32 %v476, 0.2
  %v721 = vmul.f32 %v481, 0.2
  %v722 = vmul.f32 %v484, 0.2
  %v723 = vmul.f32 %v489, 0.2
  %v724 = vmul.f32 %v492, 0.2
  %v725 = vmul.f32 %v497, 0.2
  %v726 = vmul.f32 %v500, 0.2
  %v727 = vmul.f32 %v505, 0.2
  %v728 = vmul.f32 %v508, 0.2
  %v729 = vmul.f32 %v513, 0.2
  %v730 = vmul.f32 %v516, 0.2
  %v731 = vmul.f32 %v521, 0.2
  %v732 = vmul.f32 %v524, 0.2
  %v733 = vmul.f32 %v529, 0.2
  %v734 = vmul.f32 %v532, 0.2
  %v735 = vmul.f32 %v537, 0.2
  %v736 = vmul.f32 %v540, 0.2
  %v737 = vmul.f32 %v545, 0.2
  %v738 = vmul.f32 %v548, 0.2
  %v739 = vmul.f32 %v553, 0.2
  %v740 = vmul.f32 %v556, 0.2
  %v741 = vmul.f32 %v561, 0.2
  %v742 = vmul.f32 %v564, 0.2
  %v743 = vmul.f32 %v569, 0.2
  %v744 = vmul.f32 %v572, 0.2
  %v745 = vmul.f32 %v577, 0.2
  %v746 = vmul.f32 %v580, 0.2
  %v747 = vmul.f32 %v585, 0.2
  %v748 = vmul.f32 %v588, 0.2
  %v749 = vmul.f32 %v593, 0.2
  %v750 = vmul.f32 %v596, 0.2
  %v751 = vmul.f32 %v601, 0.2
  %v752 = vmul.f32 %v604, 0.2
  %v753 = vmul.f32 %v609, 0.2
  %v754 = vmul.f32 %v612, 0.2
  %v755 = vmul.f32 %v617, 0.2
  %v756 = vmul.f32 %v620, 0.2
  %v757 = vmul.f32 %v625, 0.2
  %v758 = vmul.f32 %v628, 0.2
  %v759 = vsel %vm631, %v377, %v695
  %v760 = vsel %vm632, %v380, %v696
  %v761 = vsel %vm633, %v385, %v697
  %v762 = vsel %vm634, %v388, %v698
  %v763 = vsel %vm635, %v393, %v699
  %v764 = vsel %vm636, %v396, %v700
  %v765 = vsel %vm637, %v401, %v701
  %v766 = vsel %vm638, %v404, %v702
  %v767 = vsel %vm639, %v409, %v703
  %v768 = vsel %vm640, %v412, %v704
  %v769 = vsel %vm641, %v417, %v705
  %v770 = vsel %vm642, %v420, %v706
  %v771 = vsel %vm643, %v425, %v707
  %v772 = vsel %vm644, %v428, %v708
  %v773 = vsel %vm645, %v433, %v709
  %v774 = vsel %vm646, %v436, %v710
  %v775 = vsel %vm647, %v441, %v711
  %v776 = vsel %vm648, %v444, %v712
  %v777 = vsel %vm649, %v449, %v713
  %v778 = vsel %vm650, %v452, %v714
  %v779 = vsel %vm651, %v457, %v715
  %v780 = vsel %vm652, %v460, %v716
  %v781 = vsel %vm653, %v465, %v717
  %v782 = vsel %vm654, %v468, %v718
  %v783 = vsel %vm655, %v473, %v719
  %v784 = vsel %vm656, %v476, %v720
  %v785 = vsel %vm657, %v481, %v721
  %v786 = vsel %vm658, %v484, %v722
  %v787 = vsel %vm659, %v489, %v723
  %v788 = vsel %vm660, %v492, %v724
  %v789 = vsel %vm661, %v497, %v725
  %v790 = vsel %vm662, %v500, %v726
  %v791 = vsel %vm663, %v505, %v727
  %v792 = vsel %vm664, %v508, %v728
  %v793 = vsel %vm665, %v513, %v729
  %v794 = vsel %vm666, %v516, %v730
  %v795 = vsel %vm667, %v521, %v731
  %v796 = vsel %vm668, %v524, %v732
  %v797 = vsel %vm669, %v529, %v733
  %v798 = vsel %vm670, %v532, %v734
  %v799 = vsel %vm671, %v537, %v735
  %v800 = vsel %vm672, %v540, %v736
  %v801 = vsel %vm673, %v545, %v737
  %v802 = vsel %vm674, %v548, %v738
  %v803 = vsel %vm675, %v553, %v739
  %v804 = vsel %vm676, %v556, %v740
  %v805 = vsel %vm677, %v561, %v741
  %v806 = vsel %vm678, %v564, %v742
  %v807 = vsel %vm679, %v569, %v743
  %v808 = vsel %vm680, %v572, %v744
  %v809 = vsel %vm681, %v577, %v745
  %v810 = vsel %vm682, %v580, %v746
  %v811 = vsel %vm683, %v585, %v747
  %v812 = vsel %vm684, %v588, %v748
  %v813 = vsel %vm685, %v593, %v749
  %v814 = vsel %vm686, %v596, %v750
  %v815 = vsel %vm687, %v601, %v751
  %v816 = vsel %vm688, %v604, %v752
  %v817 = vsel %vm689, %v609, %v753
  %v818 = vsel %vm690, %v612, %v754
  %v819 = vsel %vm691, %v617, %v755
  %v820 = vsel %vm692, %v620, %v756
  %v821 = vsel %vm693, %v625, %v757
  %v822 = vsel %vm694, %v628, %v758
  %v823 = vpack.c.bf16 %v760, %v759
  %v824 = vpack.c.bf16 %v762, %v761
  %v825 = vpack.c.bf16 %v764, %v763
  %v826 = vpack.c.bf16 %v766, %v765
  %v827 = vpack.c.bf16 %v768, %v767
  %v828 = vpack.c.bf16 %v770, %v769
  %v829 = vpack.c.bf16 %v772, %v771
  %v830 = vpack.c.bf16 %v774, %v773
  %v831 = vpack.c.bf16 %v776, %v775
  %v832 = vpack.c.bf16 %v778, %v777
  %v833 = vpack.c.bf16 %v780, %v779
  %v834 = vpack.c.bf16 %v782, %v781
  %v835 = vpack.c.bf16 %v784, %v783
  %v836 = vpack.c.bf16 %v786, %v785
  %v837 = vpack.c.bf16 %v788, %v787
  %v838 = vpack.c.bf16 %v790, %v789
  %v839 = vpack.c.bf16 %v792, %v791
  %v840 = vpack.c.bf16 %v794, %v793
  %v841 = vpack.c.bf16 %v796, %v795
  %v842 = vpack.c.bf16 %v798, %v797
  %v843 = vpack.c.bf16 %v800, %v799
  %v844 = vpack.c.bf16 %v802, %v801
  %v845 = vpack.c.bf16 %v804, %v803
  %v846 = vpack.c.bf16 %v806, %v805
  %v847 = vpack.c.bf16 %v808, %v807
  %v848 = vpack.c.bf16 %v810, %v809
  %v849 = vpack.c.bf16 %v812, %v811
  %v850 = vpack.c.bf16 %v814, %v813
  %v851 = vpack.c.bf16 %v816, %v815
  %v852 = vpack.c.bf16 %v818, %v817
  %v853 = vpack.c.bf16 %v820, %v819
  %v854 = vpack.c.bf16 %v822, %v821
  %v887 = vunpack.c.l.b16 %v823
  %v888 = vunpack.c.h.b16 %v823
  %v889 = vunpack.c.l.b16 %v824
  %v890 = vunpack.c.h.b16 %v824
  %v891 = vunpack.c.l.b16 %v825
  %v892 = vunpack.c.h.b16 %v825
  %v893 = vunpack.c.l.b16 %v826
  %v894 = vunpack.c.h.b16 %v826
  %v895 = vunpack.c.l.b16 %v827
  %v896 = vunpack.c.h.b16 %v827
  %v897 = vunpack.c.l.b16 %v828
  %v898 = vunpack.c.h.b16 %v828
  %v899 = vunpack.c.l.b16 %v829
  %v900 = vunpack.c.h.b16 %v829
  %v901 = vunpack.c.l.b16 %v830
  %v902 = vunpack.c.h.b16 %v830
  %v903 = vunpack.c.l.b16 %v831
  %v904 = vunpack.c.h.b16 %v831
  %v905 = vunpack.c.l.b16 %v832
  %v906 = vunpack.c.h.b16 %v832
  %v907 = vunpack.c.l.b16 %v833
  %v908 = vunpack.c.h.b16 %v833
  %v909 = vunpack.c.l.b16 %v834
  %v910 = vunpack.c.h.b16 %v834
  %v911 = vunpack.c.l.b16 %v835
  %v912 = vunpack.c.h.b16 %v835
  %v913 = vunpack.c.l.b16 %v836
  %v914 = vunpack.c.h.b16 %v836
  %v915 = vunpack.c.l.b16 %v837
  %v916 = vunpack.c.h.b16 %v837
  %v917 = vunpack.c.l.b16 %v838
  %v918 = vunpack.c.h.b16 %v838
  %v919 = vunpack.c.l.b16 %v839
  %v920 = vunpack.c.h.b16 %v839
  %v921 = vunpack.c.l.b16 %v840
  %v922 = vunpack.c.h.b16 %v840
  %v923 = vunpack.c.l.b16 %v841
  %v924 = vunpack.c.h.b16 %v841
  %v925 = vunpack.c.l.b16 %v842
  %v926 = vunpack.c.h.b16 %v842
  %v927 = vunpack.c.l.b16 %v843
  %v928 = vunpack.c.h.b16 %v843
  %v929 = vunpack.c.l.b16 %v844
  %v930 = vunpack.c.h.b16 %v844
  %v931 = vunpack.c.l.b16 %v845
  %v932 = vunpack.c.h.b16 %v845
  %v933 = vunpack.c.l.b16 %v846
  %v934 = vunpack.c.h.b16 %v846
  %v935 = vunpack.c.l.b16 %v847
  %v936 = vunpack.c.h.b16 %v847
  %v937 = vunpack.c.l.b16 %v848
  %v938 = vunpack.c.h.b16 %v848
  %v939 = vunpack.c.l.b16 %v849
  %v940 = vunpack.c.h.b16 %v849
  %v941 = vunpack.c.l.b16 %v850
  %v942 = vunpack.c.h.b16 %v850
  %v943 = vunpack.c.l.b16 %v851
  %v944 = vunpack.c.h.b16 %v851
  %v945 = vunpack.c.l.b16 %v852
  %v946 = vunpack.c.h.b16 %v852
  %v947 = vunpack.c.l.b16 %v853
  %v948 = vunpack.c.h.b16 %v853
  %v949 = vunpack.c.l.b16 %v854
  %v950 = vunpack.c.h.b16 %v854
  %v951 = vpack.c.b16 %v887, %v887
  %v952 = vpack.c.b16 %v888, %v888
  %v953 = vpack.c.b16 %v889, %v889
  %v954 = vpack.c.b16 %v890, %v890
  %v955 = vpack.c.b16 %v891, %v891
  %v956 = vpack.c.b16 %v892, %v892
  %v957 = vpack.c.b16 %v893, %v893
  %v958 = vpack.c.b16 %v894, %v894
  %v959 = vpack.c.b16 %v895, %v895
  %v960 = vpack.c.b16 %v896, %v896
  %v961 = vpack.c.b16 %v897, %v897
  %v962 = vpack.c.b16 %v898, %v898
  %v963 = vpack.c.b16 %v899, %v899
  %v964 = vpack.c.b16 %v900, %v900
  %v965 = vpack.c.b16 %v901, %v901
  %v966 = vpack.c.b16 %v902, %v902
  %v967 = vpack.c.b16 %v903, %v903
  %v968 = vpack.c.b16 %v904, %v904
  %v969 = vpack.c.b16 %v905, %v905
  %v970 = vpack.c.b16 %v906, %v906
  %v971 = vpack.c.b16 %v907, %v907
  %v972 = vpack.c.b16 %v908, %v908
  %v973 = vpack.c.b16 %v909, %v909
  %v974 = vpack.c.b16 %v910, %v910
  %v975 = vpack.c.b16 %v911, %v911
  %v976 = vpack.c.b16 %v912, %v912
  %v977 = vpack.c.b16 %v913, %v913
  %v978 = vpack.c.b16 %v914, %v914
  %v979 = vpack.c.b16 %v915, %v915
  %v980 = vpack.c.b16 %v916, %v916
  %v981 = vpack.c.b16 %v917, %v917
  %v982 = vpack.c.b16 %v918, %v918
  %v983 = vpack.c.b16 %v919, %v919
  %v984 = vpack.c.b16 %v920, %v920
  %v985 = vpack.c.b16 %v921, %v921
  %v986 = vpack.c.b16 %v922, %v922
  %v987 = vpack.c.b16 %v923, %v923
  %v988 = vpack.c.b16 %v924, %v924
  %v989 = vpack.c.b16 %v925, %v925
  %v990 = vpack.c.b16 %v926, %v926
  %v991 = vpack.c.b16 %v927, %v927
  %v992 = vpack.c.b16 %v928, %v928
  %v993 = vpack.c.b16 %v929, %v929
  %v994 = vpack.c.b16 %v930, %v930
  %v995 = vpack.c.b16 %v931, %v931
  %v996 = vpack.c.b16 %v932, %v932
  %v997 = vpack.c.b16 %v933, %v933
  %v998 = vpack.c.b16 %v934, %v934
  %v999 = vpack.c.b16 %v935, %v935
  %v1000 = vpack.c.b16 %v936, %v936
  %v1001 = vpack.c.b16 %v937, %v937
  %v1002 = vpack.c.b16 %v938, %v938
  %v1003 = vpack.c.b16 %v939, %v939
  %v1004 = vpack.c.b16 %v940, %v940
  %v1005 = vpack.c.b16 %v941, %v941
  %v1006 = vpack.c.b16 %v942, %v942
  %v1007 = vpack.c.b16 %v943, %v943
  %v1008 = vpack.c.b16 %v944, %v944
  %v1009 = vpack.c.b16 %v945, %v945
  %v1010 = vpack.c.b16 %v946, %v946
  %v1011 = vpack.c.b16 %v947, %v947
  %v1012 = vpack.c.b16 %v948, %v948
  %v1013 = vpack.c.b16 %v949, %v949
  %v1014 = vpack.c.b16 %v950, %v950
  %1079 = vst [vmem:[%s3] sm:$0xf] %v951
  %1080 = vst [vmem:[%s3 + $0x4] sm:$0xf] %v952
  %1081 = vst [vmem:[%s3 + $0x8] sm:$0xf] %v953
  %1082 = vst [vmem:[%s3 + $0xc] sm:$0xf] %v954
  %1083 = vst [vmem:[%s3 + $0x10] sm:$0xf] %v955
  %1084 = vst [vmem:[%s3 + $0x14] sm:$0xf] %v956
  %1085 = vst [vmem:[%s3 + $0x18] sm:$0xf] %v957
  %1086 = vst [vmem:[%s3 + $0x1c] sm:$0xf] %v958
  %1087 = vst [vmem:[%s3 + $0x20] sm:$0xf] %v959
  %1088 = vst [vmem:[%s3 + $0x24] sm:$0xf] %v960
  %1089 = vst [vmem:[%s3 + $0x28] sm:$0xf] %v961
  %1090 = vst [vmem:[%s3 + $0x2c] sm:$0xf] %v962
  %1091 = vst [vmem:[%s3 + $0x30] sm:$0xf] %v963
  %1092 = vst [vmem:[%s3 + $0x34] sm:$0xf] %v964
  %1093 = vst [vmem:[%s3 + $0x38] sm:$0xf] %v965
  %1094 = vst [vmem:[%s3 + $0x3c] sm:$0xf] %v966
  %1095 = vst [vmem:[%s3 + $0x40] sm:$0xf] %v967
  %1096 = vst [vmem:[%s3 + $0x44] sm:$0xf] %v968
  %1097 = vst [vmem:[%s3 + $0x48] sm:$0xf] %v969
  %1098 = vst [vmem:[%s3 + $0x4c] sm:$0xf] %v970
  %1099 = vst [vmem:[%s3 + $0x50] sm:$0xf] %v971
  %1100 = vst [vmem:[%s3 + $0x54] sm:$0xf] %v972
  %1101 = vst [vmem:[%s3 + $0x58] sm:$0xf] %v973
  %1102 = vst [vmem:[%s3 + $0x5c] sm:$0xf] %v974
  %1103 = vst [vmem:[%s3 + $0x60] sm:$0xf] %v975
  %1104 = vst [vmem:[%s3 + $0x64] sm:$0xf] %v976
  %1105 = vst [vmem:[%s3 + $0x68] sm:$0xf] %v977
  %1106 = vst [vmem:[%s3 + $0x6c] sm:$0xf] %v978
  %1107 = vst [vmem:[%s3 + $0x70] sm:$0xf] %v979
  %1108 = vst [vmem:[%s3 + $0x74] sm:$0xf] %v980
  %1109 = vst [vmem:[%s3 + $0x78] sm:$0xf] %v981
  %1110 = vst [vmem:[%s3 + $0x7c] sm:$0xf] %v982
  %1111 = vst [vmem:[%s3 + $0x80] sm:$0xf] %v983
  %1112 = vst [vmem:[%s3 + $0x84] sm:$0xf] %v984
  %1113 = vst [vmem:[%s3 + $0x88] sm:$0xf] %v985
  %1114 = vst [vmem:[%s3 + $0x8c] sm:$0xf] %v986
  %1115 = vst [vmem:[%s3 + $0x90] sm:$0xf] %v987
  %1116 = vst [vmem:[%s3 + $0x94] sm:$0xf] %v988
  %1117 = vst [vmem:[%s3 + $0x98] sm:$0xf] %v989
  %1118 = vst [vmem:[%s3 + $0x9c] sm:$0xf] %v990
  %1119 = vst [vmem:[%s3 + $0xa0] sm:$0xf] %v991
  %1120 = vst [vmem:[%s3 + $0xa4] sm:$0xf] %v992
  %1121 = vst [vmem:[%s3 + $0xa8] sm:$0xf] %v993
  %1122 = vst [vmem:[%s3 + $0xac] sm:$0xf] %v994
  %1123 = vst [vmem:[%s3 + $0xb0] sm:$0xf] %v995
  %1124 = vst [vmem:[%s3 + $0xb4] sm:$0xf] %v996
  %1125 = vst [vmem:[%s3 + $0xb8] sm:$0xf] %v997
  %1126 = vst [vmem:[%s3 + $0xbc] sm:$0xf] %v998
  %1127 = vst [vmem:[%s3 + $0xc0] sm:$0xf] %v999
  %1128 = vst [vmem:[%s3 + $0xc4] sm:$0xf] %v1000
  %1129 = vst [vmem:[%s3 + $0xc8] sm:$0xf] %v1001
  %1130 = vst [vmem:[%s3 + $0xcc] sm:$0xf] %v1002
  %1131 = vst [vmem:[%s3 + $0xd0] sm:$0xf] %v1003
  %1132 = vst [vmem:[%s3 + $0xd4] sm:$0xf] %v1004
  %1133 = vst [vmem:[%s3 + $0xd8] sm:$0xf] %v1005
  %1134 = vst [vmem:[%s3 + $0xdc] sm:$0xf] %v1006
  %1135 = vst [vmem:[%s3 + $0xe0] sm:$0xf] %v1007
  %1136 = vst [vmem:[%s3 + $0xe4] sm:$0xf] %v1008
  %1137 = vst [vmem:[%s3 + $0xe8] sm:$0xf] %v1009
  %1138 = vst [vmem:[%s3 + $0xec] sm:$0xf] %v1010
  %1139 = vst [vmem:[%s3 + $0xf0] sm:$0xf] %v1011
  %1140 = vst [vmem:[%s3 + $0xf4] sm:$0xf] %v1012
  %1141 = vst [vmem:[%s3 + $0xf8] sm:$0xf] %v1013
  %1142 = vst [vmem:[%s3 + $0xfc] sm:$0xf] %v1014
  // Predicated region
  $region14: #{_lambda_.8} parent=0 // pred_check
    _
  $region15: #{_lambda_.8} parent=0 // pred_check_branch
    %1144 = sbr.rel (0) target = $region17
  $region16: #{_lambda_.8} parent=0 // pred_region
    _
  $region17: #{_lambda_.8} parent=0 // pred_fallthru
    _
  // Predicated region
  $region18: #{_lambda_.8} parent=0 // pred_check
    _
  $region19: #{_lambda_.8} parent=0 // pred_check_branch
    %1146 = sbr.rel (0) target = $region21
  $region20: #{_lambda_.8} parent=0 // pred_region
    _
  $region21: #{_lambda_.8} parent=0 // pred_fallthru
    _

// kernel: _lambda_.9
$region0: #{_lambda_.9}
  #allocation0 [shape = 'u32[]', space=smem, size = 0x4, offset = 0x4, fixed_abs, tag = 'smem constant byte address 0x4 - core index']
  #allocation1 [shape = 'u32[144,128]{1,0:T(1,128)}', space=vmem, size = 0x12000, scoped, tag = 'internal scratch']
  %s0 = inlined_call_operand.vmem [shape: bf16[128,128], index: 0, kind: input, shape index: {}]
  %s1 = inlined_call_operand.vmem [shape: bf16[128,128], index: 1, kind: input, shape index: {}]
  %s2 = inlined_call_operand.vmem [shape: bf16[128,128], index: 2, kind: output, shape index: {0}]
  %s3 = inlined_call_operand.vmem [shape: f32[8,128], index: 3, kind: output, shape index: {1}]
  %s4 = inlined_call_operand.vmem [shape: f32[8,128], index: 4, kind: output, shape index: {2}]
  %5 = xla_tuple %s2, %s3, %s4
  %s6 = sld [smem:[#allocation0]]
  $region34: #{_lambda_.9} parent=0
    _
  %s8 = ssub.s32 1, %s6
  %s9 = scalar_select 0, %s8, %s6
  // Predicated region
  $region2: #{_lambda_.9} parent=0 // pred_check
    _
  $region3: #{_lambda_.9} parent=0 // pred_check_branch
    %11 = sbr.rel (0) target = $region5
  $region4: #{_lambda_.9} parent=0 // pred_region
    _
  $region5: #{_lambda_.9} parent=0 // pred_fallthru
    _
  // Predicated region
  $region6: #{_lambda_.9} parent=0 // pred_check
    _
  $region7: #{_lambda_.9} parent=0 // pred_check_branch
    %13 = sbr.rel (0) target = $region9
  $region8: #{_lambda_.9} parent=0 // pred_region
    _
  $region9: #{_lambda_.9} parent=0 // pred_fallthru
    _
  %v15 = vld [vmem:[%s0] sm:$0xf]
  %v16 = vld [vmem:[%s0 + $0x4] sm:$0xf]
  %v17 = vld [vmem:[%s0 + $0x8] sm:$0xf]
  %v18 = vld [vmem:[%s0 + $0xc] sm:$0xf]
  %v19 = vld [vmem:[%s0 + $0x10] sm:$0xf]
  %v20 = vld [vmem:[%s0 + $0x14] sm:$0xf]
  %v21 = vld [vmem:[%s0 + $0x18] sm:$0xf]
  %v22 = vld [vmem:[%s0 + $0x1c] sm:$0xf]
  %v23 = vld [vmem:[%s0 + $0x20] sm:$0xf]
  %v24 = vld [vmem:[%s0 + $0x24] sm:$0xf]
  %v25 = vld [vmem:[%s0 + $0x28] sm:$0xf]
  %v26 = vld [vmem:[%s0 + $0x2c] sm:$0xf]
  %v27 = vld [vmem:[%s0 + $0x30] sm:$0xf]
  %v28 = vld [vmem:[%s0 + $0x34] sm:$0xf]
  %v29 = vld [vmem:[%s0 + $0x38] sm:$0xf]
  %v30 = vld [vmem:[%s0 + $0x3c] sm:$0xf]
  %v31 = vld [vmem:[%s1] sm:$0xf]
  %v32 = vld [vmem:[%s1 + $0x4] sm:$0xf]
  %v33 = vld [vmem:[%s1 + $0x8] sm:$0xf]
  %v34 = vld [vmem:[%s1 + $0xc] sm:$0xf]
  %v35 = vld [vmem:[%s1 + $0x10] sm:$0xf]
  %v36 = vld [vmem:[%s1 + $0x14] sm:$0xf]
  %v37 = vld [vmem:[%s1 + $0x18] sm:$0xf]
  %v38 = vld [vmem:[%s1 + $0x1c] sm:$0xf]
  %v39 = vld [vmem:[%s1 + $0x20] sm:$0xf]
  %v40 = vld [vmem:[%s1 + $0x24] sm:$0xf]
  %v41 = vld [vmem:[%s1 + $0x28] sm:$0xf]
  %v42 = vld [vmem:[%s1 + $0x2c] sm:$0xf]
  %v43 = vld [vmem:[%s1 + $0x30] sm:$0xf]
  %v44 = vld [vmem:[%s1 + $0x34] sm:$0xf]
  %v45 = vld [vmem:[%s1 + $0x38] sm:$0xf]
  %v46 = vld [vmem:[%s1 + $0x3c] sm:$0xf]
  %v63 = vunpack.c.l.b16 %v15
  %v64 = vunpack.c.l.b16 %v16
  %v65 = vunpack.c.l.b16 %v17
  %v66 = vunpack.c.l.b16 %v18
  %v67 = vunpack.c.l.b16 %v19
  %v68 = vunpack.c.l.b16 %v20
  %v69 = vunpack.c.l.b16 %v21
  %v70 = vunpack.c.l.b16 %v22
  %v71 = vunpack.c.l.b16 %v23
  %v72 = vunpack.c.l.b16 %v24
  %v73 = vunpack.c.l.b16 %v25
  %v74 = vunpack.c.l.b16 %v26
  %v75 = vunpack.c.l.b16 %v27
  %v76 = vunpack.c.l.b16 %v28
  %v77 = vunpack.c.l.b16 %v29
  %v78 = vunpack.c.l.b16 %v30
  %v79 = vpack.c.b16 %v64, %v63
  %v80 = vpack.c.b16 %v66, %v65
  %v81 = vpack.c.b16 %v68, %v67
  %v82 = vpack.c.b16 %v70, %v69
  %v83 = vpack.c.b16 %v72, %v71
  %v84 = vpack.c.b16 %v74, %v73
  %v85 = vpack.c.b16 %v76, %v75
  %v86 = vpack.c.b16 %v78, %v77
  %v111 = vunpack.c.l.b16 %v31
  %v112 = vunpack.c.l.b16 %v32
  %v113 = vunpack.c.l.b16 %v33
  %v114 = vunpack.c.l.b16 %v34
  %v115 = vunpack.c.l.b16 %v35
  %v116 = vunpack.c.l.b16 %v36
  %v117 = vunpack.c.l.b16 %v37
  %v118 = vunpack.c.l.b16 %v38
  %v119 = vunpack.c.l.b16 %v39
  %v120 = vunpack.c.l.b16 %v40
  %v121 = vunpack.c.l.b16 %v41
  %v122 = vunpack.c.l.b16 %v42
  %v123 = vunpack.c.l.b16 %v43
  %v124 = vunpack.c.l.b16 %v44
  %v125 = vunpack.c.l.b16 %v45
  %v126 = vunpack.c.l.b16 %v46
  %v127 = vpack.c.b16 %v112, %v111
  %v128 = vpack.c.b16 %v114, %v113
  %v129 = vpack.c.b16 %v116, %v115
  %v130 = vpack.c.b16 %v118, %v117
  %v131 = vpack.c.b16 %v120, %v119
  %v132 = vpack.c.b16 %v122, %v121
  %v133 = vpack.c.b16 %v124, %v123
  %v134 = vpack.c.b16 %v126, %v125
  %143 = vmatprep.subr.bf16.mxu0 0
  %144 = vmatpush1.bf16.msra.mxu0 %v134
  %145 = vmatprep.subr.bf16.mxu0 0
  %146 = vmatpush1.bf16.msra.mxu0 %v133
  %147 = vmatprep.subr.bf16.mxu0 0
  %148 = vmatpush1.bf16.msra.mxu0 %v132
  %149 = vmatprep.subr.bf16.mxu0 0
  %150 = vmatpush1.bf16.msra.mxu0 %v131
  %151 = vmatprep.subr.bf16.mxu0 0
  %152 = vmatpush1.bf16.msra.mxu0 %v130
  %153 = vmatprep.subr.bf16.mxu0 0
  %154 = vmatpush1.bf16.msra.mxu0 %v129
  %155 = vmatprep.subr.bf16.mxu0 0
  %156 = vmatpush1.bf16.msra.mxu0 %v128
  %157 = vmatprep.subr.bf16.mxu0 0
  %158 = vmatpush1.bf16.msra.mxu0 %v127
  %159 = vmatprep.subr.bf16.mxu0 0
  %160 = vmatpush2.bf16.msra.mxu0 0
  %161 = vmatprep.subr.bf16.mxu0 0
  %162 = vmatpush2.bf16.msra.mxu0 0
  %163 = vmatprep.subr.bf16.mxu0 0
  %164 = vmatpush2.bf16.msra.mxu0 0
  %165 = vmatprep.subr.bf16.mxu0 0
  %166 = vmatpush2.bf16.msra.mxu0 0
  %167 = vmatprep.subr.bf16.mxu0 0
  %168 = vmatpush2.bf16.msra.mxu0 0
  %169 = vmatprep.subr.bf16.mxu0 0
  %170 = vmatpush2.bf16.msra.mxu0 0
  %171 = vmatprep.subr.bf16.mxu0 0
  %172 = vmatpush2.bf16.msra.mxu0 0
  %173 = vmatprep.subr.bf16.mxu0 0
  %174 = vmatpush2.bf16.msra.mxu0 0
  %175 = vmatprep.mubr.bf16.mxu0 0
  %176 = vmatmul.mubr.bf16.gmra.mxu0 %v79
  %v177 = vpop.f32.mrf.mxu0
  %v178 = vadd.f32 0.0, %v177
  %v179 = vpop.f32.mrf.mxu0
  %v180 = vpop.f32.mrf.mxu0
  %v181 = vadd.f32 0.0, %v180
  %v182 = vpop.f32.mrf.mxu0
  %183 = vmatprep.mubr.bf16.mxu0 0
  %184 = vmatmul.mubr.bf16.gmra.mxu0 %v80
  %v185 = vpop.f32.mrf.mxu0
  %v186 = vadd.f32 0.0, %v185
  %v187 = vpop.f32.mrf.mxu0
  %v188 = vpop.f32.mrf.mxu0
  %v189 = vadd.f32 0.0, %v188
  %v190 = vpop.f32.mrf.mxu0
  %191 = vmatprep.mubr.bf16.mxu0 0
  %192 = vmatmul.mubr.bf16.gmra.mxu0 %v81
  %v193 = vpop.f32.mrf.mxu0
  %v194 = vadd.f32 0.0, %v193
  %v195 = vpop.f32.mrf.mxu0
  %v196 = vpop.f32.mrf.mxu0
  %v197 = vadd.f32 0.0, %v196
  %v198 = vpop.f32.mrf.mxu0
  %199 = vmatprep.mubr.bf16.mxu0 0
  %200 = vmatmul.mubr.bf16.gmra.mxu0 %v82
  %v201 = vpop.f32.mrf.mxu0
  %v202 = vadd.f32 0.0, %v201
  %v203 = vpop.f32.mrf.mxu0
  %v204 = vpop.f32.mrf.mxu0
  %v205 = vadd.f32 0.0, %v204
  %v206 = vpop.f32.mrf.mxu0
  %207 = vmatprep.mubr.bf16.mxu0 0
  %208 = vmatmul.mubr.bf16.gmra.mxu0 %v83
  %v209 = vpop.f32.mrf.mxu0
  %v210 = vadd.f32 0.0, %v209
  %v211 = vpop.f32.mrf.mxu0
  %v212 = vpop.f32.mrf.mxu0
  %v213 = vadd.f32 0.0, %v212
  %v214 = vpop.f32.mrf.mxu0
  %215 = vmatprep.mubr.bf16.mxu0 0
  %216 = vmatmul.mubr.bf16.gmra.mxu0 %v84
  %v217 = vpop.f32.mrf.mxu0
  %v218 = vadd.f32 0.0, %v217
  %v219 = vpop.f32.mrf.mxu0
  %v220 = vpop.f32.mrf.mxu0
  %v221 = vadd.f32 0.0, %v220
  %v222 = vpop.f32.mrf.mxu0
  %223 = vmatprep.mubr.bf16.mxu0 0
  %224 = vmatmul.mubr.bf16.gmra.mxu0 %v85
  %v225 = vpop.f32.mrf.mxu0
  %v226 = vadd.f32 0.0, %v225
  %v227 = vpop.f32.mrf.mxu0
  %v228 = vpop.f32.mrf.mxu0
  %v229 = vadd.f32 0.0, %v228
  %v230 = vpop.f32.mrf.mxu0
  %231 = vmatprep.mubr.bf16.mxu0 0
  %232 = vmatmul.mubr.bf16.gmra.mxu0 %v86
  %v233 = vpop.f32.mrf.mxu0
  %v234 = vadd.f32 0.0, %v233
  %v235 = vpop.f32.mrf.mxu0
  %v236 = vpop.f32.mrf.mxu0
  %v237 = vadd.f32 0.0, %v236
  %v238 = vpop.f32.mrf.mxu0
  %239 = vdwg.mxu0
  %240 = vst [vmem:[%s3] sm:$0xff] 0.0
  %241 = vst [vmem:[%s4] sm:$0xff] 0.0
  %v242 = vadd.f32 %v178, %v181
  %v243 = vadd.f32 %v242, %v186
  %v244 = vadd.f32 %v243, %v189
  %v245 = vadd.f32 %v244, %v194
  %v246 = vadd.f32 %v245, %v197
  %v247 = vadd.f32 %v246, %v202
  %v248 = vadd.f32 %v247, %v205
  %v249 = vadd.f32 %v248, %v210
  %v250 = vadd.f32 %v249, %v213
  %v251 = vadd.f32 %v250, %v218
  %v252 = vadd.f32 %v251, %v221
  %v253 = vadd.f32 %v252, %v226
  %v254 = vadd.f32 %v253, %v229
  %v255 = vadd.f32 %v254, %v234
  %v256 = vadd.f32 %v255, %v237
  %v257 = vrot.slane %v256, 4
  %v258 = vadd.f32 %v256, %v257
  %v259 = vrot.slane %v258, 2
  %v260 = vadd.f32 %v258, %v259
  %v261 = vrot.slane %v260, 1
  %v262 = vadd.f32 %v260, %v261
  %263 = vst [vmem:[%s3] sm:$0x1] %v262
  %v264 = vmul.f32 %v178, %v178
  %v265 = vmul.f32 %v181, %v181
  %v266 = vmul.f32 %v186, %v186
  %v267 = vmul.f32 %v189, %v189
  %v268 = vmul.f32 %v194, %v194
  %v269 = vmul.f32 %v197, %v197
  %v270 = vmul.f32 %v202, %v202
  %v271 = vmul.f32 %v205, %v205
  %v272 = vmul.f32 %v210, %v210
  %v273 = vmul.f32 %v213, %v213
  %v274 = vmul.f32 %v218, %v218
  %v275 = vmul.f32 %v221, %v221
  %v276 = vmul.f32 %v226, %v226
  %v277 = vmul.f32 %v229, %v229
  %v278 = vmul.f32 %v234, %v234
  %v279 = vmul.f32 %v237, %v237
  %v280 = vadd.f32 %v264, %v265
  %v281 = vadd.f32 %v280, %v266
  %v282 = vadd.f32 %v281, %v267
  %v283 = vadd.f32 %v282, %v268
  %v284 = vadd.f32 %v283, %v269
  %v285 = vadd.f32 %v284, %v270
  %v286 = vadd.f32 %v285, %v271
  %v287 = vadd.f32 %v286, %v272
  %v288 = vadd.f32 %v287, %v273
  %v289 = vadd.f32 %v288, %v274
  %v290 = vadd.f32 %v289, %v275
  %v291 = vadd.f32 %v290, %v276
  %v292 = vadd.f32 %v291, %v277
  %v293 = vadd.f32 %v292, %v278
  %v294 = vadd.f32 %v293, %v279
  %v295 = vrot.slane %v294, 4
  %v296 = vadd.f32 %v294, %v295
  %v297 = vrot.slane %v296, 2
  %v298 = vadd.f32 %v296, %v297
  %v299 = vrot.slane %v298, 1
  %v300 = vadd.f32 %v298, %v299
  %301 = vst [vmem:[%s4] sm:$0x1] %v300
  %v302 = vpack.c.bf16 %v181, %v178
  %v303 = vpack.c.bf16 %v189, %v186
  %v304 = vpack.c.bf16 %v197, %v194
  %v305 = vpack.c.bf16 %v205, %v202
  %v306 = vpack.c.bf16 %v213, %v210
  %v307 = vpack.c.bf16 %v221, %v218
  %v308 = vpack.c.bf16 %v229, %v226
  %v309 = vpack.c.bf16 %v237, %v234
  %v318 = vunpack.c.l.b16 %v302
  %v319 = vunpack.c.h.b16 %v302
  %v320 = vunpack.c.l.b16 %v303
  %v321 = vunpack.c.h.b16 %v303
  %v322 = vunpack.c.l.b16 %v304
  %v323 = vunpack.c.h.b16 %v304
  %v324 = vunpack.c.l.b16 %v305
  %v325 = vunpack.c.h.b16 %v305
  %v326 = vunpack.c.l.b16 %v306
  %v327 = vunpack.c.h.b16 %v306
  %v328 = vunpack.c.l.b16 %v307
  %v329 = vunpack.c.h.b16 %v307
  %v330 = vunpack.c.l.b16 %v308
  %v331 = vunpack.c.h.b16 %v308
  %v332 = vunpack.c.l.b16 %v309
  %v333 = vunpack.c.h.b16 %v309
  %v334 = vpack.c.b16 %v318, %v318
  %v335 = vpack.c.b16 %v319, %v319
  %v336 = vpack.c.b16 %v320, %v320
  %v337 = vpack.c.b16 %v321, %v321
  %v338 = vpack.c.b16 %v322, %v322
  %v339 = vpack.c.b16 %v323, %v323
  %v340 = vpack.c.b16 %v324, %v324
  %v341 = vpack.c.b16 %v325, %v325
  %v342 = vpack.c.b16 %v326, %v326
  %v343 = vpack.c.b16 %v327, %v327
  %v344 = vpack.c.b16 %v328, %v328
  %v345 = vpack.c.b16 %v329, %v329
  %v346 = vpack.c.b16 %v330, %v330
  %v347 = vpack.c.b16 %v331, %v331
  %v348 = vpack.c.b16 %v332, %v332
  %v349 = vpack.c.b16 %v333, %v333
  %366 = vst [vmem:[%s2] sm:$0xf] %v334
  %367 = vst [vmem:[%s2 + $0x4] sm:$0xf] %v335
  %368 = vst [vmem:[%s2 + $0x8] sm:$0xf] %v336
  %369 = vst [vmem:[%s2 + $0xc] sm:$0xf] %v337
  %370 = vst [vmem:[%s2 + $0x10] sm:$0xf] %v338
  %371 = vst [vmem:[%s2 + $0x14] sm:$0xf] %v339
  %372 = vst [vmem:[%s2 + $0x18] sm:$0xf] %v340
  %373 = vst [vmem:[%s2 + $0x1c] sm:$0xf] %v341
  %374 = vst [vmem:[%s2 + $0x20] sm:$0xf] %v342
  %375 = vst [vmem:[%s2 + $0x24] sm:$0xf] %v343
  %376 = vst [vmem:[%s2 + $0x28] sm:$0xf] %v344
  %377 = vst [vmem:[%s2 + $0x2c] sm:$0xf] %v345
  %378 = vst [vmem:[%s2 + $0x30] sm:$0xf] %v346
  %379 = vst [vmem:[%s2 + $0x34] sm:$0xf] %v347
  %380 = vst [vmem:[%s2 + $0x38] sm:$0xf] %v348
  %381 = vst [vmem:[%s2 + $0x3c] sm:$0xf] %v349
  // Predicated region
  $region10: #{_lambda_.9} parent=0 // pred_check
    _
  $region11: #{_lambda_.9} parent=0 // pred_check_branch
    %383 = sbr.rel (0) target = $region13
  $region12: #{_lambda_.9} parent=0 // pred_region
    _
  $region13: #{_lambda_.9} parent=0 // pred_fallthru
    _
  // Predicated region
  $region14: #{_lambda_.9} parent=0 // pred_check
    _
  $region15: #{_lambda_.9} parent=0 // pred_check_branch
    %385 = sbr.rel (0) target = $region17
  $region16: #{_lambda_.9} parent=0 // pred_region
    _
  $region17: #{_lambda_.9} parent=0 // pred_fallthru
    _
  // Predicated region
  $region18: #{_lambda_.9} parent=0 // pred_check
    _
  $region19: #{_lambda_.9} parent=0 // pred_check_branch
    %387 = sbr.rel (0) target = $region21
  $region20: #{_lambda_.9} parent=0 // pred_region
    _
  $region21: #{_lambda_.9} parent=0 // pred_fallthru
    _
  // Predicated region
  $region22: #{_lambda_.9} parent=0 // pred_check
    _
  $region23: #{_lambda_.9} parent=0 // pred_check_branch
    %389 = sbr.rel (0) target = $region25
  $region24: #{_lambda_.9} parent=0 // pred_region
    _
  $region25: #{_lambda_.9} parent=0 // pred_fallthru
    _
  // Predicated region
  $region26: #{_lambda_.9} parent=0 // pred_check
    _
  $region27: #{_lambda_.9} parent=0 // pred_check_branch
    %391 = sbr.rel (0) target = $region29
  $region28: #{_lambda_.9} parent=0 // pred_region
    _
  $region29: #{_lambda_.9} parent=0 // pred_fallthru
    _
  // Predicated region
  $region30: #{_lambda_.9} parent=0 // pred_check
    _
  $region31: #{_lambda_.9} parent=0 // pred_check_branch
    %393 = sbr.rel (0) target = $region33
  $region32: #{_lambda_.9} parent=0 // pred_region
    _
  $region33: #{_lambda_.9} parent=0 // pred_fallthru
    _

// kernel: _lambda_.10
$region0: #{_lambda_.10}
  #allocation0 [shape = 'u32[]', space=smem, size = 0x4, offset = 0x4, fixed_abs, tag = 'smem constant byte address 0x4 - core index']
  #allocation1 [shape = 'u32[144,128]{1,0:T(1,128)}', space=vmem, size = 0x12000, scoped, tag = 'internal scratch']
  %s0 = inlined_call_operand.vmem [shape: bf16[128,128], index: 0, kind: input, shape index: {}]
  %s1 = inlined_call_operand.vmem [shape: f32[8,128], index: 1, kind: input, shape index: {}]
  %s2 = inlined_call_operand.vmem [shape: f32[8,128], index: 2, kind: input, shape index: {}]
  %s3 = inlined_call_operand.vmem [shape: f32[1,128], index: 3, kind: input, shape index: {}]
  %s4 = inlined_call_operand.vmem [shape: f32[1,128], index: 4, kind: input, shape index: {}]
  %s5 = inlined_call_operand.vmem [shape: bf16[128,128], index: 5, kind: output, shape index: {}]
  %s6 = sld [smem:[#allocation0]]
  $region30: #{_lambda_.10} parent=0
    _
  %s8 = ssub.s32 1, %s6
  %s9 = scalar_select 0, %s8, %s6
  // Predicated region
  $region2: #{_lambda_.10} parent=0 // pred_check
    _
  $region3: #{_lambda_.10} parent=0 // pred_check_branch
    %11 = sbr.rel (0) target = $region5
  $region4: #{_lambda_.10} parent=0 // pred_region
    _
  $region5: #{_lambda_.10} parent=0 // pred_fallthru
    _
  // Predicated region
  $region6: #{_lambda_.10} parent=0 // pred_check
    _
  $region7: #{_lambda_.10} parent=0 // pred_check_branch
    %13 = sbr.rel (0) target = $region9
  $region8: #{_lambda_.10} parent=0 // pred_region
    _
  $region9: #{_lambda_.10} parent=0 // pred_fallthru
    _
  // Predicated region
  $region10: #{_lambda_.10} parent=0 // pred_check
    _
  $region11: #{_lambda_.10} parent=0 // pred_check_branch
    %15 = sbr.rel (0) target = $region13
  $region12: #{_lambda_.10} parent=0 // pred_region
    _
  $region13: #{_lambda_.10} parent=0 // pred_fallthru
    _
  // Predicated region
  $region14: #{_lambda_.10} parent=0 // pred_check
    _
  $region15: #{_lambda_.10} parent=0 // pred_check_branch
    %17 = sbr.rel (0) target = $region17
  $region16: #{_lambda_.10} parent=0 // pred_region
    _
  $region17: #{_lambda_.10} parent=0 // pred_fallthru
    _
  // Predicated region
  $region18: #{_lambda_.10} parent=0 // pred_check
    _
  $region19: #{_lambda_.10} parent=0 // pred_check_branch
    %19 = sbr.rel (0) target = $region21
  $region20: #{_lambda_.10} parent=0 // pred_region
    _
  $region21: #{_lambda_.10} parent=0 // pred_fallthru
    _
  %v20 = vld [vmem:[%s1] sm:$0xff]
  %v21 = vrot.slane %v20, 4
  %v22 = vadd.f32 %v20, %v21
  %v23 = vrot.slane %v22, 2
  %v24 = vadd.f32 %v22, %v23
  %v25 = vrot.slane %v24, 1
  %v26 = vadd.f32 %v24, %v25
  %v27 = vmul.f32 %v26, 0.0078125
  %v28 = vld [vmem:[%s2] sm:$0xff]
  %v29 = vrot.slane %v28, 4
  %v30 = vadd.f32 %v28, %v29
  %v31 = vrot.slane %v30, 2
  %v32 = vadd.f32 %v30, %v31
  %v33 = vrot.slane %v32, 1
  %v34 = vadd.f32 %v32, %v33
  %v35 = vmul.f32 %v34, 0.0078125
  %v36 = vmul.f32 %v27, %v27
  %v37 = vsub.f32 %v35, %v36
  %v38 = vmax.f32 %v37, 0.0
  %v39 = vld [vmem:[%s3] sm:$0x1]
  %v40 = vadd.f32 %v38, 1e-05
  %v41 = vrsqrt.pop %v40
  %v42 = vmul.f32 %v39, %v41
  %v43 = vld [vmem:[%s4] sm:$0x1]
  %v44 = vmul.f32 %v27, %v42
  %v45 = vsub.f32 %v43, %v44
  %v46 = vld [vmem:[%s0] sm:$0xf]
  %v47 = vld [vmem:[%s0 + $0x4] sm:$0xf]
  %v48 = vld [vmem:[%s0 + $0x8] sm:$0xf]
  %v49 = vld [vmem:[%s0 + $0xc] sm:$0xf]
  %v50 = vld [vmem:[%s0 + $0x10] sm:$0xf]
  %v51 = vld [vmem:[%s0 + $0x14] sm:$0xf]
  %v52 = vld [vmem:[%s0 + $0x18] sm:$0xf]
  %v53 = vld [vmem:[%s0 + $0x1c] sm:$0xf]
  %v54 = vld [vmem:[%s0 + $0x20] sm:$0xf]
  %v55 = vld [vmem:[%s0 + $0x24] sm:$0xf]
  %v56 = vld [vmem:[%s0 + $0x28] sm:$0xf]
  %v57 = vld [vmem:[%s0 + $0x2c] sm:$0xf]
  %v58 = vld [vmem:[%s0 + $0x30] sm:$0xf]
  %v59 = vld [vmem:[%s0 + $0x34] sm:$0xf]
  %v60 = vld [vmem:[%s0 + $0x38] sm:$0xf]
  %v61 = vld [vmem:[%s0 + $0x3c] sm:$0xf]
  %v62 = vunpack.c.l.bf16 %v46
  %v63 = vunpack.c.l.bf16 %v47
  %v64 = vunpack.c.l.bf16 %v48
  %v65 = vunpack.c.l.bf16 %v49
  %v66 = vunpack.c.l.bf16 %v50
  %v67 = vunpack.c.l.bf16 %v51
  %v68 = vunpack.c.l.bf16 %v52
  %v69 = vunpack.c.l.bf16 %v53
  %v70 = vunpack.c.l.bf16 %v54
  %v71 = vunpack.c.l.bf16 %v55
  %v72 = vunpack.c.l.bf16 %v56
  %v73 = vunpack.c.l.bf16 %v57
  %v74 = vunpack.c.l.bf16 %v58
  %v75 = vunpack.c.l.bf16 %v59
  %v76 = vunpack.c.l.bf16 %v60
  %v77 = vunpack.c.l.bf16 %v61
  %v79 = vlaneseq
  %v80 = vshrl.u32 %v79, 7
  %v81 = vsub.s32 0, %v80
  %v82 = vrot.slane %v42, %v81
  %v84 = vmul.f32 %v62, %v82
  %v85 = vmul.f32 %v63, %v82
  %v86 = vmul.f32 %v64, %v82
  %v87 = vmul.f32 %v65, %v82
  %v88 = vmul.f32 %v66, %v82
  %v89 = vmul.f32 %v67, %v82
  %v90 = vmul.f32 %v68, %v82
  %v91 = vmul.f32 %v69, %v82
  %v92 = vmul.f32 %v70, %v82
  %v93 = vmul.f32 %v71, %v82
  %v94 = vmul.f32 %v72, %v82
  %v95 = vmul.f32 %v73, %v82
  %v96 = vmul.f32 %v74, %v82
  %v97 = vmul.f32 %v75, %v82
  %v98 = vmul.f32 %v76, %v82
  %v99 = vmul.f32 %v77, %v82
  %v101 = vlaneseq
  %v102 = vshrl.u32 %v101, 7
  %v103 = vsub.s32 0, %v102
  %v104 = vrot.slane %v45, %v103
  %v106 = vadd.f32 %v84, %v104
  %v107 = vadd.f32 %v85, %v104
  %v108 = vadd.f32 %v86, %v104
  %v109 = vadd.f32 %v87, %v104
  %v110 = vadd.f32 %v88, %v104
  %v111 = vadd.f32 %v89, %v104
  %v112 = vadd.f32 %v90, %v104
  %v113 = vadd.f32 %v91, %v104
  %v114 = vadd.f32 %v92, %v104
  %v115 = vadd.f32 %v93, %v104
  %v116 = vadd.f32 %v94, %v104
  %v117 = vadd.f32 %v95, %v104
  %v118 = vadd.f32 %v96, %v104
  %v119 = vadd.f32 %v97, %v104
  %v120 = vadd.f32 %v98, %v104
  %v121 = vadd.f32 %v99, %v104
  %vm122 = vcmp.ge.f32.partialorder %v106, 0.0
  %vm123 = vcmp.ge.f32.partialorder %v107, 0.0
  %vm124 = vcmp.ge.f32.partialorder %v108, 0.0
  %vm125 = vcmp.ge.f32.partialorder %v109, 0.0
  %vm126 = vcmp.ge.f32.partialorder %v110, 0.0
  %vm127 = vcmp.ge.f32.partialorder %v111, 0.0
  %vm128 = vcmp.ge.f32.partialorder %v112, 0.0
  %vm129 = vcmp.ge.f32.partialorder %v113, 0.0
  %vm130 = vcmp.ge.f32.partialorder %v114, 0.0
  %vm131 = vcmp.ge.f32.partialorder %v115, 0.0
  %vm132 = vcmp.ge.f32.partialorder %v116, 0.0
  %vm133 = vcmp.ge.f32.partialorder %v117, 0.0
  %vm134 = vcmp.ge.f32.partialorder %v118, 0.0
  %vm135 = vcmp.ge.f32.partialorder %v119, 0.0
  %vm136 = vcmp.ge.f32.partialorder %v120, 0.0
  %vm137 = vcmp.ge.f32.partialorder %v121, 0.0
  %v138 = vmul.f32 %v106, 0.2
  %v139 = vmul.f32 %v107, 0.2
  %v140 = vmul.f32 %v108, 0.2
  %v141 = vmul.f32 %v109, 0.2
  %v142 = vmul.f32 %v110, 0.2
  %v143 = vmul.f32 %v111, 0.2
  %v144 = vmul.f32 %v112, 0.2
  %v145 = vmul.f32 %v113, 0.2
  %v146 = vmul.f32 %v114, 0.2
  %v147 = vmul.f32 %v115, 0.2
  %v148 = vmul.f32 %v116, 0.2
  %v149 = vmul.f32 %v117, 0.2
  %v150 = vmul.f32 %v118, 0.2
  %v151 = vmul.f32 %v119, 0.2
  %v152 = vmul.f32 %v120, 0.2
  %v153 = vmul.f32 %v121, 0.2
  %v154 = vsel %vm122, %v106, %v138
  %v155 = vsel %vm123, %v107, %v139
  %v156 = vsel %vm124, %v108, %v140
  %v157 = vsel %vm125, %v109, %v141
  %v158 = vsel %vm126, %v110, %v142
  %v159 = vsel %vm127, %v111, %v143
  %v160 = vsel %vm128, %v112, %v144
  %v161 = vsel %vm129, %v113, %v145
  %v162 = vsel %vm130, %v114, %v146
  %v163 = vsel %vm131, %v115, %v147
  %v164 = vsel %vm132, %v116, %v148
  %v165 = vsel %vm133, %v117, %v149
  %v166 = vsel %vm134, %v118, %v150
  %v167 = vsel %vm135, %v119, %v151
  %v168 = vsel %vm136, %v120, %v152
  %v169 = vsel %vm137, %v121, %v153
  %v170 = vpack.c.bf16 %v155, %v154
  %v171 = vpack.c.bf16 %v157, %v156
  %v172 = vpack.c.bf16 %v159, %v158
  %v173 = vpack.c.bf16 %v161, %v160
  %v174 = vpack.c.bf16 %v163, %v162
  %v175 = vpack.c.bf16 %v165, %v164
  %v176 = vpack.c.bf16 %v167, %v166
  %v177 = vpack.c.bf16 %v169, %v168
  %v186 = vunpack.c.l.b16 %v170
  %v187 = vunpack.c.h.b16 %v170
  %v188 = vunpack.c.l.b16 %v171
  %v189 = vunpack.c.h.b16 %v171
  %v190 = vunpack.c.l.b16 %v172
  %v191 = vunpack.c.h.b16 %v172
  %v192 = vunpack.c.l.b16 %v173
  %v193 = vunpack.c.h.b16 %v173
  %v194 = vunpack.c.l.b16 %v174
  %v195 = vunpack.c.h.b16 %v174
  %v196 = vunpack.c.l.b16 %v175
  %v197 = vunpack.c.h.b16 %v175
  %v198 = vunpack.c.l.b16 %v176
  %v199 = vunpack.c.h.b16 %v176
  %v200 = vunpack.c.l.b16 %v177
  %v201 = vunpack.c.h.b16 %v177
  %v202 = vpack.c.b16 %v186, %v186
  %v203 = vpack.c.b16 %v187, %v187
  %v204 = vpack.c.b16 %v188, %v188
  %v205 = vpack.c.b16 %v189, %v189
  %v206 = vpack.c.b16 %v190, %v190
  %v207 = vpack.c.b16 %v191, %v191
  %v208 = vpack.c.b16 %v192, %v192
  %v209 = vpack.c.b16 %v193, %v193
  %v210 = vpack.c.b16 %v194, %v194
  %v211 = vpack.c.b16 %v195, %v195
  %v212 = vpack.c.b16 %v196, %v196
  %v213 = vpack.c.b16 %v197, %v197
  %v214 = vpack.c.b16 %v198, %v198
  %v215 = vpack.c.b16 %v199, %v199
  %v216 = vpack.c.b16 %v200, %v200
  %v217 = vpack.c.b16 %v201, %v201
  %234 = vst [vmem:[%s5] sm:$0xf] %v202
  %235 = vst [vmem:[%s5 + $0x4] sm:$0xf] %v203
  %236 = vst [vmem:[%s5 + $0x8] sm:$0xf] %v204
  %237 = vst [vmem:[%s5 + $0xc] sm:$0xf] %v205
  %238 = vst [vmem:[%s5 + $0x10] sm:$0xf] %v206
  %239 = vst [vmem:[%s5 + $0x14] sm:$0xf] %v207
  %240 = vst [vmem:[%s5 + $0x18] sm:$0xf] %v208
  %241 = vst [vmem:[%s5 + $0x1c] sm:$0xf] %v209
  %242 = vst [vmem:[%s5 + $0x20] sm:$0xf] %v210
  %243 = vst [vmem:[%s5 + $0x24] sm:$0xf] %v211
  %244 = vst [vmem:[%s5 + $0x28] sm:$0xf] %v212
  %245 = vst [vmem:[%s5 + $0x2c] sm:$0xf] %v213
  %246 = vst [vmem:[%s5 + $0x30] sm:$0xf] %v214
  %247 = vst [vmem:[%s5 + $0x34] sm:$0xf] %v215
  %248 = vst [vmem:[%s5 + $0x38] sm:$0xf] %v216
  %249 = vst [vmem:[%s5 + $0x3c] sm:$0xf] %v217
  // Predicated region
  $region22: #{_lambda_.10} parent=0 // pred_check
    _
  $region23: #{_lambda_.10} parent=0 // pred_check_branch
    %251 = sbr.rel (0) target = $region25
  $region24: #{_lambda_.10} parent=0 // pred_region
    _
  $region25: #{_lambda_.10} parent=0 // pred_fallthru
    _
  // Predicated region
  $region26: #{_lambda_.10} parent=0 // pred_check
    _
  $region27: #{_lambda_.10} parent=0 // pred_check_branch
    %253 = sbr.rel (0) target = $region29
  $region28: #{_lambda_.10} parent=0 // pred_region
    _
  $region29: #{_lambda_.10} parent=0 // pred_fallthru
    _

// kernel: _lambda_.11
$region0: #{_lambda_.11}
  #allocation0 [shape = 'u32[]', space=smem, size = 0x4, offset = 0x4, fixed_abs, tag = 'smem constant byte address 0x4 - core index']
  #allocation1 [shape = 'u32[144,128]{1,0:T(1,128)}', space=vmem, size = 0x12000, scoped, tag = 'internal scratch']
  %s0 = inlined_call_operand.vmem [shape: bf16[32,256], index: 0, kind: input, shape index: {}]
  %s1 = inlined_call_operand.vmem [shape: bf16[256,128], index: 1, kind: input, shape index: {}]
  %s2 = inlined_call_operand.vmem [shape: bf16[32,128], index: 2, kind: output, shape index: {0}]
  %s3 = inlined_call_operand.vmem [shape: f32[8,128], index: 3, kind: output, shape index: {1}]
  %s4 = inlined_call_operand.vmem [shape: f32[8,128], index: 4, kind: output, shape index: {2}]
  %5 = xla_tuple %s2, %s3, %s4
  %s6 = sld [smem:[#allocation0]]
  $region34: #{_lambda_.11} parent=0
    _
  %s8 = ssub.s32 1, %s6
  %s9 = scalar_select 0, %s8, %s6
  // Predicated region
  $region2: #{_lambda_.11} parent=0 // pred_check
    _
  $region3: #{_lambda_.11} parent=0 // pred_check_branch
    %11 = sbr.rel (0) target = $region5
  $region4: #{_lambda_.11} parent=0 // pred_region
    _
  $region5: #{_lambda_.11} parent=0 // pred_fallthru
    _
  // Predicated region
  $region6: #{_lambda_.11} parent=0 // pred_check
    _
  $region7: #{_lambda_.11} parent=0 // pred_check_branch
    %13 = sbr.rel (0) target = $region9
  $region8: #{_lambda_.11} parent=0 // pred_region
    _
  $region9: #{_lambda_.11} parent=0 // pred_fallthru
    _
  %v15 = vld [vmem:[%s0] sm:$0xff]
  %v16 = vld [vmem:[%s0 + $0x8] sm:$0xff]
  %v17 = vld [vmem:[%s0 + $0x10] sm:$0xff]
  %v18 = vld [vmem:[%s0 + $0x18] sm:$0xff]
  %v19 = vld [vmem:[%s1] sm:$0xf]
  %v20 = vld [vmem:[%s1 + $0x4] sm:$0xf]
  %v21 = vld [vmem:[%s1 + $0x8] sm:$0xf]
  %v22 = vld [vmem:[%s1 + $0xc] sm:$0xf]
  %v23 = vld [vmem:[%s1 + $0x10] sm:$0xf]
  %v24 = vld [vmem:[%s1 + $0x14] sm:$0xf]
  %v25 = vld [vmem:[%s1 + $0x18] sm:$0xf]
  %v26 = vld [vmem:[%s1 + $0x1c] sm:$0xf]
  %v27 = vld [vmem:[%s1 + $0x20] sm:$0xf]
  %v28 = vld [vmem:[%s1 + $0x24] sm:$0xf]
  %v29 = vld [vmem:[%s1 + $0x28] sm:$0xf]
  %v30 = vld [vmem:[%s1 + $0x2c] sm:$0xf]
  %v31 = vld [vmem:[%s1 + $0x30] sm:$0xf]
  %v32 = vld [vmem:[%s1 + $0x34] sm:$0xf]
  %v33 = vld [vmem:[%s1 + $0x38] sm:$0xf]
  %v34 = vld [vmem:[%s1 + $0x3c] sm:$0xf]
  %v35 = vld [vmem:[%s1 + $0x40] sm:$0xf]
  %v36 = vld [vmem:[%s1 + $0x44] sm:$0xf]
  %v37 = vld [vmem:[%s1 + $0x48] sm:$0xf]
  %v38 = vld [vmem:[%s1 + $0x4c] sm:$0xf]
  %v39 = vld [vmem:[%s1 + $0x50] sm:$0xf]
  %v40 = vld [vmem:[%s1 + $0x54] sm:$0xf]
  %v41 = vld [vmem:[%s1 + $0x58] sm:$0xf]
  %v42 = vld [vmem:[%s1 + $0x5c] sm:$0xf]
  %v43 = vld [vmem:[%s1 + $0x60] sm:$0xf]
  %v44 = vld [vmem:[%s1 + $0x64] sm:$0xf]
  %v45 = vld [vmem:[%s1 + $0x68] sm:$0xf]
  %v46 = vld [vmem:[%s1 + $0x6c] sm:$0xf]
  %v47 = vld [vmem:[%s1 + $0x70] sm:$0xf]
  %v48 = vld [vmem:[%s1 + $0x74] sm:$0xf]
  %v49 = vld [vmem:[%s1 + $0x78] sm:$0xf]
  %v50 = vld [vmem:[%s1 + $0x7c] sm:$0xf]
  %v55 = vunpack.c.l.b16 %v15
  %v56 = vunpack.c.h.b16 %v15
  %v57 = vunpack.c.l.b16 %v16
  %v58 = vunpack.c.h.b16 %v16
  %v59 = vunpack.c.l.b16 %v17
  %v60 = vunpack.c.h.b16 %v17
  %v61 = vunpack.c.l.b16 %v18
  %v62 = vunpack.c.h.b16 %v18
  %v63 = vpack.c.b16 %v57, %v55
  %v64 = vpack.c.b16 %v58, %v56
  %v65 = vpack.c.b16 %v61, %v59
  %v66 = vpack.c.b16 %v62, %v60
  %v103 = vunpack.c.l.b16 %v19
  %v104 = vunpack.c.l.b16 %v20
  %v105 = vunpack.c.l.b16 %v21
  %v106 = vunpack.c.l.b16 %v22
  %v107 = vunpack.c.l.b16 %v23
  %v108 = vunpack.c.l.b16 %v24
  %v109 = vunpack.c.l.b16 %v25
  %v110 = vunpack.c.l.b16 %v26
  %v111 = vunpack.c.l.b16 %v27
  %v112 = vunpack.c.l.b16 %v28
  %v113 = vunpack.c.l.b16 %v29
  %v114 = vunpack.c.l.b16 %v30
  %v115 = vunpack.c.l.b16 %v31
  %v116 = vunpack.c.l.b16 %v32
  %v117 = vunpack.c.l.b16 %v33
  %v118 = vunpack.c.l.b16 %v34
  %v119 = vunpack.c.l.b16 %v35
  %v120 = vunpack.c.l.b16 %v36
  %v121 = vunpack.c.l.b16 %v37
  %v122 = vunpack.c.l.b16 %v38
  %v123 = vunpack.c.l.b16 %v39
  %v124 = vunpack.c.l.b16 %v40
  %v125 = vunpack.c.l.b16 %v41
  %v126 = vunpack.c.l.b16 %v42
  %v127 = vunpack.c.l.b16 %v43
  %v128 = vunpack.c.l.b16 %v44
  %v129 = vunpack.c.l.b16 %v45
  %v130 = vunpack.c.l.b16 %v46
  %v131 = vunpack.c.l.b16 %v47
  %v132 = vunpack.c.l.b16 %v48
  %v133 = vunpack.c.l.b16 %v49
  %v134 = vunpack.c.l.b16 %v50
  %v135 = vpack.c.b16 %v104, %v103
  %v136 = vpack.c.b16 %v106, %v105
  %v137 = vpack.c.b16 %v108, %v107
  %v138 = vpack.c.b16 %v110, %v109
  %v139 = vpack.c.b16 %v112, %v111
  %v140 = vpack.c.b16 %v114, %v113
  %v141 = vpack.c.b16 %v116, %v115
  %v142 = vpack.c.b16 %v118, %v117
  %v143 = vpack.c.b16 %v120, %v119
  %v144 = vpack.c.b16 %v122, %v121
  %v145 = vpack.c.b16 %v124, %v123
  %v146 = vpack.c.b16 %v126, %v125
  %v147 = vpack.c.b16 %v128, %v127
  %v148 = vpack.c.b16 %v130, %v129
  %v149 = vpack.c.b16 %v132, %v131
  %v150 = vpack.c.b16 %v134, %v133
  %167 = vmatprep.subr.bf16.mxu0 0
  %168 = vmatpush1.bf16.msra.mxu0 %v142
  %169 = vmatprep.subr.bf16.mxu0 0
  %170 = vmatpush1.bf16.msra.mxu0 %v141
  %171 = vmatprep.subr.bf16.mxu0 0
  %172 = vmatpush1.bf16.msra.mxu0 %v140
  %173 = vmatprep.subr.bf16.mxu0 0
  %174 = vmatpush1.bf16.msra.mxu0 %v139
  %175 = vmatprep.subr.bf16.mxu0 0
  %176 = vmatpush1.bf16.msra.mxu0 %v138
  %177 = vmatprep.subr.bf16.mxu0 0
  %178 = vmatpush1.bf16.msra.mxu0 %v137
  %179 = vmatprep.subr.bf16.mxu0 0
  %180 = vmatpush1.bf16.msra.mxu0 %v136
  %181 = vmatprep.subr.bf16.mxu0 0
  %182 = vmatpush1.bf16.msra.mxu0 %v135
  %183 = vmatprep.subr.bf16.mxu0 0
  %184 = vmatpush2.bf16.msra.mxu0 %v150
  %185 = vmatprep.subr.bf16.mxu0 0
  %186 = vmatpush2.bf16.msra.mxu0 %v149
  %187 = vmatprep.subr.bf16.mxu0 0
  %188 = vmatpush2.bf16.msra.mxu0 %v148
  %189 = vmatprep.subr.bf16.mxu0 0
  %190 = vmatpush2.bf16.msra.mxu0 %v147
  %191 = vmatprep.subr.bf16.mxu0 0
  %192 = vmatpush2.bf16.msra.mxu0 %v146
  %193 = vmatprep.subr.bf16.mxu0 0
  %194 = vmatpush2.bf16.msra.mxu0 %v145
  %195 = vmatprep.subr.bf16.mxu0 0
  %196 = vmatpush2.bf16.msra.mxu0 %v144
  %197 = vmatprep.subr.bf16.mxu0 0
  %198 = vmatpush2.bf16.msra.mxu0 %v143
  %199 = vmatprep.mubr.bf16.mxu0 %v64
  %200 = vmatmul.mubr.bf16.gmra.mxu0 %v63
  %v201 = vpop.f32.mrf.mxu0
  %v202 = vadd.f32 0.0, %v201
  %v203 = vpop.f32.mrf.mxu0
  %v204 = vpop.f32.mrf.mxu0
  %v205 = vadd.f32 0.0, %v204
  %v206 = vpop.f32.mrf.mxu0
  %207 = vmatprep.mubr.bf16.mxu0 %v66
  %208 = vmatmul.mubr.bf16.gmra.mxu0 %v65
  %v209 = vpop.f32.mrf.mxu0
  %v210 = vadd.f32 0.0, %v209
  %v211 = vpop.f32.mrf.mxu0
  %v212 = vpop.f32.mrf.mxu0
  %v213 = vadd.f32 0.0, %v212
  %v214 = vpop.f32.mrf.mxu0
  %215 = vdwg.mxu0
  %216 = vst [vmem:[%s3] sm:$0xff] 0.0
  %217 = vst [vmem:[%s4] sm:$0xff] 0.0
  %v218 = vadd.f32 %v202, %v205
  %v219 = vadd.f32 %v218, %v210
  %v220 = vadd.f32 %v219, %v213
  %v221 = vrot.slane %v220, 4
  %v222 = vadd.f32 %v220, %v221
  %v223 = vrot.slane %v222, 2
  %v224 = vadd.f32 %v222, %v223
  %v225 = vrot.slane %v224, 1
  %v226 = vadd.f32 %v224, %v225
  %227 = vst [vmem:[%s3] sm:$0x1] %v226
  %v228 = vmul.f32 %v202, %v202
  %v229 = vmul.f32 %v205, %v205
  %v230 = vmul.f32 %v210, %v210
  %v231 = vmul.f32 %v213, %v213
  %v232 = vadd.f32 %v228, %v229
  %v233 = vadd.f32 %v232, %v230
  %v234 = vadd.f32 %v233, %v231
  %v235 = vrot.slane %v234, 4
  %v236 = vadd.f32 %v234, %v235
  %v237 = vrot.slane %v236, 2
  %v238 = vadd.f32 %v236, %v237
  %v239 = vrot.slane %v238, 1
  %v240 = vadd.f32 %v238, %v239
  %241 = vst [vmem:[%s4] sm:$0x1] %v240
  %v242 = vpack.c.bf16 %v205, %v202
  %v243 = vpack.c.bf16 %v213, %v210
  %v246 = vunpack.c.l.b16 %v242
  %v247 = vunpack.c.h.b16 %v242
  %v248 = vunpack.c.l.b16 %v243
  %v249 = vunpack.c.h.b16 %v243
  %v250 = vpack.c.b16 %v246, %v246
  %v251 = vpack.c.b16 %v247, %v247
  %v252 = vpack.c.b16 %v248, %v248
  %v253 = vpack.c.b16 %v249, %v249
  %258 = vst [vmem:[%s2] sm:$0xf] %v250
  %259 = vst [vmem:[%s2 + $0x4] sm:$0xf] %v251
  %260 = vst [vmem:[%s2 + $0x8] sm:$0xf] %v252
  %261 = vst [vmem:[%s2 + $0xc] sm:$0xf] %v253
  // Predicated region
  $region10: #{_lambda_.11} parent=0 // pred_check
    _
  $region11: #{_lambda_.11} parent=0 // pred_check_branch
    %263 = sbr.rel (0) target = $region13
  $region12: #{_lambda_.11} parent=0 // pred_region
    _
  $region13: #{_lambda_.11} parent=0 // pred_fallthru
    _
  // Predicated region
  $region14: #{_lambda_.11} parent=0 // pred_check
    _
  $region15: #{_lambda_.11} parent=0 // pred_check_branch
    %265 = sbr.rel (0) target = $region17
  $region16: #{_lambda_.11} parent=0 // pred_region
    _
  $region17: #{_lambda_.11} parent=0 // pred_fallthru
    _
  // Predicated region
  $region18: #{_lambda_.11} parent=0 // pred_check
    _
  $region19: #{_lambda_.11} parent=0 // pred_check_branch
    %267 = sbr.rel (0) target = $region21
  $region20: #{_lambda_.11} parent=0 // pred_region
    _
  $region21: #{_lambda_.11} parent=0 // pred_fallthru
    _
  // Predicated region
  $region22: #{_lambda_.11} parent=0 // pred_check
    _
  $region23: #{_lambda_.11} parent=0 // pred_check_branch
    %269 = sbr.rel (0) target = $region25
  $region24: #{_lambda_.11} parent=0 // pred_region
    _
  $region25: #{_lambda_.11} parent=0 // pred_fallthru
    _
  // Predicated region
  $region26: #{_lambda_.11} parent=0 // pred_check
    _
  $region27: #{_lambda_.11} parent=0 // pred_check_branch
    %271 = sbr.rel (0) target = $region29
  $region28: #{_lambda_.11} parent=0 // pred_region
    _
  $region29: #{_lambda_.11} parent=0 // pred_fallthru
    _
  // Predicated region
  $region30: #{_lambda_.11} parent=0 // pred_check
    _
  $region31: #{_lambda_.11} parent=0 // pred_check_branch
    %273 = sbr.rel (0) target = $region33
  $region32: #{_lambda_.11} parent=0 // pred_region
    _
  $region33: #{_lambda_.11} parent=0 // pred_fallthru
    _

// kernel: _lambda_.12
$region0: #{_lambda_.12}
  #allocation0 [shape = 'u32[]', space=smem, size = 0x4, offset = 0x4, fixed_abs, tag = 'smem constant byte address 0x4 - core index']
  #allocation1 [shape = 'u32[144,128]{1,0:T(1,128)}', space=vmem, size = 0x12000, scoped, tag = 'internal scratch']
  %s0 = inlined_call_operand.vmem [shape: bf16[32,128], index: 0, kind: input, shape index: {}]
  %s1 = inlined_call_operand.vmem [shape: f32[8,128], index: 1, kind: input, shape index: {}]
  %s2 = inlined_call_operand.vmem [shape: f32[8,128], index: 2, kind: input, shape index: {}]
  %s3 = inlined_call_operand.vmem [shape: f32[1,128], index: 3, kind: input, shape index: {}]
  %s4 = inlined_call_operand.vmem [shape: f32[1,128], index: 4, kind: input, shape index: {}]
  %s5 = inlined_call_operand.vmem [shape: bf16[32,128], index: 5, kind: output, shape index: {}]
  %s6 = sld [smem:[#allocation0]]
  $region30: #{_lambda_.12} parent=0
    _
  %s8 = ssub.s32 1, %s6
  %s9 = scalar_select 0, %s8, %s6
  // Predicated region
  $region2: #{_lambda_.12} parent=0 // pred_check
    _
  $region3: #{_lambda_.12} parent=0 // pred_check_branch
    %11 = sbr.rel (0) target = $region5
  $region4: #{_lambda_.12} parent=0 // pred_region
    _
  $region5: #{_lambda_.12} parent=0 // pred_fallthru
    _
  // Predicated region
  $region6: #{_lambda_.12} parent=0 // pred_check
    _
  $region7: #{_lambda_.12} parent=0 // pred_check_branch
    %13 = sbr.rel (0) target = $region9
  $region8: #{_lambda_.12} parent=0 // pred_region
    _
  $region9: #{_lambda_.12} parent=0 // pred_fallthru
    _
  // Predicated region
  $region10: #{_lambda_.12} parent=0 // pred_check
    _
  $region11: #{_lambda_.12} parent=0 // pred_check_branch
    %15 = sbr.rel (0) target = $region13
  $region12: #{_lambda_.12} parent=0 // pred_region
    _
  $region13: #{_lambda_.12} parent=0 // pred_fallthru
    _
  // Predicated region
  $region14: #{_lambda_.12} parent=0 // pred_check
    _
  $region15: #{_lambda_.12} parent=0 // pred_check_branch
    %17 = sbr.rel (0) target = $region17
  $region16: #{_lambda_.12} parent=0 // pred_region
    _
  $region17: #{_lambda_.12} parent=0 // pred_fallthru
    _
  // Predicated region
  $region18: #{_lambda_.12} parent=0 // pred_check
    _
  $region19: #{_lambda_.12} parent=0 // pred_check_branch
    %19 = sbr.rel (0) target = $region21
  $region20: #{_lambda_.12} parent=0 // pred_region
    _
  $region21: #{_lambda_.12} parent=0 // pred_fallthru
    _
  %v20 = vld [vmem:[%s1] sm:$0xff]
  %v21 = vrot.slane %v20, 4
  %v22 = vadd.f32 %v20, %v21
  %v23 = vrot.slane %v22, 2
  %v24 = vadd.f32 %v22, %v23
  %v25 = vrot.slane %v24, 1
  %v26 = vadd.f32 %v24, %v25
  %v27 = vmul.f32 %v26, 0.03125
  %v28 = vld [vmem:[%s2] sm:$0xff]
  %v29 = vrot.slane %v28, 4
  %v30 = vadd.f32 %v28, %v29
  %v31 = vrot.slane %v30, 2
  %v32 = vadd.f32 %v30, %v31
  %v33 = vrot.slane %v32, 1
  %v34 = vadd.f32 %v32, %v33
  %v35 = vmul.f32 %v34, 0.03125
  %v36 = vmul.f32 %v27, %v27
  %v37 = vsub.f32 %v35, %v36
  %v38 = vmax.f32 %v37, 0.0
  %v39 = vld [vmem:[%s3] sm:$0x1]
  %v40 = vadd.f32 %v38, 1e-05
  %v41 = vrsqrt.pop %v40
  %v42 = vmul.f32 %v39, %v41
  %v43 = vld [vmem:[%s4] sm:$0x1]
  %v44 = vmul.f32 %v27, %v42
  %v45 = vsub.f32 %v43, %v44
  %v46 = vld [vmem:[%s0] sm:$0xf]
  %v47 = vld [vmem:[%s0 + $0x4] sm:$0xf]
  %v48 = vld [vmem:[%s0 + $0x8] sm:$0xf]
  %v49 = vld [vmem:[%s0 + $0xc] sm:$0xf]
  %v50 = vunpack.c.l.bf16 %v46
  %v51 = vunpack.c.l.bf16 %v47
  %v52 = vunpack.c.l.bf16 %v48
  %v53 = vunpack.c.l.bf16 %v49
  %v55 = vlaneseq
  %v56 = vshrl.u32 %v55, 7
  %v57 = vsub.s32 0, %v56
  %v58 = vrot.slane %v42, %v57
  %v60 = vmul.f32 %v50, %v58
  %v61 = vmul.f32 %v51, %v58
  %v62 = vmul.f32 %v52, %v58
  %v63 = vmul.f32 %v53, %v58
  %v65 = vlaneseq
  %v66 = vshrl.u32 %v65, 7
  %v67 = vsub.s32 0, %v66
  %v68 = vrot.slane %v45, %v67
  %v70 = vadd.f32 %v60, %v68
  %v71 = vadd.f32 %v61, %v68
  %v72 = vadd.f32 %v62, %v68
  %v73 = vadd.f32 %v63, %v68
  %vm74 = vcmp.ge.f32.partialorder %v70, 0.0
  %vm75 = vcmp.ge.f32.partialorder %v71, 0.0
  %vm76 = vcmp.ge.f32.partialorder %v72, 0.0
  %vm77 = vcmp.ge.f32.partialorder %v73, 0.0
  %v78 = vmul.f32 %v70, 0.2
  %v79 = vmul.f32 %v71, 0.2
  %v80 = vmul.f32 %v72, 0.2
  %v81 = vmul.f32 %v73, 0.2
  %v82 = vsel %vm74, %v70, %v78
  %v83 = vsel %vm75, %v71, %v79
  %v84 = vsel %vm76, %v72, %v80
  %v85 = vsel %vm77, %v73, %v81
  %v86 = vpack.c.bf16 %v83, %v82
  %v87 = vpack.c.bf16 %v85, %v84
  %v90 = vunpack.c.l.b16 %v86
  %v91 = vunpack.c.h.b16 %v86
  %v92 = vunpack.c.l.b16 %v87
  %v93 = vunpack.c.h.b16 %v87
  %v94 = vpack.c.b16 %v90, %v90
  %v95 = vpack.c.b16 %v91, %v91
  %v96 = vpack.c.b16 %v92, %v92
  %v97 = vpack.c.b16 %v93, %v93
  %102 = vst [vmem:[%s5] sm:$0xf] %v94
  %103 = vst [vmem:[%s5 + $0x4] sm:$0xf] %v95
  %104 = vst [vmem:[%s5 + $0x8] sm:$0xf] %v96
  %105 = vst [vmem:[%s5 + $0xc] sm:$0xf] %v97
  // Predicated region
  $region22: #{_lambda_.12} parent=0 // pred_check
    _
  $region23: #{_lambda_.12} parent=0 // pred_check_branch
    %107 = sbr.rel (0) target = $region25
  $region24: #{_lambda_.12} parent=0 // pred_region
    _
  $region25: #{_lambda_.12} parent=0 // pred_fallthru
    _
  // Predicated region
  $region26: #{_lambda_.12} parent=0 // pred_check
    _
  $region27: #{_lambda_.12} parent=0 // pred_check_branch
    %109 = sbr.rel (0) target = $region29
  $region28: #{_lambda_.12} parent=0 // pred_region
    _
  $region29: #{_lambda_.12} parent=0 // pred_fallthru
    _

// kernel: _lambda_.14
$region0: #{_lambda_.14}
  #allocation0 [shape = 'u32[]', space=smem, size = 0x4, offset = 0x4, fixed_abs, tag = 'smem constant byte address 0x4 - core index']
  #allocation1 [shape = 'u32[144,128]{1,0:T(1,128)}', space=vmem, size = 0x12000, scoped, tag = 'internal scratch']
  %s0 = inlined_call_operand.vmem [shape: bf16[30,128], index: 0, kind: input, shape index: {}]
  %s1 = inlined_call_operand.vmem [shape: f32[8,128], index: 1, kind: input, shape index: {}]
  %s2 = inlined_call_operand.vmem [shape: f32[8,128], index: 2, kind: input, shape index: {}]
  %s3 = inlined_call_operand.vmem [shape: f32[1,128], index: 3, kind: input, shape index: {}]
  %s4 = inlined_call_operand.vmem [shape: f32[1,128], index: 4, kind: input, shape index: {}]
  %s5 = inlined_call_operand.vmem [shape: bf16[30,128], index: 5, kind: output, shape index: {}]
  %s6 = sld [smem:[#allocation0]]
  $region30: #{_lambda_.14} parent=0
    _
  %s8 = ssub.s32 1, %s6
  %s9 = scalar_select 0, %s8, %s6
  // Predicated region
  $region2: #{_lambda_.14} parent=0 // pred_check
    _
  $region3: #{_lambda_.14} parent=0 // pred_check_branch
    %11 = sbr.rel (0) target = $region5
  $region4: #{_lambda_.14} parent=0 // pred_region
    _
  $region5: #{_lambda_.14} parent=0 // pred_fallthru
    _
  // Predicated region
  $region6: #{_lambda_.14} parent=0 // pred_check
    _
  $region7: #{_lambda_.14} parent=0 // pred_check_branch
    %13 = sbr.rel (0) target = $region9
  $region8: #{_lambda_.14} parent=0 // pred_region
    _
  $region9: #{_lambda_.14} parent=0 // pred_fallthru
    _
  // Predicated region
  $region10: #{_lambda_.14} parent=0 // pred_check
    _
  $region11: #{_lambda_.14} parent=0 // pred_check_branch
    %15 = sbr.rel (0) target = $region13
  $region12: #{_lambda_.14} parent=0 // pred_region
    _
  $region13: #{_lambda_.14} parent=0 // pred_fallthru
    _
  // Predicated region
  $region14: #{_lambda_.14} parent=0 // pred_check
    _
  $region15: #{_lambda_.14} parent=0 // pred_check_branch
    %17 = sbr.rel (0) target = $region17
  $region16: #{_lambda_.14} parent=0 // pred_region
    _
  $region17: #{_lambda_.14} parent=0 // pred_fallthru
    _
  // Predicated region
  $region18: #{_lambda_.14} parent=0 // pred_check
    _
  $region19: #{_lambda_.14} parent=0 // pred_check_branch
    %19 = sbr.rel (0) target = $region21
  $region20: #{_lambda_.14} parent=0 // pred_region
    _
  $region21: #{_lambda_.14} parent=0 // pred_fallthru
    _
  %v20 = vld [vmem:[%s1] sm:$0xff]
  %v21 = vrot.slane %v20, 4
  %v22 = vadd.f32 %v20, %v21
  %v23 = vrot.slane %v22, 2
  %v24 = vadd.f32 %v22, %v23
  %v25 = vrot.slane %v24, 1
  %v26 = vadd.f32 %v24, %v25
  %v27 = vmul.f32 %v26, 0.033333335
  %v28 = vld [vmem:[%s2] sm:$0xff]
  %v29 = vrot.slane %v28, 4
  %v30 = vadd.f32 %v28, %v29
  %v31 = vrot.slane %v30, 2
  %v32 = vadd.f32 %v30, %v31
  %v33 = vrot.slane %v32, 1
  %v34 = vadd.f32 %v32, %v33
  %v35 = vmul.f32 %v34, 0.033333335
  %v36 = vmul.f32 %v27, %v27
  %v37 = vsub.f32 %v35, %v36
  %v38 = vmax.f32 %v37, 0.0
  %v39 = vld [vmem:[%s3] sm:$0x1]
  %v40 = vadd.f32 %v38, 1e-05
  %v41 = vrsqrt.pop %v40
  %v42 = vmul.f32 %v39, %v41
  %v43 = vld [vmem:[%s4] sm:$0x1]
  %v44 = vmul.f32 %v27, %v42
  %v45 = vsub.f32 %v43, %v44
  %v46 = vld [vmem:[%s0] sm:$0xf]
  %v47 = vld [vmem:[%s0 + $0x4] sm:$0xf]
  %v48 = vld [vmem:[%s0 + $0x8] sm:$0xf]
  %v49 = vld [vmem:[%s0 + $0xc] sm:$0x7]
  %v50 = vunpack.c.l.bf16 %v46
  %v51 = vunpack.c.l.bf16 %v47
  %v52 = vunpack.c.l.bf16 %v48
  %v53 = vunpack.c.l.bf16 %v49
  %v55 = vlaneseq
  %v56 = vshrl.u32 %v55, 7
  %v57 = vsub.s32 0, %v56
  %v58 = vrot.slane %v42, %v57
  %v60 = vmul.f32 %v50, %v58
  %v61 = vmul.f32 %v51, %v58
  %v62 = vmul.f32 %v52, %v58
  %v63 = vmul.f32 %v53, %v58
  %v65 = vlaneseq
  %v66 = vshrl.u32 %v65, 7
  %v67 = vsub.s32 0, %v66
  %v68 = vrot.slane %v45, %v67
  %v70 = vadd.f32 %v60, %v68
  %v71 = vadd.f32 %v61, %v68
  %v72 = vadd.f32 %v62, %v68
  %v73 = vadd.f32 %v63, %v68
  %vm74 = vcmp.ge.f32.partialorder %v70, 0.0
  %vm75 = vcmp.ge.f32.partialorder %v71, 0.0
  %vm76 = vcmp.ge.f32.partialorder %v72, 0.0
  %vm77 = vcmp.ge.f32.partialorder %v73, 0.0
  %v78 = vmul.f32 %v70, 0.2
  %v79 = vmul.f32 %v71, 0.2
  %v80 = vmul.f32 %v72, 0.2
  %v81 = vmul.f32 %v73, 0.2
  %v82 = vsel %vm74, %v70, %v78
  %v83 = vsel %vm75, %v71, %v79
  %v84 = vsel %vm76, %v72, %v80
  %v85 = vsel %vm77, %v73, %v81
  %v86 = vpack.c.bf16 %v83, %v82
  %v87 = vpack.c.bf16 %v85, %v84
  %v90 = vunpack.c.l.b16 %v86
  %v91 = vunpack.c.h.b16 %v86
  %v92 = vunpack.c.l.b16 %v87
  %v93 = vunpack.c.h.b16 %v87
  %v94 = vpack.c.b16 %v90, %v90
  %v95 = vpack.c.b16 %v91, %v91
  %v96 = vpack.c.b16 %v92, %v92
  %v97 = vpack.c.b16 %v93, %v93
  %102 = vst [vmem:[%s5] sm:$0xf] %v94
  %103 = vst [vmem:[%s5 + $0x4] sm:$0xf] %v95
  %104 = vst [vmem:[%s5 + $0x8] sm:$0xf] %v96
  %105 = vst [vmem:[%s5 + $0xc] sm:$0x7] %v97
  // Predicated region
  $region22: #{_lambda_.14} parent=0 // pred_check
    _
  $region23: #{_lambda_.14} parent=0 // pred_check_branch
    %107 = sbr.rel (0) target = $region25
  $region24: #{_lambda_.14} parent=0 // pred_region
    _
  $region25: #{_lambda_.14} parent=0 // pred_fallthru
    _
  // Predicated region
  $region26: #{_lambda_.14} parent=0 // pred_check
    _
  $region27: #{_lambda_.14} parent=0 // pred_check_branch
    %109 = sbr.rel (0) target = $region29
  $region28: #{_lambda_.14} parent=0 // pred_region
    _
  $region29: #{_lambda_.14} parent=0 // pred_fallthru
    _

// kernel: _lambda_.13
$region0: #{_lambda_.13}
  #allocation0 [shape = 'u32[]', space=smem, size = 0x4, offset = 0x4, fixed_abs, tag = 'smem constant byte address 0x4 - core index']
  #allocation1 [shape = 'u32[144,128]{1,0:T(1,128)}', space=vmem, size = 0x12000, scoped, tag = 'internal scratch']
  %s0 = inlined_call_operand.vmem [shape: bf16[30,512], index: 0, kind: input, shape index: {}]
  %s1 = inlined_call_operand.vmem [shape: bf16[512,128], index: 1, kind: input, shape index: {}]
  %s2 = inlined_call_operand.vmem [shape: bf16[30,128], index: 2, kind: output, shape index: {0}]
  %s3 = inlined_call_operand.vmem [shape: f32[8,128], index: 3, kind: output, shape index: {1}]
  %s4 = inlined_call_operand.vmem [shape: f32[8,128], index: 4, kind: output, shape index: {2}]
  %5 = xla_tuple %s2, %s3, %s4
  %s6 = sld [smem:[#allocation0]]
  $region34: #{_lambda_.13} parent=0
    _
  %s8 = ssub.s32 1, %s6
  %s9 = scalar_select 0, %s8, %s6
  // Predicated region
  $region2: #{_lambda_.13} parent=0 // pred_check
    _
  $region3: #{_lambda_.13} parent=0 // pred_check_branch
    %11 = sbr.rel (0) target = $region5
  $region4: #{_lambda_.13} parent=0 // pred_region
    _
  $region5: #{_lambda_.13} parent=0 // pred_fallthru
    _
  // Predicated region
  $region6: #{_lambda_.13} parent=0 // pred_check
    _
  $region7: #{_lambda_.13} parent=0 // pred_check_branch
    %13 = sbr.rel (0) target = $region9
  $region8: #{_lambda_.13} parent=0 // pred_region
    _
  $region9: #{_lambda_.13} parent=0 // pred_fallthru
    _
  %v15 = vld [vmem:[%s0] sm:$0xff]
  %v16 = vld [vmem:[%s0 + $0x8] sm:$0xff]
  %v17 = vld [vmem:[%s0 + $0x10] sm:$0xff]
  %v18 = vld [vmem:[%s0 + $0x18] sm:$0xff]
  %v19 = vld [vmem:[%s0 + $0x20] sm:$0xff]
  %v20 = vld [vmem:[%s0 + $0x28] sm:$0xff]
  %v21 = vld [vmem:[%s0 + $0x30] sm:$0x77]
  %v22 = vld [vmem:[%s0 + $0x38] sm:$0x77]
  %v23 = vld [vmem:[%s1] sm:$0xf]
  %v24 = vld [vmem:[%s1 + $0x4] sm:$0xf]
  %v25 = vld [vmem:[%s1 + $0x8] sm:$0xf]
  %v26 = vld [vmem:[%s1 + $0xc] sm:$0xf]
  %v27 = vld [vmem:[%s1 + $0x10] sm:$0xf]
  %v28 = vld [vmem:[%s1 + $0x14] sm:$0xf]
  %v29 = vld [vmem:[%s1 + $0x18] sm:$0xf]
  %v30 = vld [vmem:[%s1 + $0x1c] sm:$0xf]
  %v31 = vld [vmem:[%s1 + $0x20] sm:$0xf]
  %v32 = vld [vmem:[%s1 + $0x24] sm:$0xf]
  %v33 = vld [vmem:[%s1 + $0x28] sm:$0xf]
  %v34 = vld [vmem:[%s1 + $0x2c] sm:$0xf]
  %v35 = vld [vmem:[%s1 + $0x30] sm:$0xf]
  %v36 = vld [vmem:[%s1 + $0x34] sm:$0xf]
  %v37 = vld [vmem:[%s1 + $0x38] sm:$0xf]
  %v38 = vld [vmem:[%s1 + $0x3c] sm:$0xf]
  %v39 = vld [vmem:[%s1 + $0x40] sm:$0xf]
  %v40 = vld [vmem:[%s1 + $0x44] sm:$0xf]
  %v41 = vld [vmem:[%s1 + $0x48] sm:$0xf]
  %v42 = vld [vmem:[%s1 + $0x4c] sm:$0xf]
  %v43 = vld [vmem:[%s1 + $0x50] sm:$0xf]
  %v44 = vld [vmem:[%s1 + $0x54] sm:$0xf]
  %v45 = vld [vmem:[%s1 + $0x58] sm:$0xf]
  %v46 = vld [vmem:[%s1 + $0x5c] sm:$0xf]
  %v47 = vld [vmem:[%s1 + $0x60] sm:$0xf]
  %v48 = vld [vmem:[%s1 + $0x64] sm:$0xf]
  %v49 = vld [vmem:[%s1 + $0x68] sm:$0xf]
  %v50 = vld [vmem:[%s1 + $0x6c] sm:$0xf]
  %v51 = vld [vmem:[%s1 + $0x70] sm:$0xf]
  %v52 = vld [vmem:[%s1 + $0x74] sm:$0xf]
  %v53 = vld [vmem:[%s1 + $0x78] sm:$0xf]
  %v54 = vld [vmem:[%s1 + $0x7c] sm:$0xf]
  %v55 = vld [vmem:[%s1 + $0x80] sm:$0xf]
  %v56 = vld [vmem:[%s1 + $0x84] sm:$0xf]
  %v57 = vld [vmem:[%s1 + $0x88] sm:$0xf]
  %v58 = vld [vmem:[%s1 + $0x8c] sm:$0xf]
  %v59 = vld [vmem:[%s1 + $0x90] sm:$0xf]
  %v60 = vld [vmem:[%s1 + $0x94] sm:$0xf]
  %v61 = vld [vmem:[%s1 + $0x98] sm:$0xf]
  %v62 = vld [vmem:[%s1 + $0x9c] sm:$0xf]
  %v63 = vld [vmem:[%s1 + $0xa0] sm:$0xf]
  %v64 = vld [vmem:[%s1 + $0xa4] sm:$0xf]
  %v65 = vld [vmem:[%s1 + $0xa8] sm:$0xf]
  %v66 = vld [vmem:[%s1 + $0xac] sm:$0xf]
  %v67 = vld [vmem:[%s1 + $0xb0] sm:$0xf]
  %v68 = vld [vmem:[%s1 + $0xb4] sm:$0xf]
  %v69 = vld [vmem:[%s1 + $0xb8] sm:$0xf]
  %v70 = vld [vmem:[%s1 + $0xbc] sm:$0xf]
  %v71 = vld [vmem:[%s1 + $0xc0] sm:$0xf]
  %v72 = vld [vmem:[%s1 + $0xc4] sm:$0xf]
  %v73 = vld [vmem:[%s1 + $0xc8] sm:$0xf]
  %v74 = vld [vmem:[%s1 + $0xcc] sm:$0xf]
  %v75 = vld [vmem:[%s1 + $0xd0] sm:$0xf]
  %v76 = vld [vmem:[%s1 + $0xd4] sm:$0xf]
  %v77 = vld [vmem:[%s1 + $0xd8] sm:$0xf]
  %v78 = vld [vmem:[%s1 + $0xdc] sm:$0xf]
  %v79 = vld [vmem:[%s1 + $0xe0] sm:$0xf]
  %v80 = vld [vmem:[%s1 + $0xe4] sm:$0xf]
  %v81 = vld [vmem:[%s1 + $0xe8] sm:$0xf]
  %v82 = vld [vmem:[%s1 + $0xec] sm:$0xf]
  %v83 = vld [vmem:[%s1 + $0xf0] sm:$0xf]
  %v84 = vld [vmem:[%s1 + $0xf4] sm:$0xf]
  %v85 = vld [vmem:[%s1 + $0xf8] sm:$0xf]
  %v86 = vld [vmem:[%s1 + $0xfc] sm:$0xf]
  %v95 = vunpack.c.l.b16 %v15
  %v96 = vunpack.c.h.b16 %v15
  %v97 = vunpack.c.l.b16 %v16
  %v98 = vunpack.c.h.b16 %v16
  %v99 = vunpack.c.l.b16 %v17
  %v100 = vunpack.c.h.b16 %v17
  %v101 = vunpack.c.l.b16 %v18
  %v102 = vunpack.c.h.b16 %v18
  %v103 = vunpack.c.l.b16 %v19
  %v104 = vunpack.c.h.b16 %v19
  %v105 = vunpack.c.l.b16 %v20
  %v106 = vunpack.c.h.b16 %v20
  %v107 = vunpack.c.l.b16 %v21
  %v108 = vunpack.c.h.b16 %v21
  %v109 = vunpack.c.l.b16 %v22
  %v110 = vunpack.c.h.b16 %v22
  %v111 = vpack.c.b16 %v99, %v95
  %v112 = vpack.c.b16 %v100, %v96
  %v113 = vpack.c.b16 %v101, %v97
  %v114 = vpack.c.b16 %v102, %v98
  %v115 = vpack.c.b16 %v107, %v103
  %v116 = vpack.c.b16 %v108, %v104
  %v117 = vpack.c.b16 %v109, %v105
  %v118 = vpack.c.b16 %v110, %v106
  %v191 = vunpack.c.l.b16 %v23
  %v192 = vunpack.c.l.b16 %v24
  %v193 = vunpack.c.l.b16 %v25
  %v194 = vunpack.c.l.b16 %v26
  %v195 = vunpack.c.l.b16 %v27
  %v196 = vunpack.c.l.b16 %v28
  %v197 = vunpack.c.l.b16 %v29
  %v198 = vunpack.c.l.b16 %v30
  %v199 = vunpack.c.l.b16 %v31
  %v200 = vunpack.c.l.b16 %v32
  %v201 = vunpack.c.l.b16 %v33
  %v202 = vunpack.c.l.b16 %v34
  %v203 = vunpack.c.l.b16 %v35
  %v204 = vunpack.c.l.b16 %v36
  %v205 = vunpack.c.l.b16 %v37
  %v206 = vunpack.c.l.b16 %v38
  %v207 = vunpack.c.l.b16 %v39
  %v208 = vunpack.c.l.b16 %v40
  %v209 = vunpack.c.l.b16 %v41
  %v210 = vunpack.c.l.b16 %v42
  %v211 = vunpack.c.l.b16 %v43
  %v212 = vunpack.c.l.b16 %v44
  %v213 = vunpack.c.l.b16 %v45
  %v214 = vunpack.c.l.b16 %v46
  %v215 = vunpack.c.l.b16 %v47
  %v216 = vunpack.c.l.b16 %v48
  %v217 = vunpack.c.l.b16 %v49
  %v218 = vunpack.c.l.b16 %v50
  %v219 = vunpack.c.l.b16 %v51
  %v220 = vunpack.c.l.b16 %v52
  %v221 = vunpack.c.l.b16 %v53
  %v222 = vunpack.c.l.b16 %v54
  %v223 = vunpack.c.l.b16 %v55
  %v224 = vunpack.c.l.b16 %v56
  %v225 = vunpack.c.l.b16 %v57
  %v226 = vunpack.c.l.b16 %v58
  %v227 = vunpack.c.l.b16 %v59
  %v228 = vunpack.c.l.b16 %v60
  %v229 = vunpack.c.l.b16 %v61
  %v230 = vunpack.c.l.b16 %v62
  %v231 = vunpack.c.l.b16 %v63
  %v232 = vunpack.c.l.b16 %v64
  %v233 = vunpack.c.l.b16 %v65
  %v234 = vunpack.c.l.b16 %v66
  %v235 = vunpack.c.l.b16 %v67
  %v236 = vunpack.c.l.b16 %v68
  %v237 = vunpack.c.l.b16 %v69
  %v238 = vunpack.c.l.b16 %v70
  %v239 = vunpack.c.l.b16 %v71
  %v240 = vunpack.c.l.b16 %v72
  %v241 = vunpack.c.l.b16 %v73
  %v242 = vunpack.c.l.b16 %v74
  %v243 = vunpack.c.l.b16 %v75
  %v244 = vunpack.c.l.b16 %v76
  %v245 = vunpack.c.l.b16 %v77
  %v246 = vunpack.c.l.b16 %v78
  %v247 = vunpack.c.l.b16 %v79
  %v248 = vunpack.c.l.b16 %v80
  %v249 = vunpack.c.l.b16 %v81
  %v250 = vunpack.c.l.b16 %v82
  %v251 = vunpack.c.l.b16 %v83
  %v252 = vunpack.c.l.b16 %v84
  %v253 = vunpack.c.l.b16 %v85
  %v254 = vunpack.c.l.b16 %v86
  %v255 = vpack.c.b16 %v192, %v191
  %v256 = vpack.c.b16 %v194, %v193
  %v257 = vpack.c.b16 %v196, %v195
  %v258 = vpack.c.b16 %v198, %v197
  %v259 = vpack.c.b16 %v200, %v199
  %v260 = vpack.c.b16 %v202, %v201
  %v261 = vpack.c.b16 %v204, %v203
  %v262 = vpack.c.b16 %v206, %v205
  %v263 = vpack.c.b16 %v208, %v207
  %v264 = vpack.c.b16 %v210, %v209
  %v265 = vpack.c.b16 %v212, %v211
  %v266 = vpack.c.b16 %v214, %v213
  %v267 = vpack.c.b16 %v216, %v215
  %v268 = vpack.c.b16 %v218, %v217
  %v269 = vpack.c.b16 %v220, %v219
  %v270 = vpack.c.b16 %v222, %v221
  %v271 = vpack.c.b16 %v224, %v223
  %v272 = vpack.c.b16 %v226, %v225
  %v273 = vpack.c.b16 %v228, %v227
  %v274 = vpack.c.b16 %v230, %v229
  %v275 = vpack.c.b16 %v232, %v231
  %v276 = vpack.c.b16 %v234, %v233
  %v277 = vpack.c.b16 %v236, %v235
  %v278 = vpack.c.b16 %v238, %v237
  %v279 = vpack.c.b16 %v240, %v239
  %v280 = vpack.c.b16 %v242, %v241
  %v281 = vpack.c.b16 %v244, %v243
  %v282 = vpack.c.b16 %v246, %v245
  %v283 = vpack.c.b16 %v248, %v247
  %v284 = vpack.c.b16 %v250, %v249
  %v285 = vpack.c.b16 %v252, %v251
  %v286 = vpack.c.b16 %v254, %v253
  %319 = vmatprep.subr.bf16.mxu0 0
  %320 = vmatpush1.bf16.msra.mxu0 %v262
  %321 = vmatprep.subr.bf16.mxu0 0
  %322 = vmatpush1.bf16.msra.mxu0 %v261
  %323 = vmatprep.subr.bf16.mxu0 0
  %324 = vmatpush1.bf16.msra.mxu0 %v260
  %325 = vmatprep.subr.bf16.mxu0 0
  %326 = vmatpush1.bf16.msra.mxu0 %v259
  %327 = vmatprep.subr.bf16.mxu0 0
  %328 = vmatpush1.bf16.msra.mxu0 %v258
  %329 = vmatprep.subr.bf16.mxu0 0
  %330 = vmatpush1.bf16.msra.mxu0 %v257
  %331 = vmatprep.subr.bf16.mxu0 0
  %332 = vmatpush1.bf16.msra.mxu0 %v256
  %333 = vmatprep.subr.bf16.mxu0 0
  %334 = vmatpush1.bf16.msra.mxu0 %v255
  %335 = vmatprep.subr.bf16.mxu0 0
  %336 = vmatpush2.bf16.msra.mxu0 %v270
  %337 = vmatprep.subr.bf16.mxu0 0
  %338 = vmatpush2.bf16.msra.mxu0 %v269
  %339 = vmatprep.subr.bf16.mxu0 0
  %340 = vmatpush2.bf16.msra.mxu0 %v268
  %341 = vmatprep.subr.bf16.mxu0 0
  %342 = vmatpush2.bf16.msra.mxu0 %v267
  %343 = vmatprep.subr.bf16.mxu0 0
  %344 = vmatpush2.bf16.msra.mxu0 %v266
  %345 = vmatprep.subr.bf16.mxu0 0
  %346 = vmatpush2.bf16.msra.mxu0 %v265
  %347 = vmatprep.subr.bf16.mxu0 0
  %348 = vmatpush2.bf16.msra.mxu0 %v264
  %349 = vmatprep.subr.bf16.mxu0 0
  %350 = vmatpush2.bf16.msra.mxu0 %v263
  %351 = vmatprep.mubr.bf16.mxu0 %v112
  %352 = vmatmul.mubr.bf16.gmra.mxu0 %v111
  %v353 = vpop.f32.mrf.mxu0
  %v354 = vadd.f32 0.0, %v353
  %v355 = vpop.f32.mrf.mxu0
  %v356 = vpop.f32.mrf.mxu0
  %v357 = vadd.f32 0.0, %v356
  %v358 = vpop.f32.mrf.mxu0
  %359 = vmatprep.mubr.bf16.mxu0 %v116
  %360 = vmatmul.mubr.bf16.gmra.mxu0 %v115
  %v361 = vpop.f32.mrf.mxu0
  %v362 = vadd.f32 0.0, %v361
  %v363 = vpop.f32.mrf.mxu0
  %v364 = vpop.f32.mrf.mxu0
  %v365 = vadd.f32 0.0, %v364
  %v366 = vpop.f32.mrf.mxu0
  %367 = vdwg.mxu0
  %368 = vmatprep.subr.bf16.mxu0 0
  %369 = vmatpush1.bf16.msra.mxu0 %v278
  %370 = vmatprep.subr.bf16.mxu0 0
  %371 = vmatpush1.bf16.msra.mxu0 %v277
  %372 = vmatprep.subr.bf16.mxu0 0
  %373 = vmatpush1.bf16.msra.mxu0 %v276
  %374 = vmatprep.subr.bf16.mxu0 0
  %375 = vmatpush1.bf16.msra.mxu0 %v275
  %376 = vmatprep.subr.bf16.mxu0 0
  %377 = vmatpush1.bf16.msra.mxu0 %v274
  %378 = vmatprep.subr.bf16.mxu0 0
  %379 = vmatpush1.bf16.msra.mxu0 %v273
  %380 = vmatprep.subr.bf16.mxu0 0
  %381 = vmatpush1.bf16.msra.mxu0 %v272
  %382 = vmatprep.subr.bf16.mxu0 0
  %383 = vmatpush1.bf16.msra.mxu0 %v271
  %384 = vmatprep.subr.bf16.mxu0 0
  %385 = vmatpush2.bf16.msra.mxu0 %v286
  %386 = vmatprep.subr.bf16.mxu0 0
  %387 = vmatpush2.bf16.msra.mxu0 %v285
  %388 = vmatprep.subr.bf16.mxu0 0
  %389 = vmatpush2.bf16.msra.mxu0 %v284
  %390 = vmatprep.subr.bf16.mxu0 0
  %391 = vmatpush2.bf16.msra.mxu0 %v283
  %392 = vmatprep.subr.bf16.mxu0 0
  %393 = vmatpush2.bf16.msra.mxu0 %v282
  %394 = vmatprep.subr.bf16.mxu0 0
  %395 = vmatpush2.bf16.msra.mxu0 %v281
  %396 = vmatprep.subr.bf16.mxu0 0
  %397 = vmatpush2.bf16.msra.mxu0 %v280
  %398 = vmatprep.subr.bf16.mxu0 0
  %399 = vmatpush2.bf16.msra.mxu0 %v279
  %400 = vmatprep.mubr.bf16.mxu0 %v114
  %401 = vmatmul.mubr.bf16.gmra.mxu0 %v113
  %v402 = vpop.f32.mrf.mxu0
  %v403 = vadd.f32 %v354, %v402
  %v404 = vpop.f32.mrf.mxu0
  %v405 = vpop.f32.mrf.mxu0
  %v406 = vadd.f32 %v357, %v405
  %v407 = vpop.f32.mrf.mxu0
  %408 = vmatprep.mubr.bf16.mxu0 %v118
  %409 = vmatmul.mubr.bf16.gmra.mxu0 %v117
  %v410 = vpop.f32.mrf.mxu0
  %v411 = vadd.f32 %v362, %v410
  %v412 = vpop.f32.mrf.mxu0
  %v413 = vpop.f32.mrf.mxu0
  %v414 = vadd.f32 %v365, %v413
  %v415 = vpop.f32.mrf.mxu0
  %416 = vdwg.mxu0
  %417 = vst [vmem:[%s3] sm:$0xff] 0.0
  %418 = vst [vmem:[%s4] sm:$0xff] 0.0
  %v419 = vadd.f32 %v403, %v406
  %v420 = vadd.f32 %v419, %v411
  %vm421 = vcmask 1045504
  %v422 = vsel %vm421, %v414, 0.0
  %v423 = vadd.f32 %v420, %v422
  %v424 = vrot.slane %v423, 4
  %v425 = vadd.f32 %v423, %v424
  %v426 = vrot.slane %v425, 2
  %v427 = vadd.f32 %v425, %v426
  %v428 = vrot.slane %v427, 1
  %v429 = vadd.f32 %v427, %v428
  %430 = vst [vmem:[%s3] sm:$0x1] %v429
  %v431 = vmul.f32 %v403, %v403
  %v432 = vmul.f32 %v406, %v406
  %v433 = vmul.f32 %v411, %v411
  %v434 = vmul.f32 %v414, %v414
  %v435 = vadd.f32 %v431, %v432
  %v436 = vadd.f32 %v435, %v433
  %v437 = vsel %vm421, %v434, 0.0
  %v438 = vadd.f32 %v436, %v437
  %v439 = vrot.slane %v438, 4
  %v440 = vadd.f32 %v438, %v439
  %v441 = vrot.slane %v440, 2
  %v442 = vadd.f32 %v440, %v441
  %v443 = vrot.slane %v442, 1
  %v444 = vadd.f32 %v442, %v443
  %445 = vst [vmem:[%s4] sm:$0x1] %v444
  %v446 = vpack.c.bf16 %v406, %v403
  %v447 = vpack.c.bf16 %v414, %v411
  %v450 = vunpack.c.l.b16 %v446
  %v451 = vunpack.c.h.b16 %v446
  %v452 = vunpack.c.l.b16 %v447
  %v453 = vunpack.c.h.b16 %v447
  %v454 = vpack.c.b16 %v450, %v450
  %v455 = vpack.c.b16 %v451, %v451
  %v456 = vpack.c.b16 %v452, %v452
  %v457 = vpack.c.b16 %v453, %v453
  %462 = vst [vmem:[%s2] sm:$0xf] %v454
  %463 = vst [vmem:[%s2 + $0x4] sm:$0xf] %v455
  %464 = vst [vmem:[%s2 + $0x8] sm:$0xf] %v456
  %465 = vst [vmem:[%s2 + $0xc] sm:$0x7] %v457
  // Predicated region
  $region10: #{_lambda_.13} parent=0 // pred_check
    _
  $region11: #{_lambda_.13} parent=0 // pred_check_branch
    %467 = sbr.rel (0) target = $region13
  $region12: #{_lambda_.13} parent=0 // pred_region
    _
  $region13: #{_lambda_.13} parent=0 // pred_fallthru
    _
  // Predicated region
  $region14: #{_lambda_.13} parent=0 // pred_check
    _
  $region15: #{_lambda_.13} parent=0 // pred_check_branch
    %469 = sbr.rel (0) target = $region17
  $region16: #{_lambda_.13} parent=0 // pred_region
    _
  $region17: #{_lambda_.13} parent=0 // pred_fallthru
    _
  // Predicated region
  $region18: #{_lambda_.13} parent=0 // pred_check
    _
  $region19: #{_lambda_.13} parent=0 // pred_check_branch
    %471 = sbr.rel (0) target = $region21
  $region20: #{_lambda_.13} parent=0 // pred_region
    _
  $region21: #{_lambda_.13} parent=0 // pred_fallthru
    _
  // Predicated region
  $region22: #{_lambda_.13} parent=0 // pred_check
    _
  $region23: #{_lambda_.13} parent=0 // pred_check_branch
    %473 = sbr.rel (0) target = $region25
  $region24: #{_lambda_.13} parent=0 // pred_region
    _
  $region25: #{_lambda_.13} parent=0 // pred_fallthru
    _
  // Predicated region
  $region26: #{_lambda_.13} parent=0 // pred_check
    _
  $region27: #{_lambda_.13} parent=0 // pred_check_branch
    %475 = sbr.rel (0) target = $region29
  $region28: #{_lambda_.13} parent=0 // pred_region
    _
  $region29: #{_lambda_.13} parent=0 // pred_fallthru
    _
  // Predicated region
  $region30: #{_lambda_.13} parent=0 // pred_check
    _
  $region31: #{_lambda_.13} parent=0 // pred_check_branch
    %477 = sbr.rel (0) target = $region33
  $region32: #{_lambda_.13} parent=0 // pred_region
    _
  $region33: #{_lambda_.13} parent=0 // pred_fallthru
    _

// kernel: _lambda_.15
$region0: #{_lambda_.15}
  #allocation0 [shape = 'u32[]', space=smem, size = 0x4, offset = 0x4, fixed_abs, tag = 'smem constant byte address 0x4 - core index']
  #allocation1 [shape = 'u32[144,128]{1,0:T(1,128)}', space=vmem, size = 0x12000, scoped, tag = 'internal scratch']
  %s0 = inlined_call_operand.vmem [shape: bf16[32,1024], index: 0, kind: input, shape index: {}]
  %s1 = inlined_call_operand.vmem [shape: bf16[1024,128], index: 1, kind: input, shape index: {}]
  %s2 = inlined_call_operand.vmem [shape: f32[1,128], index: 2, kind: input, shape index: {}]
  %s3 = inlined_call_operand.vmem [shape: f32[32,128], index: 3, kind: output, shape index: {}]
  %s4 = sld [smem:[#allocation0]]
  $region22: #{_lambda_.15} parent=0
    _
  %s6 = ssub.s32 1, %s4
  %s7 = scalar_select 0, %s6, %s4
  // Predicated region
  $region2: #{_lambda_.15} parent=0 // pred_check
    _
  $region3: #{_lambda_.15} parent=0 // pred_check_branch
    %9 = sbr.rel (0) target = $region5
  $region4: #{_lambda_.15} parent=0 // pred_region
    _
  $region5: #{_lambda_.15} parent=0 // pred_fallthru
    _
  // Predicated region
  $region6: #{_lambda_.15} parent=0 // pred_check
    _
  $region7: #{_lambda_.15} parent=0 // pred_check_branch
    %11 = sbr.rel (0) target = $region9
  $region8: #{_lambda_.15} parent=0 // pred_region
    _
  $region9: #{_lambda_.15} parent=0 // pred_fallthru
    _
  // Predicated region
  $region10: #{_lambda_.15} parent=0 // pred_check
    _
  $region11: #{_lambda_.15} parent=0 // pred_check_branch
    %13 = sbr.rel (0) target = $region13
  $region12: #{_lambda_.15} parent=0 // pred_region
    _
  $region13: #{_lambda_.15} parent=0 // pred_fallthru
    _
  %v15 = vld [vmem:[%s0] sm:$0xff]
  %v16 = vld [vmem:[%s0 + $0x8] sm:$0xff]
  %v17 = vld [vmem:[%s0 + $0x10] sm:$0xff]
  %v18 = vld [vmem:[%s0 + $0x18] sm:$0xff]
  %v19 = vld [vmem:[%s0 + $0x20] sm:$0xff]
  %v20 = vld [vmem:[%s0 + $0x28] sm:$0xff]
  %v21 = vld [vmem:[%s0 + $0x30] sm:$0xff]
  %v22 = vld [vmem:[%s0 + $0x38] sm:$0xff]
  %v23 = vld [vmem:[%s0 + $0x40] sm:$0xff]
  %v24 = vld [vmem:[%s0 + $0x48] sm:$0xff]
  %v25 = vld [vmem:[%s0 + $0x50] sm:$0xff]
  %v26 = vld [vmem:[%s0 + $0x58] sm:$0xff]
  %v27 = vld [vmem:[%s0 + $0x60] sm:$0xff]
  %v28 = vld [vmem:[%s0 + $0x68] sm:$0xff]
  %v29 = vld [vmem:[%s0 + $0x70] sm:$0xff]
  %v30 = vld [vmem:[%s0 + $0x78] sm:$0xff]
  %v31 = vld [vmem:[%s1] sm:$0xf]
  %v32 = vld [vmem:[%s1 + $0x4] sm:$0xf]
  %v33 = vld [vmem:[%s1 + $0x8] sm:$0xf]
  %v34 = vld [vmem:[%s1 + $0xc] sm:$0xf]
  %v35 = vld [vmem:[%s1 + $0x10] sm:$0xf]
  %v36 = vld [vmem:[%s1 + $0x14] sm:$0xf]
  %v37 = vld [vmem:[%s1 + $0x18] sm:$0xf]
  %v38 = vld [vmem:[%s1 + $0x1c] sm:$0xf]
  %v39 = vld [vmem:[%s1 + $0x20] sm:$0xf]
  %v40 = vld [vmem:[%s1 + $0x24] sm:$0xf]
  %v41 = vld [vmem:[%s1 + $0x28] sm:$0xf]
  %v42 = vld [vmem:[%s1 + $0x2c] sm:$0xf]
  %v43 = vld [vmem:[%s1 + $0x30] sm:$0xf]
  %v44 = vld [vmem:[%s1 + $0x34] sm:$0xf]
  %v45 = vld [vmem:[%s1 + $0x38] sm:$0xf]
  %v46 = vld [vmem:[%s1 + $0x3c] sm:$0xf]
  %v47 = vld [vmem:[%s1 + $0x40] sm:$0xf]
  %v48 = vld [vmem:[%s1 + $0x44] sm:$0xf]
  %v49 = vld [vmem:[%s1 + $0x48] sm:$0xf]
  %v50 = vld [vmem:[%s1 + $0x4c] sm:$0xf]
  %v51 = vld [vmem:[%s1 + $0x50] sm:$0xf]
  %v52 = vld [vmem:[%s1 + $0x54] sm:$0xf]
  %v53 = vld [vmem:[%s1 + $0x58] sm:$0xf]
  %v54 = vld [vmem:[%s1 + $0x5c] sm:$0xf]
  %v55 = vld [vmem:[%s1 + $0x60] sm:$0xf]
  %v56 = vld [vmem:[%s1 + $0x64] sm:$0xf]
  %v57 = vld [vmem:[%s1 + $0x68] sm:$0xf]
  %v58 = vld [vmem:[%s1 + $0x6c] sm:$0xf]
  %v59 = vld [vmem:[%s1 + $0x70] sm:$0xf]
  %v60 = vld [vmem:[%s1 + $0x74] sm:$0xf]
  %v61 = vld [vmem:[%s1 + $0x78] sm:$0xf]
  %v62 = vld [vmem:[%s1 + $0x7c] sm:$0xf]
  %v63 = vld [vmem:[%s1 + $0x80] sm:$0xf]
  %v64 = vld [vmem:[%s1 + $0x84] sm:$0xf]
  %v65 = vld [vmem:[%s1 + $0x88] sm:$0xf]
  %v66 = vld [vmem:[%s1 + $0x8c] sm:$0xf]
  %v67 = vld [vmem:[%s1 + $0x90] sm:$0xf]
  %v68 = vld [vmem:[%s1 + $0x94] sm:$0xf]
  %v69 = vld [vmem:[%s1 + $0x98] sm:$0xf]
  %v70 = vld [vmem:[%s1 + $0x9c] sm:$0xf]
  %v71 = vld [vmem:[%s1 + $0xa0] sm:$0xf]
  %v72 = vld [vmem:[%s1 + $0xa4] sm:$0xf]
  %v73 = vld [vmem:[%s1 + $0xa8] sm:$0xf]
  %v74 = vld [vmem:[%s1 + $0xac] sm:$0xf]
  %v75 = vld [vmem:[%s1 + $0xb0] sm:$0xf]
  %v76 = vld [vmem:[%s1 + $0xb4] sm:$0xf]
  %v77 = vld [vmem:[%s1 + $0xb8] sm:$0xf]
  %v78 = vld [vmem:[%s1 + $0xbc] sm:$0xf]
  %v79 = vld [vmem:[%s1 + $0xc0] sm:$0xf]
  %v80 = vld [vmem:[%s1 + $0xc4] sm:$0xf]
  %v81 = vld [vmem:[%s1 + $0xc8] sm:$0xf]
  %v82 = vld [vmem:[%s1 + $0xcc] sm:$0xf]
  %v83 = vld [vmem:[%s1 + $0xd0] sm:$0xf]
  %v84 = vld [vmem:[%s1 + $0xd4] sm:$0xf]
  %v85 = vld [vmem:[%s1 + $0xd8] sm:$0xf]
  %v86 = vld [vmem:[%s1 + $0xdc] sm:$0xf]
  %v87 = vld [vmem:[%s1 + $0xe0] sm:$0xf]
  %v88 = vld [vmem:[%s1 + $0xe4] sm:$0xf]
  %v89 = vld [vmem:[%s1 + $0xe8] sm:$0xf]
  %v90 = vld [vmem:[%s1 + $0xec] sm:$0xf]
  %v91 = vld [vmem:[%s1 + $0xf0] sm:$0xf]
  %v92 = vld [vmem:[%s1 + $0xf4] sm:$0xf]
  %v93 = vld [vmem:[%s1 + $0xf8] sm:$0xf]
  %v94 = vld [vmem:[%s1 + $0xfc] sm:$0xf]
  %v95 = vld [vmem:[%s1 + $0x100] sm:$0xf]
  %v96 = vld [vmem:[%s1 + $0x104] sm:$0xf]
  %v97 = vld [vmem:[%s1 + $0x108] sm:$0xf]
  %v98 = vld [vmem:[%s1 + $0x10c] sm:$0xf]
  %v99 = vld [vmem:[%s1 + $0x110] sm:$0xf]
  %v100 = vld [vmem:[%s1 + $0x114] sm:$0xf]
  %v101 = vld [vmem:[%s1 + $0x118] sm:$0xf]
  %v102 = vld [vmem:[%s1 + $0x11c] sm:$0xf]
  %v103 = vld [vmem:[%s1 + $0x120] sm:$0xf]
  %v104 = vld [vmem:[%s1 + $0x124] sm:$0xf]
  %v105 = vld [vmem:[%s1 + $0x128] sm:$0xf]
  %v106 = vld [vmem:[%s1 + $0x12c] sm:$0xf]
  %v107 = vld [vmem:[%s1 + $0x130] sm:$0xf]
  %v108 = vld [vmem:[%s1 + $0x134] sm:$0xf]
  %v109 = vld [vmem:[%s1 + $0x138] sm:$0xf]
  %v110 = vld [vmem:[%s1 + $0x13c] sm:$0xf]
  %v111 = vld [vmem:[%s1 + $0x140] sm:$0xf]
  %v112 = vld [vmem:[%s1 + $0x144] sm:$0xf]
  %v113 = vld [vmem:[%s1 + $0x148] sm:$0xf]
  %v114 = vld [vmem:[%s1 + $0x14c] sm:$0xf]
  %v115 = vld [vmem:[%s1 + $0x150] sm:$0xf]
  %v116 = vld [vmem:[%s1 + $0x154] sm:$0xf]
  %v117 = vld [vmem:[%s1 + $0x158] sm:$0xf]
  %v118 = vld [vmem:[%s1 + $0x15c] sm:$0xf]
  %v119 = vld [vmem:[%s1 + $0x160] sm:$0xf]
  %v120 = vld [vmem:[%s1 + $0x164] sm:$0xf]
  %v121 = vld [vmem:[%s1 + $0x168] sm:$0xf]
  %v122 = vld [vmem:[%s1 + $0x16c] sm:$0xf]
  %v123 = vld [vmem:[%s1 + $0x170] sm:$0xf]
  %v124 = vld [vmem:[%s1 + $0x174] sm:$0xf]
  %v125 = vld [vmem:[%s1 + $0x178] sm:$0xf]
  %v126 = vld [vmem:[%s1 + $0x17c] sm:$0xf]
  %v127 = vld [vmem:[%s1 + $0x180] sm:$0xf]
  %v128 = vld [vmem:[%s1 + $0x184] sm:$0xf]
  %v129 = vld [vmem:[%s1 + $0x188] sm:$0xf]
  %v130 = vld [vmem:[%s1 + $0x18c] sm:$0xf]
  %v131 = vld [vmem:[%s1 + $0x190] sm:$0xf]
  %v132 = vld [vmem:[%s1 + $0x194] sm:$0xf]
  %v133 = vld [vmem:[%s1 + $0x198] sm:$0xf]
  %v134 = vld [vmem:[%s1 + $0x19c] sm:$0xf]
  %v135 = vld [vmem:[%s1 + $0x1a0] sm:$0xf]
  %v136 = vld [vmem:[%s1 + $0x1a4] sm:$0xf]
  %v137 = vld [vmem:[%s1 + $0x1a8] sm:$0xf]
  %v138 = vld [vmem:[%s1 + $0x1ac] sm:$0xf]
  %v139 = vld [vmem:[%s1 + $0x1b0] sm:$0xf]
  %v140 = vld [vmem:[%s1 + $0x1b4] sm:$0xf]
  %v141 = vld [vmem:[%s1 + $0x1b8] sm:$0xf]
  %v142 = vld [vmem:[%s1 + $0x1bc] sm:$0xf]
  %v143 = vld [vmem:[%s1 + $0x1c0] sm:$0xf]
  %v144 = vld [vmem:[%s1 + $0x1c4] sm:$0xf]
  %v145 = vld [vmem:[%s1 + $0x1c8] sm:$0xf]
  %v146 = vld [vmem:[%s1 + $0x1cc] sm:$0xf]
  %v147 = vld [vmem:[%s1 + $0x1d0] sm:$0xf]
  %v148 = vld [vmem:[%s1 + $0x1d4] sm:$0xf]
  %v149 = vld [vmem:[%s1 + $0x1d8] sm:$0xf]
  %v150 = vld [vmem:[%s1 + $0x1dc] sm:$0xf]
  %v151 = vld [vmem:[%s1 + $0x1e0] sm:$0xf]
  %v152 = vld [vmem:[%s1 + $0x1e4] sm:$0xf]
  %v153 = vld [vmem:[%s1 + $0x1e8] sm:$0xf]
  %v154 = vld [vmem:[%s1 + $0x1ec] sm:$0xf]
  %v155 = vld [vmem:[%s1 + $0x1f0] sm:$0xf]
  %v156 = vld [vmem:[%s1 + $0x1f4] sm:$0xf]
  %v157 = vld [vmem:[%s1 + $0x1f8] sm:$0xf]
  %v158 = vld [vmem:[%s1 + $0x1fc] sm:$0xf]
  %v159 = vld [vmem:[%s2] sm:$0x1]
  %v161 = vlaneseq
  %v162 = vshrl.u32 %v161, 7
  %v163 = vsub.s32 0, %v162
  %v164 = vrot.slane %v159, %v163
  %v182 = vunpack.c.l.b16 %v15
  %v183 = vunpack.c.h.b16 %v15
  %v184 = vunpack.c.l.b16 %v16
  %v185 = vunpack.c.h.b16 %v16
  %v186 = vunpack.c.l.b16 %v17
  %v187 = vunpack.c.h.b16 %v17
  %v188 = vunpack.c.l.b16 %v18
  %v189 = vunpack.c.h.b16 %v18
  %v190 = vunpack.c.l.b16 %v19
  %v191 = vunpack.c.h.b16 %v19
  %v192 = vunpack.c.l.b16 %v20
  %v193 = vunpack.c.h.b16 %v20
  %v194 = vunpack.c.l.b16 %v21
  %v195 = vunpack.c.h.b16 %v21
  %v196 = vunpack.c.l.b16 %v22
  %v197 = vunpack.c.h.b16 %v22
  %v198 = vunpack.c.l.b16 %v23
  %v199 = vunpack.c.h.b16 %v23
  %v200 = vunpack.c.l.b16 %v24
  %v201 = vunpack.c.h.b16 %v24
  %v202 = vunpack.c.l.b16 %v25
  %v203 = vunpack.c.h.b16 %v25
  %v204 = vunpack.c.l.b16 %v26
  %v205 = vunpack.c.h.b16 %v26
  %v206 = vunpack.c.l.b16 %v27
  %v207 = vunpack.c.h.b16 %v27
  %v208 = vunpack.c.l.b16 %v28
  %v209 = vunpack.c.h.b16 %v28
  %v210 = vunpack.c.l.b16 %v29
  %v211 = vunpack.c.h.b16 %v29
  %v212 = vunpack.c.l.b16 %v30
  %v213 = vunpack.c.h.b16 %v30
  %v214 = vpack.c.b16 %v190, %v182
  %v215 = vpack.c.b16 %v191, %v183
  %v216 = vpack.c.b16 %v192, %v184
  %v217 = vpack.c.b16 %v193, %v185
  %v218 = vpack.c.b16 %v194, %v186
  %v219 = vpack.c.b16 %v195, %v187
  %v220 = vpack.c.b16 %v196, %v188
  %v221 = vpack.c.b16 %v197, %v189
  %v222 = vpack.c.b16 %v206, %v198
  %v223 = vpack.c.b16 %v207, %v199
  %v224 = vpack.c.b16 %v208, %v200
  %v225 = vpack.c.b16 %v209, %v201
  %v226 = vpack.c.b16 %v210, %v202
  %v227 = vpack.c.b16 %v211, %v203
  %v228 = vpack.c.b16 %v212, %v204
  %v229 = vpack.c.b16 %v213, %v205
  %v374 = vunpack.c.l.b16 %v31
  %v375 = vunpack.c.l.b16 %v32
  %v376 = vunpack.c.l.b16 %v33
  %v377 = vunpack.c.l.b16 %v34
  %v378 = vunpack.c.l.b16 %v35
  %v379 = vunpack.c.l.b16 %v36
  %v380 = vunpack.c.l.b16 %v37
  %v381 = vunpack.c.l.b16 %v38
  %v382 = vunpack.c.l.b16 %v39
  %v383 = vunpack.c.l.b16 %v40
  %v384 = vunpack.c.l.b16 %v41
  %v385 = vunpack.c.l.b16 %v42
  %v386 = vunpack.c.l.b16 %v43
  %v387 = vunpack.c.l.b16 %v44
  %v388 = vunpack.c.l.b16 %v45
  %v389 = vunpack.c.l.b16 %v46
  %v390 = vunpack.c.l.b16 %v47
  %v391 = vunpack.c.l.b16 %v48
  %v392 = vunpack.c.l.b16 %v49
  %v393 = vunpack.c.l.b16 %v50
  %v394 = vunpack.c.l.b16 %v51
  %v395 = vunpack.c.l.b16 %v52
  %v396 = vunpack.c.l.b16 %v53
  %v397 = vunpack.c.l.b16 %v54
  %v398 = vunpack.c.l.b16 %v55
  %v399 = vunpack.c.l.b16 %v56
  %v400 = vunpack.c.l.b16 %v57
  %v401 = vunpack.c.l.b16 %v58
  %v402 = vunpack.c.l.b16 %v59
  %v403 = vunpack.c.l.b16 %v60
  %v404 = vunpack.c.l.b16 %v61
  %v405 = vunpack.c.l.b16 %v62
  %v406 = vunpack.c.l.b16 %v63
  %v407 = vunpack.c.l.b16 %v64
  %v408 = vunpack.c.l.b16 %v65
  %v409 = vunpack.c.l.b16 %v66
  %v410 = vunpack.c.l.b16 %v67
  %v411 = vunpack.c.l.b16 %v68
  %v412 = vunpack.c.l.b16 %v69
  %v413 = vunpack.c.l.b16 %v70
  %v414 = vunpack.c.l.b16 %v71
  %v415 = vunpack.c.l.b16 %v72
  %v416 = vunpack.c.l.b16 %v73
  %v417 = vunpack.c.l.b16 %v74
  %v418 = vunpack.c.l.b16 %v75
  %v419 = vunpack.c.l.b16 %v76
  %v420 = vunpack.c.l.b16 %v77
  %v421 = vunpack.c.l.b16 %v78
  %v422 = vunpack.c.l.b16 %v79
  %v423 = vunpack.c.l.b16 %v80
  %v424 = vunpack.c.l.b16 %v81
  %v425 = vunpack.c.l.b16 %v82
  %v426 = vunpack.c.l.b16 %v83
  %v427 = vunpack.c.l.b16 %v84
  %v428 = vunpack.c.l.b16 %v85
  %v429 = vunpack.c.l.b16 %v86
  %v430 = vunpack.c.l.b16 %v87
  %v431 = vunpack.c.l.b16 %v88
  %v432 = vunpack.c.l.b16 %v89
  %v433 = vunpack.c.l.b16 %v90
  %v434 = vunpack.c.l.b16 %v91
  %v435 = vunpack.c.l.b16 %v92
  %v436 = vunpack.c.l.b16 %v93
  %v437 = vunpack.c.l.b16 %v94
  %v438 = vunpack.c.l.b16 %v95
  %v439 = vunpack.c.l.b16 %v96
  %v440 = vunpack.c.l.b16 %v97
  %v441 = vunpack.c.l.b16 %v98
  %v442 = vunpack.c.l.b16 %v99
  %v443 = vunpack.c.l.b16 %v100
  %v444 = vunpack.c.l.b16 %v101
  %v445 = vunpack.c.l.b16 %v102
  %v446 = vunpack.c.l.b16 %v103
  %v447 = vunpack.c.l.b16 %v104
  %v448 = vunpack.c.l.b16 %v105
  %v449 = vunpack.c.l.b16 %v106
  %v450 = vunpack.c.l.b16 %v107
  %v451 = vunpack.c.l.b16 %v108
  %v452 = vunpack.c.l.b16 %v109
  %v453 = vunpack.c.l.b16 %v110
  %v454 = vunpack.c.l.b16 %v111
  %v455 = vunpack.c.l.b16 %v112
  %v456 = vunpack.c.l.b16 %v113
  %v457 = vunpack.c.l.b16 %v114
  %v458 = vunpack.c.l.b16 %v115
  %v459 = vunpack.c.l.b16 %v116
  %v460 = vunpack.c.l.b16 %v117
  %v461 = vunpack.c.l.b16 %v118
  %v462 = vunpack.c.l.b16 %v119
  %v463 = vunpack.c.l.b16 %v120
  %v464 = vunpack.c.l.b16 %v121
  %v465 = vunpack.c.l.b16 %v122
  %v466 = vunpack.c.l.b16 %v123
  %v467 = vunpack.c.l.b16 %v124
  %v468 = vunpack.c.l.b16 %v125
  %v469 = vunpack.c.l.b16 %v126
  %v470 = vunpack.c.l.b16 %v127
  %v471 = vunpack.c.l.b16 %v128
  %v472 = vunpack.c.l.b16 %v129
  %v473 = vunpack.c.l.b16 %v130
  %v474 = vunpack.c.l.b16 %v131
  %v475 = vunpack.c.l.b16 %v132
  %v476 = vunpack.c.l.b16 %v133
  %v477 = vunpack.c.l.b16 %v134
  %v478 = vunpack.c.l.b16 %v135
  %v479 = vunpack.c.l.b16 %v136
  %v480 = vunpack.c.l.b16 %v137
  %v481 = vunpack.c.l.b16 %v138
  %v482 = vunpack.c.l.b16 %v139
  %v483 = vunpack.c.l.b16 %v140
  %v484 = vunpack.c.l.b16 %v141
  %v485 = vunpack.c.l.b16 %v142
  %v486 = vunpack.c.l.b16 %v143
  %v487 = vunpack.c.l.b16 %v144
  %v488 = vunpack.c.l.b16 %v145
  %v489 = vunpack.c.l.b16 %v146
  %v490 = vunpack.c.l.b16 %v147
  %v491 = vunpack.c.l.b16 %v148
  %v492 = vunpack.c.l.b16 %v149
  %v493 = vunpack.c.l.b16 %v150
  %v494 = vunpack.c.l.b16 %v151
  %v495 = vunpack.c.l.b16 %v152
  %v496 = vunpack.c.l.b16 %v153
  %v497 = vunpack.c.l.b16 %v154
  %v498 = vunpack.c.l.b16 %v155
  %v499 = vunpack.c.l.b16 %v156
  %v500 = vunpack.c.l.b16 %v157
  %v501 = vunpack.c.l.b16 %v158
  %v502 = vpack.c.b16 %v375, %v374
  %v503 = vpack.c.b16 %v377, %v376
  %v504 = vpack.c.b16 %v379, %v378
  %v505 = vpack.c.b16 %v381, %v380
  %v506 = vpack.c.b16 %v383, %v382
  %v507 = vpack.c.b16 %v385, %v384
  %v508 = vpack.c.b16 %v387, %v386
  %v509 = vpack.c.b16 %v389, %v388
  %v510 = vpack.c.b16 %v391, %v390
  %v511 = vpack.c.b16 %v393, %v392
  %v512 = vpack.c.b16 %v395, %v394
  %v513 = vpack.c.b16 %v397, %v396
  %v514 = vpack.c.b16 %v399, %v398
  %v515 = vpack.c.b16 %v401, %v400
  %v516 = vpack.c.b16 %v403, %v402
  %v517 = vpack.c.b16 %v405, %v404
  %v518 = vpack.c.b16 %v407, %v406
  %v519 = vpack.c.b16 %v409, %v408
  %v520 = vpack.c.b16 %v411, %v410
  %v521 = vpack.c.b16 %v413, %v412
  %v522 = vpack.c.b16 %v415, %v414
  %v523 = vpack.c.b16 %v417, %v416
  %v524 = vpack.c.b16 %v419, %v418
  %v525 = vpack.c.b16 %v421, %v420
  %v526 = vpack.c.b16 %v423, %v422
  %v527 = vpack.c.b16 %v425, %v424
  %v528 = vpack.c.b16 %v427, %v426
  %v529 = vpack.c.b16 %v429, %v428
  %v530 = vpack.c.b16 %v431, %v430
  %v531 = vpack.c.b16 %v433, %v432
  %v532 = vpack.c.b16 %v435, %v434
  %v533 = vpack.c.b16 %v437, %v436
  %v534 = vpack.c.b16 %v439, %v438
  %v535 = vpack.c.b16 %v441, %v440
  %v536 = vpack.c.b16 %v443, %v442
  %v537 = vpack.c.b16 %v445, %v444
  %v538 = vpack.c.b16 %v447, %v446
  %v539 = vpack.c.b16 %v449, %v448
  %v540 = vpack.c.b16 %v451, %v450
  %v541 = vpack.c.b16 %v453, %v452
  %v542 = vpack.c.b16 %v455, %v454
  %v543 = vpack.c.b16 %v457, %v456
  %v544 = vpack.c.b16 %v459, %v458
  %v545 = vpack.c.b16 %v461, %v460
  %v546 = vpack.c.b16 %v463, %v462
  %v547 = vpack.c.b16 %v465, %v464
  %v548 = vpack.c.b16 %v467, %v466
  %v549 = vpack.c.b16 %v469, %v468
  %v550 = vpack.c.b16 %v471, %v470
  %v551 = vpack.c.b16 %v473, %v472
  %v552 = vpack.c.b16 %v475, %v474
  %v553 = vpack.c.b16 %v477, %v476
  %v554 = vpack.c.b16 %v479, %v478
  %v555 = vpack.c.b16 %v481, %v480
  %v556 = vpack.c.b16 %v483, %v482
  %v557 = vpack.c.b16 %v485, %v484
  %v558 = vpack.c.b16 %v487, %v486
  %v559 = vpack.c.b16 %v489, %v488
  %v560 = vpack.c.b16 %v491, %v490
  %v561 = vpack.c.b16 %v493, %v492
  %v562 = vpack.c.b16 %v495, %v494
  %v563 = vpack.c.b16 %v497, %v496
  %v564 = vpack.c.b16 %v499, %v498
  %v565 = vpack.c.b16 %v501, %v500
  %630 = vmatprep.subr.bf16.mxu0 0
  %631 = vmatpush1.bf16.msra.mxu0 %v509
  %632 = vmatprep.subr.bf16.mxu0 0
  %633 = vmatpush1.bf16.msra.mxu0 %v508
  %634 = vmatprep.subr.bf16.mxu0 0
  %635 = vmatpush1.bf16.msra.mxu0 %v507
  %636 = vmatprep.subr.bf16.mxu0 0
  %637 = vmatpush1.bf16.msra.mxu0 %v506
  %638 = vmatprep.subr.bf16.mxu0 0
  %639 = vmatpush1.bf16.msra.mxu0 %v505
  %640 = vmatprep.subr.bf16.mxu0 0
  %641 = vmatpush1.bf16.msra.mxu0 %v504
  %642 = vmatprep.subr.bf16.mxu0 0
  %643 = vmatpush1.bf16.msra.mxu0 %v503
  %644 = vmatprep.subr.bf16.mxu0 0
  %645 = vmatpush1.bf16.msra.mxu0 %v502
  %646 = vmatprep.subr.bf16.mxu0 0
  %647 = vmatpush2.bf16.msra.mxu0 %v517
  %648 = vmatprep.subr.bf16.mxu0 0
  %649 = vmatpush2.bf16.msra.mxu0 %v516
  %650 = vmatprep.subr.bf16.mxu0 0
  %651 = vmatpush2.bf16.msra.mxu0 %v515
  %652 = vmatprep.subr.bf16.mxu0 0
  %653 = vmatpush2.bf16.msra.mxu0 %v514
  %654 = vmatprep.subr.bf16.mxu0 0
  %655 = vmatpush2.bf16.msra.mxu0 %v513
  %656 = vmatprep.subr.bf16.mxu0 0
  %657 = vmatpush2.bf16.msra.mxu0 %v512
  %658 = vmatprep.subr.bf16.mxu0 0
  %659 = vmatpush2.bf16.msra.mxu0 %v511
  %660 = vmatprep.subr.bf16.mxu0 0
  %661 = vmatpush2.bf16.msra.mxu0 %v510
  %662 = vmatprep.mubr.bf16.mxu0 %v215
  %663 = vmatmul.mubr.bf16.gmra.mxu0 %v214
  %v664 = vpop.f32.mrf.mxu0
  %v665 = vadd.f32 %v164, %v664
  %v666 = vpop.f32.mrf.mxu0
  %v667 = vpop.f32.mrf.mxu0
  %v668 = vadd.f32 %v164, %v667
  %v669 = vpop.f32.mrf.mxu0
  %670 = vmatprep.mubr.bf16.mxu0 %v223
  %671 = vmatmul.mubr.bf16.gmra.mxu0 %v222
  %v672 = vpop.f32.mrf.mxu0
  %v673 = vadd.f32 %v164, %v672
  %v674 = vpop.f32.mrf.mxu0
  %v675 = vpop.f32.mrf.mxu0
  %v676 = vadd.f32 %v164, %v675
  %v677 = vpop.f32.mrf.mxu0
  %678 = vdwg.mxu0
  %679 = vmatprep.subr.bf16.mxu0 0
  %680 = vmatpush1.bf16.msra.mxu0 %v525
  %681 = vmatprep.subr.bf16.mxu0 0
  %682 = vmatpush1.bf16.msra.mxu0 %v524
  %683 = vmatprep.subr.bf16.mxu0 0
  %684 = vmatpush1.bf16.msra.mxu0 %v523
  %685 = vmatprep.subr.bf16.mxu0 0
  %686 = vmatpush1.bf16.msra.mxu0 %v522
  %687 = vmatprep.subr.bf16.mxu0 0
  %688 = vmatpush1.bf16.msra.mxu0 %v521
  %689 = vmatprep.subr.bf16.mxu0 0
  %690 = vmatpush1.bf16.msra.mxu0 %v520
  %691 = vmatprep.subr.bf16.mxu0 0
  %692 = vmatpush1.bf16.msra.mxu0 %v519
  %693 = vmatprep.subr.bf16.mxu0 0
  %694 = vmatpush1.bf16.msra.mxu0 %v518
  %695 = vmatprep.subr.bf16.mxu0 0
  %696 = vmatpush2.bf16.msra.mxu0 %v533
  %697 = vmatprep.subr.bf16.mxu0 0
  %698 = vmatpush2.bf16.msra.mxu0 %v532
  %699 = vmatprep.subr.bf16.mxu0 0
  %700 = vmatpush2.bf16.msra.mxu0 %v531
  %701 = vmatprep.subr.bf16.mxu0 0
  %702 = vmatpush2.bf16.msra.mxu0 %v530
  %703 = vmatprep.subr.bf16.mxu0 0
  %704 = vmatpush2.bf16.msra.mxu0 %v529
  %705 = vmatprep.subr.bf16.mxu0 0
  %706 = vmatpush2.bf16.msra.mxu0 %v528
  %707 = vmatprep.subr.bf16.mxu0 0
  %708 = vmatpush2.bf16.msra.mxu0 %v527
  %709 = vmatprep.subr.bf16.mxu0 0
  %710 = vmatpush2.bf16.msra.mxu0 %v526
  %711 = vmatprep.mubr.bf16.mxu0 %v217
  %712 = vmatmul.mubr.bf16.gmra.mxu0 %v216
  %v713 = vpop.f32.mrf.mxu0
  %v714 = vadd.f32 %v665, %v713
  %v715 = vpop.f32.mrf.mxu0
  %v716 = vpop.f32.mrf.mxu0
  %v717 = vadd.f32 %v668, %v716
  %v718 = vpop.f32.mrf.mxu0
  %719 = vmatprep.mubr.bf16.mxu0 %v225
  %720 = vmatmul.mubr.bf16.gmra.mxu0 %v224
  %v721 = vpop.f32.mrf.mxu0
  %v722 = vadd.f32 %v673, %v721
  %v723 = vpop.f32.mrf.mxu0
  %v724 = vpop.f32.mrf.mxu0
  %v725 = vadd.f32 %v676, %v724
  %v726 = vpop.f32.mrf.mxu0
  %727 = vdwg.mxu0
  %728 = vmatprep.subr.bf16.mxu0 0
  %729 = vmatpush1.bf16.msra.mxu0 %v541
  %730 = vmatprep.subr.bf16.mxu0 0
  %731 = vmatpush1.bf16.msra.mxu0 %v540
  %732 = vmatprep.subr.bf16.mxu0 0
  %733 = vmatpush1.bf16.msra.mxu0 %v539
  %734 = vmatprep.subr.bf16.mxu0 0
  %735 = vmatpush1.bf16.msra.mxu0 %v538
  %736 = vmatprep.subr.bf16.mxu0 0
  %737 = vmatpush1.bf16.msra.mxu0 %v537
  %738 = vmatprep.subr.bf16.mxu0 0
  %739 = vmatpush1.bf16.msra.mxu0 %v536
  %740 = vmatprep.subr.bf16.mxu0 0
  %741 = vmatpush1.bf16.msra.mxu0 %v535
  %742 = vmatprep.subr.bf16.mxu0 0
  %743 = vmatpush1.bf16.msra.mxu0 %v534
  %744 = vmatprep.subr.bf16.mxu0 0
  %745 = vmatpush2.bf16.msra.mxu0 %v549
  %746 = vmatprep.subr.bf16.mxu0 0
  %747 = vmatpush2.bf16.msra.mxu0 %v548
  %748 = vmatprep.subr.bf16.mxu0 0
  %749 = vmatpush2.bf16.msra.mxu0 %v547
  %750 = vmatprep.subr.bf16.mxu0 0
  %751 = vmatpush2.bf16.msra.mxu0 %v546
  %752 = vmatprep.subr.bf16.mxu0 0
  %753 = vmatpush2.bf16.msra.mxu0 %v545
  %754 = vmatprep.subr.bf16.mxu0 0
  %755 = vmatpush2.bf16.msra.mxu0 %v544
  %756 = vmatprep.subr.bf16.mxu0 0
  %757 = vmatpush2.bf16.msra.mxu0 %v543
  %758 = vmatprep.subr.bf16.mxu0 0
  %759 = vmatpush2.bf16.msra.mxu0 %v542
  %760 = vmatprep.mubr.bf16.mxu0 %v219
  %761 = vmatmul.mubr.bf16.gmra.mxu0 %v218
  %v762 = vpop.f32.mrf.mxu0
  %v763 = vadd.f32 %v714, %v762
  %v764 = vpop.f32.mrf.mxu0
  %v765 = vpop.f32.mrf.mxu0
  %v766 = vadd.f32 %v717, %v765
  %v767 = vpop.f32.mrf.mxu0
  %768 = vmatprep.mubr.bf16.mxu0 %v227
  %769 = vmatmul.mubr.bf16.gmra.mxu0 %v226
  %v770 = vpop.f32.mrf.mxu0
  %v771 = vadd.f32 %v722, %v770
  %v772 = vpop.f32.mrf.mxu0
  %v773 = vpop.f32.mrf.mxu0
  %v774 = vadd.f32 %v725, %v773
  %v775 = vpop.f32.mrf.mxu0
  %776 = vdwg.mxu0
  %777 = vmatprep.subr.bf16.mxu0 0
  %778 = vmatpush1.bf16.msra.mxu0 %v557
  %779 = vmatprep.subr.bf16.mxu0 0
  %780 = vmatpush1.bf16.msra.mxu0 %v556
  %781 = vmatprep.subr.bf16.mxu0 0
  %782 = vmatpush1.bf16.msra.mxu0 %v555
  %783 = vmatprep.subr.bf16.mxu0 0
  %784 = vmatpush1.bf16.msra.mxu0 %v554
  %785 = vmatprep.subr.bf16.mxu0 0
  %786 = vmatpush1.bf16.msra.mxu0 %v553
  %787 = vmatprep.subr.bf16.mxu0 0
  %788 = vmatpush1.bf16.msra.mxu0 %v552
  %789 = vmatprep.subr.bf16.mxu0 0
  %790 = vmatpush1.bf16.msra.mxu0 %v551
  %791 = vmatprep.subr.bf16.mxu0 0
  %792 = vmatpush1.bf16.msra.mxu0 %v550
  %793 = vmatprep.subr.bf16.mxu0 0
  %794 = vmatpush2.bf16.msra.mxu0 %v565
  %795 = vmatprep.subr.bf16.mxu0 0
  %796 = vmatpush2.bf16.msra.mxu0 %v564
  %797 = vmatprep.subr.bf16.mxu0 0
  %798 = vmatpush2.bf16.msra.mxu0 %v563
  %799 = vmatprep.subr.bf16.mxu0 0
  %800 = vmatpush2.bf16.msra.mxu0 %v562
  %801 = vmatprep.subr.bf16.mxu0 0
  %802 = vmatpush2.bf16.msra.mxu0 %v561
  %803 = vmatprep.subr.bf16.mxu0 0
  %804 = vmatpush2.bf16.msra.mxu0 %v560
  %805 = vmatprep.subr.bf16.mxu0 0
  %806 = vmatpush2.bf16.msra.mxu0 %v559
  %807 = vmatprep.subr.bf16.mxu0 0
  %808 = vmatpush2.bf16.msra.mxu0 %v558
  %809 = vmatprep.mubr.bf16.mxu0 %v221
  %810 = vmatmul.mubr.bf16.gmra.mxu0 %v220
  %v811 = vpop.f32.mrf.mxu0
  %v812 = vadd.f32 %v763, %v811
  %v813 = vpop.f32.mrf.mxu0
  %v814 = vpop.f32.mrf.mxu0
  %v815 = vadd.f32 %v766, %v814
  %v816 = vpop.f32.mrf.mxu0
  %817 = vmatprep.mubr.bf16.mxu0 %v229
  %818 = vmatmul.mubr.bf16.gmra.mxu0 %v228
  %v819 = vpop.f32.mrf.mxu0
  %v820 = vadd.f32 %v771, %v819
  %v821 = vpop.f32.mrf.mxu0
  %v822 = vpop.f32.mrf.mxu0
  %v823 = vadd.f32 %v774, %v822
  %v824 = vpop.f32.mrf.mxu0
  %825 = vdwg.mxu0
  %826 = vst [vmem:[%s3] sm:$0xff] %v812
  %827 = vst [vmem:[%s3 + $0x8] sm:$0xff] %v815
  %828 = vst [vmem:[%s3 + $0x10] sm:$0xff] %v820
  %829 = vst [vmem:[%s3 + $0x18] sm:$0xff] %v823
  // Predicated region
  $region14: #{_lambda_.15} parent=0 // pred_check
    _
  $region15: #{_lambda_.15} parent=0 // pred_check_branch
    %831 = sbr.rel (0) target = $region17
  $region16: #{_lambda_.15} parent=0 // pred_region
    _
  $region17: #{_lambda_.15} parent=0 // pred_fallthru
    _
  // Predicated region
  $region18: #{_lambda_.15} parent=0 // pred_check
    _
  $region19: #{_lambda_.15} parent=0 // pred_check_branch
    %833 = sbr.rel (0) target = $region21
  $region20: #{_lambda_.15} parent=0 // pred_region
    _
  $region21: #{_lambda_.15} parent=0 // pred_fallthru
    _

</llo_original>
